<compile_context>
chip_gen: v6e
topology: v6e:2x2x1
jax: 0.10.0
libtpu: 0.0.40
codegen_flags: <defaults>
</compile_context>

<pallas_src>
import functools

import jax
import jax.numpy as jnp
from jax.experimental import pallas as pl
from jax.experimental.pallas import tpu as pltpu

# Fixed architecture constants of FeatureCNN's conv stack.
K1, S1 = 8, 4
K2, S2 = 4, 2
K3, S3 = 3, 1
LEAKY_SLOPE = 0.01


def conv_out_hw(h, w):
    h1, w1 = (h - K1) // S1 + 1, (w - K1) // S1 + 1
    h2, w2 = (h1 - K2) // S2 + 1, (w1 - K2) // S2 + 1
    h3, w3 = (h2 - K3) // S3 + 1, (w2 - K3) // S3 + 1
    return (h1, w1), (h2, w2), (h3, w3)


# ------------------------------ Fused kernel --------------------------------
#
# Layout used inside the kernel (per grid step = BB images):
#   * conv1 activations live on a (Hb x Wb) "parity plane" grid, Hb = Ho1/2,
#     Wb = Wo1/2, one plane per (row parity, col parity).  Plane (pi, pj),
#     position (rb, cb) holds conv1 output pixel (2*rb+pi, 2*cb+pj).
#   * h1 scratch is flat: row = plane*M + b*P + rb*Wb + cb,  P = Hb*Wb, M = BB*P.
#   * conv2/conv3 outputs are accumulated on the same Hb x Wb grid; only rows
#     with (r, c) inside the true output extent are valid, the rest is garbage
#     that is never read by a valid downstream row (trailing pad rows in the
#     scratch absorb the out-of-range reads of the garbage rows).

def _feature_cnn_kernel(p1_ref, w1_ref, b1_ref, w2_ref, b2_ref,
                        w3_ref, b3_ref, wfc_ref, bfc_ref, out_ref,
                        h1_ref, h2_ref, *, dims, slope):
    BB, Hb, Wb, Ho3, Wo3, C2, C3, FD = dims
    P = Hb * Wb            # grid positions per image
    M = BB * P             # rows across the batch block
    f32 = jnp.float32

    def leaky(v):
        return jnp.where(v >= 0, v, slope * v)

    # ---- conv1: ONE matmul for all images / positions / parities ------------
    h1 = leaky(jnp.dot(p1_ref[...], w1_ref[...], preferred_element_type=f32)
               + b1_ref[...])                       # (4*M, C1), parity-plane major
    h1_ref[pl.ds(0, 4 * M), :] = h1                 # single contiguous store

    # ---- conv2 (k4 s2): 16 per-tap whole-plane matmuls, accumulated ---------
    acc2 = jnp.zeros((M, C2), f32)
    for t in range(K2 * K2):
        i, j = t // K2, t % K2
        plane = (i % 2) * 2 + (j % 2)               # parity plane of this tap
        off = (i // 2) * Wb + (j // 2)              # shift inside the plane
        tap = h1_ref[pl.ds(plane * M + off, M), :]  # (M, C1) contiguous read
        acc2 = acc2 + jnp.dot(tap, w2_ref[t], preferred_element_type=f32)
    h2 = leaky(acc2 + b2_ref[...])                  # (M, C2)
    h2_ref[pl.ds(0, M), :] = h2

    # ---- conv3 (k3 s1): 9 per-tap whole-plane matmuls, accumulated ----------
    acc3 = jnp.zeros((M, C3), f32)
    for t in range(K3 * K3):
        i, j = t // K3, t % K3
        off = i * Wb + j
        tap = h2_ref[pl.ds(off, M), :]              # (M, C2) contiguous read
        acc3 = acc3 + jnp.dot(tap, w3_ref[t], preferred_element_type=f32)
    h3 = leaky(acc3 + b3_ref[...])                  # (M, C3); valid rows r3*Wb+c3

    # ---- Linear (flatten order baked into w_fc): 4 accumulating matmuls -----
    fc = jnp.zeros((BB, FD), f32)
    for pos in range(Ho3 * Wo3):
        r3, c3 = pos // Wo3, pos % Wo3
        g = r3 * Wb + c3
        rows = jnp.concatenate(
            [h3[b * P + g: b * P + g + 1, :] for b in range(BB)], axis=0)  # (BB,C3)
        fc = fc + jnp.dot(rows, wfc_ref[pos], preferred_element_type=f32)
    out_ref[...] = (fc + bfc_ref[...]).astype(out_ref.dtype)


# ------------------------- Parameter repacking (once) ------------------------

def prepare_params(params, input_hw):
    """One-time repack of PyTorch-layout weights into kernel-friendly layouts."""
    (_, _), (_, _), (Ho3, Wo3) = conv_out_hw(*input_hw)
    C1, Cin, _, _ = params["w1"].shape
    C2 = params["w2"].shape[0]
    C3 = params["w3"].shape[0]
    FD = params["w_fc"].shape[0]
    assert K1 == 2 * S1  # space-to-depth patch build relies on kernel = 2*stride

    # conv1: feature order (p, q, hr, wr, cin) must match the wrapper patch build.
    w1 = jnp.transpose(params["w1"], (2, 3, 1, 0))           # (kh, kw, cin, C1)
    w1 = w1.reshape(2, S1, 2, S1, Cin, C1)                   # (p, hr, q, wr, cin, C1)
    w1 = jnp.transpose(w1, (0, 2, 1, 3, 4, 5)).reshape(2 * 2 * S1 * S1 * Cin, C1)

    # conv2 / conv3: per-tap (Cin, Cout) matrices, tap index = kh*K + kw.
    w2 = jnp.transpose(params["w2"], (2, 3, 1, 0)).reshape(K2 * K2, C1, C2)
    w3 = jnp.transpose(params["w3"], (2, 3, 1, 0)).reshape(K3 * K3, C2, C3)

    # Linear: bake the PyTorch NCHW flatten order AND the transpose into the
    # weight -> per-spatial-position (C3, FD) matrices, position = r3*Wo3 + c3.
    wf = params["w_fc"].reshape(FD, C3, Ho3, Wo3)            # (fd, ch, r3, c3)
    wf = jnp.transpose(wf, (2, 3, 1, 0)).reshape(Ho3 * Wo3, C3, FD)

    return {
        "w1": w1, "b1": params["b1"].reshape(1, C1),
        "w2": w2, "b2": params["b2"].reshape(1, C2),
        "w3": w3, "b3": params["b3"].reshape(1, C3),
        "w_fc": wf, "b_fc": params["b_fc"].reshape(1, FD),
    }


# ------------------------------ Forward (jitted) -----------------------------

@jax.jit
def feature_cnn_forward(x_nchw, kp):
    B, Cin, H, W = x_nchw.shape
    (Ho1, Wo1), (Ho2, Wo2), (Ho3, Wo3) = conv_out_hw(H, W)
    # Structural requirements of the fused layout.
    assert K1 == 2 * S1 and K2 == 2 * S2 and S3 == 1
    assert Ho1 % 2 == 0 and Wo1 % 2 == 0 and Ho3 >= 1 and Wo3 >= 1
    Kf1, C1 = kp["w1"].shape
    C2 = kp["w2"].shape[-1]
    C3 = kp["w3"].shape[-1]
    FD = kp["b_fc"].shape[-1]
    Hb, Wb = Ho1 // 2, Wo1 // 2
    P = Hb * Wb

    # Batch blocking: BB images are stacked into the matmul M dimension per
    # grid step; the grid axis is "parallel" (v7x: split across TensorCores).
    BB = B if B <= 8 else 8
    nblk = -(-B // BB)
    B_pad = nblk * BB
    if B_pad != B:
        x_nchw = jnp.pad(x_nchw, ((0, B_pad - B), (0, 0), (0, 0), (0, 0)))
    M = BB * P

    # Lane-dense conv1 patches (pure XLA layout work): space-to-depth by the
    # stride, 4 contiguous taps concatenated on the lane axis (Kf1 = 256),
    # then rows reordered to (block, row-parity, col-parity, image, rb, cb) so
    # the kernel's conv2 tap reads are contiguous.
    x = jnp.transpose(x_nchw, (0, 2, 3, 1))                  # NHWC
    Hs, Ws = H // S1, W // S1
    x = x[:, :Hs * S1, :Ws * S1, :]
    xs = x.reshape(B_pad, Hs, S1, Ws, S1, Cin)
    xs = jnp.transpose(xs, (0, 1, 3, 2, 4, 5)).reshape(B_pad, Hs, Ws, S1 * S1 * Cin)
    taps = [xs[:, p:p + Ho1, q:q + Wo1, :] for p in range(2) for q in range(2)]
    patches = jnp.concatenate(taps, axis=-1)                 # (B_pad, Ho1, Wo1, Kf1)
    p6 = patches.reshape(nblk, BB, Hb, 2, Wb, 2, Kf1)
    p6 = jnp.transpose(p6, (0, 3, 5, 1, 2, 4, 6))            # (nb, pi, pj, b, rb, cb, f)
    p1 = p6.reshape(nblk * 4 * M, Kf1)

    dims = (BB, Hb, Wb, Ho3, Wo3, C2, C3, FD)
    kernel = functools.partial(_feature_cnn_kernel, dims=dims, slope=LEAKY_SLOPE)

    out = pl.pallas_call(
        kernel,
        out_shape=jax.ShapeDtypeStruct((B_pad, FD), jnp.float32),
        grid=(nblk,),
        in_specs=[
            pl.BlockSpec((4 * M, Kf1), lambda n: (n, 0)),
            # Weights/biases: constant index maps -> loaded once, VMEM-resident.
            pl.BlockSpec((Kf1, C1), lambda n: (0, 0)),
            pl.BlockSpec((1, C1), lambda n: (0, 0)),
            pl.BlockSpec((K2 * K2, C1, C2), lambda n: (0, 0, 0)),
            pl.BlockSpec((1, C2), lambda n: (0, 0)),
            pl.BlockSpec((K3 * K3, C2, C3), lambda n: (0, 0, 0)),
            pl.BlockSpec((1, C3), lambda n: (0, 0)),
            pl.BlockSpec((Ho3 * Wo3, C3, FD), lambda n: (0, 0, 0)),
            pl.BlockSpec((1, FD), lambda n: (0, 0)),
        ],
        out_specs=pl.BlockSpec((BB, FD), lambda n: (n, 0)),
        scratch_shapes=[
            # conv1 activations, parity-plane flat layout (+8 pad rows that
            # absorb reads from garbage output rows).
            pltpu.VMEM((4 * M + 8, C1), jnp.float32),
            # conv2 activations on the Hb x Wb grid (+16 pad rows).
            pltpu.VMEM((M + 16, C2), jnp.float32),
        ],
        compiler_params=pltpu.CompilerParams(
            dimension_semantics=("parallel",)),
    )(p1, kp["w1"], kp["b1"], kp["w2"], kp["b2"],
      kp["w3"], kp["b3"], kp["w_fc"], kp["b_fc"])
    return out[:B]


# ------------------------- Deterministic parameters --------------------------

def init_params(key, c, convfeat, conv_out, features_dim):
    keys = jax.random.split(key, 8)
    scale = 0.05
    return {
        "w1": scale * jax.random.normal(keys[0], (convfeat, c, 8, 8), jnp.float32),
        "b1": scale * jax.random.normal(keys[1], (convfeat,), jnp.float32),
        "w2": scale * jax.random.normal(keys[2], (convfeat * 2, convfeat, 4, 4), jnp.float32),
        "b2": scale * jax.random.normal(keys[3], (convfeat * 2,), jnp.float32),
        "w3": scale * jax.random.normal(keys[4], (convfeat * 2, convfeat * 2, 3, 3), jnp.float32),
        "b3": scale * jax.random.normal(keys[5], (convfeat * 2,), jnp.float32),
        "w_fc": scale * jax.random.normal(keys[6], (features_dim, conv_out), jnp.float32),
        "b_fc": scale * jax.random.normal(keys[7], (features_dim,), jnp.float32),
    }


# ----------------------------- Pure-JAX reference ----------------------------

def reference_forward(x_nchw, params, slope=LEAKY_SLOPE):
    def conv(x, w, b, stride):
        y = jax.lax.conv_general_dilated(
            x, w, (stride, stride), "VALID",
            dimension_numbers=("NCHW", "OIHW", "NCHW"))
        y = y + b[None, :, None, None]
        return jnp.where(y >= 0, y, slope * y)

    x = conv(x_nchw, params["w1"], params["b1"], S1)
    x = conv(x, params["w2"], params["b2"], S2)
    x = conv(x, params["w3"], params["b3"], S3)
    x = x.reshape(x.shape[0], -1)
    return x @ params["w_fc"].T + params["b_fc"]


# ----------------------------------- Main ------------------------------------

if __name__ == "__main__":
    # FeatureCNN(input_shape=(4,44,44), convfeat=8, features_dim=32,
    #            simple_linear=True), batch=2.
    batch, c, h, w = 2, 4, 44, 44
    convfeat, features_dim = 8, 32

    (_, _), (_, _), (ho3, wo3) = conv_out_hw(h, w)       # 44 -> 10 -> 4 -> 2
    conv_out = (convfeat * 2) * ho3 * wo3                # 16 * 2 * 2 = 64

    key = jax.random.PRNGKey(0)
    k_x, k_p = jax.random.split(key)
    x = jax.random.normal(k_x, (batch, c, h, w), jnp.float32)
    params = init_params(k_p, c, convfeat, conv_out, features_dim)
    kparams = prepare_params(params, (h, w))             # one-time weight repack

    out = jax.block_until_ready(feature_cnn_forward(x, kparams))
    assert out.shape == (batch, features_dim), out.shape

    ref = jax.block_until_ready(reference_forward(x, params))
    assert jnp.allclose(out, ref, rtol=1e-3, atol=1e-3), (
        float(jnp.max(jnp.abs(out - ref))))

    print("KERNEL_OK")
</pallas_src>

<mosaic_0001>
module attributes {stable_mosaic.version = 11 : i64} {
  func.func @_feature_cnn_kernel(%arg0: i32, %arg1: memref<200x256xf32, #tpu.memory_space<vmem>>, %arg2: memref<256x8xf32, #tpu.memory_space<vmem>>, %arg3: memref<1x8xf32, #tpu.memory_space<vmem>>, %arg4: memref<16x8x16xf32, #tpu.memory_space<vmem>>, %arg5: memref<1x16xf32, #tpu.memory_space<vmem>>, %arg6: memref<9x16x16xf32, #tpu.memory_space<vmem>>, %arg7: memref<1x16xf32, #tpu.memory_space<vmem>>, %arg8: memref<4x16x32xf32, #tpu.memory_space<vmem>>, %arg9: memref<1x32xf32, #tpu.memory_space<vmem>>, %arg10: memref<2x32xf32, #tpu.memory_space<vmem>>, %arg11: memref<208x8xf32, #tpu.memory_space<vmem>>, %arg12: memref<66x16xf32, #tpu.memory_space<vmem>>) attributes {dimension_semantics = [#tpu.dimension_semantics<parallel>], iteration_bounds = array<i64: 1>, scalar_prefetch = 0 : i64, scratch_operands = 2 : i64, tpu.core_type = #tpu.core_type<tc>, window_params = [{transform_indices = @transform_0, window_bounds = array<i64: 200, 256>}, {pipeline_mode = #tpu.pipeline_mode<synchronous>, transform_indices = @transform_1, window_bounds = array<i64: 256, 8>}, {pipeline_mode = #tpu.pipeline_mode<synchronous>, transform_indices = @transform_2, window_bounds = array<i64: 1, 8>}, {pipeline_mode = #tpu.pipeline_mode<synchronous>, transform_indices = @transform_3, window_bounds = array<i64: 16, 8, 16>}, {pipeline_mode = #tpu.pipeline_mode<synchronous>, transform_indices = @transform_4, window_bounds = array<i64: 1, 16>}, {pipeline_mode = #tpu.pipeline_mode<synchronous>, transform_indices = @transform_5, window_bounds = array<i64: 9, 16, 16>}, {pipeline_mode = #tpu.pipeline_mode<synchronous>, transform_indices = @transform_6, window_bounds = array<i64: 1, 16>}, {pipeline_mode = #tpu.pipeline_mode<synchronous>, transform_indices = @transform_7, window_bounds = array<i64: 4, 16, 32>}, {pipeline_mode = #tpu.pipeline_mode<synchronous>, transform_indices = @transform_8, window_bounds = array<i64: 1, 32>}, {transform_indices = @transform_9, window_bounds = array<i64: 2, 32>}]} {
    %c0 = arith.constant 0 : index
    %c0_0 = arith.constant 0 : index
    %0 = vector.load %arg1[%c0, %c0_0] : memref<200x256xf32, #tpu.memory_space<vmem>>, vector<200x256xf32>
    %c0_1 = arith.constant 0 : index
    %c0_2 = arith.constant 0 : index
    %1 = vector.load %arg2[%c0_1, %c0_2] : memref<256x8xf32, #tpu.memory_space<vmem>>, vector<256x8xf32>
    %cst = arith.constant dense<0.000000e+00> : vector<200x8xf32>
    %2 = tpu.matmul %0, %1, %cst {dimension_numbers = #tpu.dot_dimension_numbers<[1], [0], [0], [1], [0, 0, 1, 1], [], []>} : vector<200x256xf32>, vector<256x8xf32>, vector<200x8xf32> -> vector<200x8xf32>
    %c0_3 = arith.constant 0 : index
    %c0_4 = arith.constant 0 : index
    %3 = vector.load %arg3[%c0_3, %c0_4] : memref<1x8xf32, #tpu.memory_space<vmem>>, vector<1x8xf32>
    %4 = vector.broadcast %3 : vector<1x8xf32> to vector<200x8xf32>
    %5 = arith.addf %2, %4 : vector<200x8xf32>
    %cst_5 = arith.constant 0.000000e+00 : f32
    %6 = vector.broadcast %cst_5 : f32 to vector<200x8xf32>
    %7 = arith.cmpf oge, %5, %6 : vector<200x8xf32>
    %cst_6 = arith.constant 0.00999999977 : f32
    %8 = vector.broadcast %cst_6 : f32 to vector<200x8xf32>
    %9 = arith.mulf %8, %5 : vector<200x8xf32>
    %10 = arith.select %7, %5, %9 : vector<200x8xi1>, vector<200x8xf32>
    %c0_7 = arith.constant 0 : index
    %c0_8 = arith.constant 0 : index
    %11 = vector.load %arg11[%c0_7, %c0_8] : memref<208x8xf32, #tpu.memory_space<vmem>>, vector<200x8xf32>
    tpu.vector_store %arg11[%c0_7, %c0_8], %10 {strides = array<i32>} : memref<208x8xf32, #tpu.memory_space<vmem>>, vector<200x8xf32>,
    %cst_9 = arith.constant 0.000000e+00 : f32
    %12 = vector.broadcast %cst_9 : f32 to vector<50x16xf32>
    %c0_10 = arith.constant 0 : index
    %c0_11 = arith.constant 0 : index
    %13 = vector.load %arg11[%c0_10, %c0_11] : memref<208x8xf32, #tpu.memory_space<vmem>>, vector<50x8xf32>
    %c0_12 = arith.constant 0 : index
    %c0_13 = arith.constant 0 : index
    %c0_14 = arith.constant 0 : index
    %14 = vector.load %arg4[%c0_12, %c0_13, %c0_14] : memref<16x8x16xf32, #tpu.memory_space<vmem>>, vector<1x8x16xf32>
    %15 = vector.shape_cast %14 : vector<1x8x16xf32> to vector<8x16xf32>
    %cst_15 = arith.constant dense<0.000000e+00> : vector<50x16xf32>
    %16 = tpu.matmul %13, %15, %cst_15 {dimension_numbers = #tpu.dot_dimension_numbers<[1], [0], [0], [1], [0, 0, 1, 1], [], []>} : vector<50x8xf32>, vector<8x16xf32>, vector<50x16xf32> -> vector<50x16xf32>
    %17 = arith.addf %12, %16 : vector<50x16xf32>
    %c50 = arith.constant 50 : index
    %c0_16 = arith.constant 0 : index
    %18 = vector.load %arg11[%c50, %c0_16] : memref<208x8xf32, #tpu.memory_space<vmem>>, vector<50x8xf32>
    %c1 = arith.constant 1 : index
    %c0_17 = arith.constant 0 : index
    %c0_18 = arith.constant 0 : index
    %19 = vector.load %arg4[%c1, %c0_17, %c0_18] : memref<16x8x16xf32, #tpu.memory_space<vmem>>, vector<1x8x16xf32>
    %20 = vector.shape_cast %19 : vector<1x8x16xf32> to vector<8x16xf32>
    %cst_19 = arith.constant dense<0.000000e+00> : vector<50x16xf32>
    %21 = tpu.matmul %18, %20, %cst_19 {dimension_numbers = #tpu.dot_dimension_numbers<[1], [0], [0], [1], [0, 0, 1, 1], [], []>} : vector<50x8xf32>, vector<8x16xf32>, vector<50x16xf32> -> vector<50x16xf32>
    %22 = arith.addf %17, %21 : vector<50x16xf32>
    %c1_20 = arith.constant 1 : index
    %c0_21 = arith.constant 0 : index
    %23 = vector.load %arg11[%c1_20, %c0_21] : memref<208x8xf32, #tpu.memory_space<vmem>>, vector<50x8xf32>
    %c2 = arith.constant 2 : index
    %c0_22 = arith.constant 0 : index
    %c0_23 = arith.constant 0 : index
    %24 = vector.load %arg4[%c2, %c0_22, %c0_23] : memref<16x8x16xf32, #tpu.memory_space<vmem>>, vector<1x8x16xf32>
    %25 = vector.shape_cast %24 : vector<1x8x16xf32> to vector<8x16xf32>
    %cst_24 = arith.constant dense<0.000000e+00> : vector<50x16xf32>
    %26 = tpu.matmul %23, %25, %cst_24 {dimension_numbers = #tpu.dot_dimension_numbers<[1], [0], [0], [1], [0, 0, 1, 1], [], []>} : vector<50x8xf32>, vector<8x16xf32>, vector<50x16xf32> -> vector<50x16xf32>
    %27 = arith.addf %22, %26 : vector<50x16xf32>
    %c51 = arith.constant 51 : index
    %c0_25 = arith.constant 0 : index
    %28 = vector.load %arg11[%c51, %c0_25] : memref<208x8xf32, #tpu.memory_space<vmem>>, vector<50x8xf32>
    %c3 = arith.constant 3 : index
    %c0_26 = arith.constant 0 : index
    %c0_27 = arith.constant 0 : index
    %29 = vector.load %arg4[%c3, %c0_26, %c0_27] : memref<16x8x16xf32, #tpu.memory_space<vmem>>, vector<1x8x16xf32>
    %30 = vector.shape_cast %29 : vector<1x8x16xf32> to vector<8x16xf32>
    %cst_28 = arith.constant dense<0.000000e+00> : vector<50x16xf32>
    %31 = tpu.matmul %28, %30, %cst_28 {dimension_numbers = #tpu.dot_dimension_numbers<[1], [0], [0], [1], [0, 0, 1, 1], [], []>} : vector<50x8xf32>, vector<8x16xf32>, vector<50x16xf32> -> vector<50x16xf32>
    %32 = arith.addf %27, %31 : vector<50x16xf32>
    %c100 = arith.constant 100 : index
    %c0_29 = arith.constant 0 : index
    %33 = vector.load %arg11[%c100, %c0_29] : memref<208x8xf32, #tpu.memory_space<vmem>>, vector<50x8xf32>
    %c4 = arith.constant 4 : index
    %c0_30 = arith.constant 0 : index
    %c0_31 = arith.constant 0 : index
    %34 = vector.load %arg4[%c4, %c0_30, %c0_31] : memref<16x8x16xf32, #tpu.memory_space<vmem>>, vector<1x8x16xf32>
    %35 = vector.shape_cast %34 : vector<1x8x16xf32> to vector<8x16xf32>
    %cst_32 = arith.constant dense<0.000000e+00> : vector<50x16xf32>
    %36 = tpu.matmul %33, %35, %cst_32 {dimension_numbers = #tpu.dot_dimension_numbers<[1], [0], [0], [1], [0, 0, 1, 1], [], []>} : vector<50x8xf32>, vector<8x16xf32>, vector<50x16xf32> -> vector<50x16xf32>
    %37 = arith.addf %32, %36 : vector<50x16xf32>
    %c150 = arith.constant 150 : index
    %c0_33 = arith.constant 0 : index
    %38 = vector.load %arg11[%c150, %c0_33] : memref<208x8xf32, #tpu.memory_space<vmem>>, vector<50x8xf32>
    %c5 = arith.constant 5 : index
    %c0_34 = arith.constant 0 : index
    %c0_35 = arith.constant 0 : index
    %39 = vector.load %arg4[%c5, %c0_34, %c0_35] : memref<16x8x16xf32, #tpu.memory_space<vmem>>, vector<1x8x16xf32>
    %40 = vector.shape_cast %39 : vector<1x8x16xf32> to vector<8x16xf32>
    %cst_36 = arith.constant dense<0.000000e+00> : vector<50x16xf32>
    %41 = tpu.matmul %38, %40, %cst_36 {dimension_numbers = #tpu.dot_dimension_numbers<[1], [0], [0], [1], [0, 0, 1, 1], [], []>} : vector<50x8xf32>, vector<8x16xf32>, vector<50x16xf32> -> vector<50x16xf32>
    %42 = arith.addf %37, %41 : vector<50x16xf32>
    %c101 = arith.constant 101 : index
    %c0_37 = arith.constant 0 : index
    %43 = vector.load %arg11[%c101, %c0_37] : memref<208x8xf32, #tpu.memory_space<vmem>>, vector<50x8xf32>
    %c6 = arith.constant 6 : index
    %c0_38 = arith.constant 0 : index
    %c0_39 = arith.constant 0 : index
    %44 = vector.load %arg4[%c6, %c0_38, %c0_39] : memref<16x8x16xf32, #tpu.memory_space<vmem>>, vector<1x8x16xf32>
    %45 = vector.shape_cast %44 : vector<1x8x16xf32> to vector<8x16xf32>
    %cst_40 = arith.constant dense<0.000000e+00> : vector<50x16xf32>
    %46 = tpu.matmul %43, %45, %cst_40 {dimension_numbers = #tpu.dot_dimension_numbers<[1], [0], [0], [1], [0, 0, 1, 1], [], []>} : vector<50x8xf32>, vector<8x16xf32>, vector<50x16xf32> -> vector<50x16xf32>
    %47 = arith.addf %42, %46 : vector<50x16xf32>
    %c151 = arith.constant 151 : index
    %c0_41 = arith.constant 0 : index
    %48 = vector.load %arg11[%c151, %c0_41] : memref<208x8xf32, #tpu.memory_space<vmem>>, vector<50x8xf32>
    %c7 = arith.constant 7 : index
    %c0_42 = arith.constant 0 : index
    %c0_43 = arith.constant 0 : index
    %49 = vector.load %arg4[%c7, %c0_42, %c0_43] : memref<16x8x16xf32, #tpu.memory_space<vmem>>, vector<1x8x16xf32>
    %50 = vector.shape_cast %49 : vector<1x8x16xf32> to vector<8x16xf32>
    %cst_44 = arith.constant dense<0.000000e+00> : vector<50x16xf32>
    %51 = tpu.matmul %48, %50, %cst_44 {dimension_numbers = #tpu.dot_dimension_numbers<[1], [0], [0], [1], [0, 0, 1, 1], [], []>} : vector<50x8xf32>, vector<8x16xf32>, vector<50x16xf32> -> vector<50x16xf32>
    %52 = arith.addf %47, %51 : vector<50x16xf32>
    %c5_45 = arith.constant 5 : index
    %c0_46 = arith.constant 0 : index
    %53 = vector.load %arg11[%c5_45, %c0_46] : memref<208x8xf32, #tpu.memory_space<vmem>>, vector<50x8xf32>
    %c8 = arith.constant 8 : index
    %c0_47 = arith.constant 0 : index
    %c0_48 = arith.constant 0 : index
    %54 = vector.load %arg4[%c8, %c0_47, %c0_48] : memref<16x8x16xf32, #tpu.memory_space<vmem>>, vector<1x8x16xf32>
    %55 = vector.shape_cast %54 : vector<1x8x16xf32> to vector<8x16xf32>
    %cst_49 = arith.constant dense<0.000000e+00> : vector<50x16xf32>
    %56 = tpu.matmul %53, %55, %cst_49 {dimension_numbers = #tpu.dot_dimension_numbers<[1], [0], [0], [1], [0, 0, 1, 1], [], []>} : vector<50x8xf32>, vector<8x16xf32>, vector<50x16xf32> -> vector<50x16xf32>
    %57 = arith.addf %52, %56 : vector<50x16xf32>
    %c55 = arith.constant 55 : index
    %c0_50 = arith.constant 0 : index
    %58 = vector.load %arg11[%c55, %c0_50] : memref<208x8xf32, #tpu.memory_space<vmem>>, vector<50x8xf32>
    %c9 = arith.constant 9 : index
    %c0_51 = arith.constant 0 : index
    %c0_52 = arith.constant 0 : index
    %59 = vector.load %arg4[%c9, %c0_51, %c0_52] : memref<16x8x16xf32, #tpu.memory_space<vmem>>, vector<1x8x16xf32>
    %60 = vector.shape_cast %59 : vector<1x8x16xf32> to vector<8x16xf32>
    %cst_53 = arith.constant dense<0.000000e+00> : vector<50x16xf32>
    %61 = tpu.matmul %58, %60, %cst_53 {dimension_numbers = #tpu.dot_dimension_numbers<[1], [0], [0], [1], [0, 0, 1, 1], [], []>} : vector<50x8xf32>, vector<8x16xf32>, vector<50x16xf32> -> vector<50x16xf32>
    %62 = arith.addf %57, %61 : vector<50x16xf32>
    %c6_54 = arith.constant 6 : index
    %c0_55 = arith.constant 0 : index
    %63 = vector.load %arg11[%c6_54, %c0_55] : memref<208x8xf32, #tpu.memory_space<vmem>>, vector<50x8xf32>
    %c10 = arith.constant 10 : index
    %c0_56 = arith.constant 0 : index
    %c0_57 = arith.constant 0 : index
    %64 = vector.load %arg4[%c10, %c0_56, %c0_57] : memref<16x8x16xf32, #tpu.memory_space<vmem>>, vector<1x8x16xf32>
    %65 = vector.shape_cast %64 : vector<1x8x16xf32> to vector<8x16xf32>
    %cst_58 = arith.constant dense<0.000000e+00> : vector<50x16xf32>
    %66 = tpu.matmul %63, %65, %cst_58 {dimension_numbers = #tpu.dot_dimension_numbers<[1], [0], [0], [1], [0, 0, 1, 1], [], []>} : vector<50x8xf32>, vector<8x16xf32>, vector<50x16xf32> -> vector<50x16xf32>
    %67 = arith.addf %62, %66 : vector<50x16xf32>
    %c56 = arith.constant 56 : index
    %c0_59 = arith.constant 0 : index
    %68 = vector.load %arg11[%c56, %c0_59] : memref<208x8xf32, #tpu.memory_space<vmem>>, vector<50x8xf32>
    %c11 = arith.constant 11 : index
    %c0_60 = arith.constant 0 : index
    %c0_61 = arith.constant 0 : index
    %69 = vector.load %arg4[%c11, %c0_60, %c0_61] : memref<16x8x16xf32, #tpu.memory_space<vmem>>, vector<1x8x16xf32>
    %70 = vector.shape_cast %69 : vector<1x8x16xf32> to vector<8x16xf32>
    %cst_62 = arith.constant dense<0.000000e+00> : vector<50x16xf32>
    %71 = tpu.matmul %68, %70, %cst_62 {dimension_numbers = #tpu.dot_dimension_numbers<[1], [0], [0], [1], [0, 0, 1, 1], [], []>} : vector<50x8xf32>, vector<8x16xf32>, vector<50x16xf32> -> vector<50x16xf32>
    %72 = arith.addf %67, %71 : vector<50x16xf32>
    %c105 = arith.constant 105 : index
    %c0_63 = arith.constant 0 : index
    %73 = vector.load %arg11[%c105, %c0_63] : memref<208x8xf32, #tpu.memory_space<vmem>>, vector<50x8xf32>
    %c12 = arith.constant 12 : index
    %c0_64 = arith.constant 0 : index
    %c0_65 = arith.constant 0 : index
    %74 = vector.load %arg4[%c12, %c0_64, %c0_65] : memref<16x8x16xf32, #tpu.memory_space<vmem>>, vector<1x8x16xf32>
    %75 = vector.shape_cast %74 : vector<1x8x16xf32> to vector<8x16xf32>
    %cst_66 = arith.constant dense<0.000000e+00> : vector<50x16xf32>
    %76 = tpu.matmul %73, %75, %cst_66 {dimension_numbers = #tpu.dot_dimension_numbers<[1], [0], [0], [1], [0, 0, 1, 1], [], []>} : vector<50x8xf32>, vector<8x16xf32>, vector<50x16xf32> -> vector<50x16xf32>
    %77 = arith.addf %72, %76 : vector<50x16xf32>
    %c155 = arith.constant 155 : index
    %c0_67 = arith.constant 0 : index
    %78 = vector.load %arg11[%c155, %c0_67] : memref<208x8xf32, #tpu.memory_space<vmem>>, vector<50x8xf32>
    %c13 = arith.constant 13 : index
    %c0_68 = arith.constant 0 : index
    %c0_69 = arith.constant 0 : index
    %79 = vector.load %arg4[%c13, %c0_68, %c0_69] : memref<16x8x16xf32, #tpu.memory_space<vmem>>, vector<1x8x16xf32>
    %80 = vector.shape_cast %79 : vector<1x8x16xf32> to vector<8x16xf32>
    %cst_70 = arith.constant dense<0.000000e+00> : vector<50x16xf32>
    %81 = tpu.matmul %78, %80, %cst_70 {dimension_numbers = #tpu.dot_dimension_numbers<[1], [0], [0], [1], [0, 0, 1, 1], [], []>} : vector<50x8xf32>, vector<8x16xf32>, vector<50x16xf32> -> vector<50x16xf32>
    %82 = arith.addf %77, %81 : vector<50x16xf32>
    %c106 = arith.constant 106 : index
    %c0_71 = arith.constant 0 : index
    %83 = vector.load %arg11[%c106, %c0_71] : memref<208x8xf32, #tpu.memory_space<vmem>>, vector<50x8xf32>
    %c14 = arith.constant 14 : index
    %c0_72 = arith.constant 0 : index
    %c0_73 = arith.constant 0 : index
    %84 = vector.load %arg4[%c14, %c0_72, %c0_73] : memref<16x8x16xf32, #tpu.memory_space<vmem>>, vector<1x8x16xf32>
    %85 = vector.shape_cast %84 : vector<1x8x16xf32> to vector<8x16xf32>
    %cst_74 = arith.constant dense<0.000000e+00> : vector<50x16xf32>
    %86 = tpu.matmul %83, %85, %cst_74 {dimension_numbers = #tpu.dot_dimension_numbers<[1], [0], [0], [1], [0, 0, 1, 1], [], []>} : vector<50x8xf32>, vector<8x16xf32>, vector<50x16xf32> -> vector<50x16xf32>
    %87 = arith.addf %82, %86 : vector<50x16xf32>
    %c156 = arith.constant 156 : index
    %c0_75 = arith.constant 0 : index
    %88 = vector.load %arg11[%c156, %c0_75] : memref<208x8xf32, #tpu.memory_space<vmem>>, vector<50x8xf32>
    %c15 = arith.constant 15 : index
    %c0_76 = arith.constant 0 : index
    %c0_77 = arith.constant 0 : index
    %89 = vector.load %arg4[%c15, %c0_76, %c0_77] : memref<16x8x16xf32, #tpu.memory_space<vmem>>, vector<1x8x16xf32>
    %90 = vector.shape_cast %89 : vector<1x8x16xf32> to vector<8x16xf32>
    %cst_78 = arith.constant dense<0.000000e+00> : vector<50x16xf32>
    %91 = tpu.matmul %88, %90, %cst_78 {dimension_numbers = #tpu.dot_dimension_numbers<[1], [0], [0], [1], [0, 0, 1, 1], [], []>} : vector<50x8xf32>, vector<8x16xf32>, vector<50x16xf32> -> vector<50x16xf32>
    %92 = arith.addf %87, %91 : vector<50x16xf32>
    %c0_79 = arith.constant 0 : index
    %c0_80 = arith.constant 0 : index
    %93 = vector.load %arg5[%c0_79, %c0_80] : memref<1x16xf32, #tpu.memory_space<vmem>>, vector<1x16xf32>
    %94 = vector.broadcast %93 : vector<1x16xf32> to vector<50x16xf32>
    %95 = arith.addf %92, %94 : vector<50x16xf32>
    %cst_81 = arith.constant 0.000000e+00 : f32
    %96 = vector.broadcast %cst_81 : f32 to vector<50x16xf32>
    %97 = arith.cmpf oge, %95, %96 : vector<50x16xf32>
    %cst_82 = arith.constant 0.00999999977 : f32
    %98 = vector.broadcast %cst_82 : f32 to vector<50x16xf32>
    %99 = arith.mulf %98, %95 : vector<50x16xf32>
    %100 = arith.select %97, %95, %99 : vector<50x16xi1>, vector<50x16xf32>
    %c0_83 = arith.constant 0 : index
    %c0_84 = arith.constant 0 : index
    %101 = vector.load %arg12[%c0_83, %c0_84] : memref<66x16xf32, #tpu.memory_space<vmem>>, vector<50x16xf32>
    tpu.vector_store %arg12[%c0_83, %c0_84], %100 {strides = array<i32>} : memref<66x16xf32, #tpu.memory_space<vmem>>, vector<50x16xf32>,
    %cst_85 = arith.constant 0.000000e+00 : f32
    %102 = vector.broadcast %cst_85 : f32 to vector<50x16xf32>
    %c0_86 = arith.constant 0 : index
    %c0_87 = arith.constant 0 : index
    %103 = vector.load %arg12[%c0_86, %c0_87] : memref<66x16xf32, #tpu.memory_space<vmem>>, vector<50x16xf32>
    %c0_88 = arith.constant 0 : index
    %c0_89 = arith.constant 0 : index
    %c0_90 = arith.constant 0 : index
    %104 = vector.load %arg6[%c0_88, %c0_89, %c0_90] : memref<9x16x16xf32, #tpu.memory_space<vmem>>, vector<1x16x16xf32>
    %105 = vector.shape_cast %104 : vector<1x16x16xf32> to vector<16x16xf32>
    %cst_91 = arith.constant dense<0.000000e+00> : vector<50x16xf32>
    %106 = tpu.matmul %103, %105, %cst_91 {dimension_numbers = #tpu.dot_dimension_numbers<[1], [0], [0], [1], [0, 0, 1, 1], [], []>} : vector<50x16xf32>, vector<16x16xf32>, vector<50x16xf32> -> vector<50x16xf32>
    %107 = arith.addf %102, %106 : vector<50x16xf32>
    %c1_92 = arith.constant 1 : index
    %c0_93 = arith.constant 0 : index
    %108 = vector.load %arg12[%c1_92, %c0_93] : memref<66x16xf32, #tpu.memory_space<vmem>>, vector<50x16xf32>
    %c1_94 = arith.constant 1 : index
    %c0_95 = arith.constant 0 : index
    %c0_96 = arith.constant 0 : index
    %109 = vector.load %arg6[%c1_94, %c0_95, %c0_96] : memref<9x16x16xf32, #tpu.memory_space<vmem>>, vector<1x16x16xf32>
    %110 = vector.shape_cast %109 : vector<1x16x16xf32> to vector<16x16xf32>
    %cst_97 = arith.constant dense<0.000000e+00> : vector<50x16xf32>
    %111 = tpu.matmul %108, %110, %cst_97 {dimension_numbers = #tpu.dot_dimension_numbers<[1], [0], [0], [1], [0, 0, 1, 1], [], []>} : vector<50x16xf32>, vector<16x16xf32>, vector<50x16xf32> -> vector<50x16xf32>
    %112 = arith.addf %107, %111 : vector<50x16xf32>
    %c2_98 = arith.constant 2 : index
    %c0_99 = arith.constant 0 : index
    %113 = vector.load %arg12[%c2_98, %c0_99] : memref<66x16xf32, #tpu.memory_space<vmem>>, vector<50x16xf32>
    %c2_100 = arith.constant 2 : index
    %c0_101 = arith.constant 0 : index
    %c0_102 = arith.constant 0 : index
    %114 = vector.load %arg6[%c2_100, %c0_101, %c0_102] : memref<9x16x16xf32, #tpu.memory_space<vmem>>, vector<1x16x16xf32>
    %115 = vector.shape_cast %114 : vector<1x16x16xf32> to vector<16x16xf32>
    %cst_103 = arith.constant dense<0.000000e+00> : vector<50x16xf32>
    %116 = tpu.matmul %113, %115, %cst_103 {dimension_numbers = #tpu.dot_dimension_numbers<[1], [0], [0], [1], [0, 0, 1, 1], [], []>} : vector<50x16xf32>, vector<16x16xf32>, vector<50x16xf32> -> vector<50x16xf32>
    %117 = arith.addf %112, %116 : vector<50x16xf32>
    %c5_104 = arith.constant 5 : index
    %c0_105 = arith.constant 0 : index
    %118 = vector.load %arg12[%c5_104, %c0_105] : memref<66x16xf32, #tpu.memory_space<vmem>>, vector<50x16xf32>
    %c3_106 = arith.constant 3 : index
    %c0_107 = arith.constant 0 : index
    %c0_108 = arith.constant 0 : index
    %119 = vector.load %arg6[%c3_106, %c0_107, %c0_108] : memref<9x16x16xf32, #tpu.memory_space<vmem>>, vector<1x16x16xf32>
    %120 = vector.shape_cast %119 : vector<1x16x16xf32> to vector<16x16xf32>
    %cst_109 = arith.constant dense<0.000000e+00> : vector<50x16xf32>
    %121 = tpu.matmul %118, %120, %cst_109 {dimension_numbers = #tpu.dot_dimension_numbers<[1], [0], [0], [1], [0, 0, 1, 1], [], []>} : vector<50x16xf32>, vector<16x16xf32>, vector<50x16xf32> -> vector<50x16xf32>
    %122 = arith.addf %117, %121 : vector<50x16xf32>
    %c6_110 = arith.constant 6 : index
    %c0_111 = arith.constant 0 : index
    %123 = vector.load %arg12[%c6_110, %c0_111] : memref<66x16xf32, #tpu.memory_space<vmem>>, vector<50x16xf32>
    %c4_112 = arith.constant 4 : index
    %c0_113 = arith.constant 0 : index
    %c0_114 = arith.constant 0 : index
    %124 = vector.load %arg6[%c4_112, %c0_113, %c0_114] : memref<9x16x16xf32, #tpu.memory_space<vmem>>, vector<1x16x16xf32>
    %125 = vector.shape_cast %124 : vector<1x16x16xf32> to vector<16x16xf32>
    %cst_115 = arith.constant dense<0.000000e+00> : vector<50x16xf32>
    %126 = tpu.matmul %123, %125, %cst_115 {dimension_numbers = #tpu.dot_dimension_numbers<[1], [0], [0], [1], [0, 0, 1, 1], [], []>} : vector<50x16xf32>, vector<16x16xf32>, vector<50x16xf32> -> vector<50x16xf32>
    %127 = arith.addf %122, %126 : vector<50x16xf32>
    %c7_116 = arith.constant 7 : index
    %c0_117 = arith.constant 0 : index
    %128 = vector.load %arg12[%c7_116, %c0_117] : memref<66x16xf32, #tpu.memory_space<vmem>>, vector<50x16xf32>
    %c5_118 = arith.constant 5 : index
    %c0_119 = arith.constant 0 : index
    %c0_120 = arith.constant 0 : index
    %129 = vector.load %arg6[%c5_118, %c0_119, %c0_120] : memref<9x16x16xf32, #tpu.memory_space<vmem>>, vector<1x16x16xf32>
    %130 = vector.shape_cast %129 : vector<1x16x16xf32> to vector<16x16xf32>
    %cst_121 = arith.constant dense<0.000000e+00> : vector<50x16xf32>
    %131 = tpu.matmul %128, %130, %cst_121 {dimension_numbers = #tpu.dot_dimension_numbers<[1], [0], [0], [1], [0, 0, 1, 1], [], []>} : vector<50x16xf32>, vector<16x16xf32>, vector<50x16xf32> -> vector<50x16xf32>
    %132 = arith.addf %127, %131 : vector<50x16xf32>
    %c10_122 = arith.constant 10 : index
    %c0_123 = arith.constant 0 : index
    %133 = vector.load %arg12[%c10_122, %c0_123] : memref<66x16xf32, #tpu.memory_space<vmem>>, vector<50x16xf32>
    %c6_124 = arith.constant 6 : index
    %c0_125 = arith.constant 0 : index
    %c0_126 = arith.constant 0 : index
    %134 = vector.load %arg6[%c6_124, %c0_125, %c0_126] : memref<9x16x16xf32, #tpu.memory_space<vmem>>, vector<1x16x16xf32>
    %135 = vector.shape_cast %134 : vector<1x16x16xf32> to vector<16x16xf32>
    %cst_127 = arith.constant dense<0.000000e+00> : vector<50x16xf32>
    %136 = tpu.matmul %133, %135, %cst_127 {dimension_numbers = #tpu.dot_dimension_numbers<[1], [0], [0], [1], [0, 0, 1, 1], [], []>} : vector<50x16xf32>, vector<16x16xf32>, vector<50x16xf32> -> vector<50x16xf32>
    %137 = arith.addf %132, %136 : vector<50x16xf32>
    %c11_128 = arith.constant 11 : index
    %c0_129 = arith.constant 0 : index
    %138 = vector.load %arg12[%c11_128, %c0_129] : memref<66x16xf32, #tpu.memory_space<vmem>>, vector<50x16xf32>
    %c7_130 = arith.constant 7 : index
    %c0_131 = arith.constant 0 : index
    %c0_132 = arith.constant 0 : index
    %139 = vector.load %arg6[%c7_130, %c0_131, %c0_132] : memref<9x16x16xf32, #tpu.memory_space<vmem>>, vector<1x16x16xf32>
    %140 = vector.shape_cast %139 : vector<1x16x16xf32> to vector<16x16xf32>
    %cst_133 = arith.constant dense<0.000000e+00> : vector<50x16xf32>
    %141 = tpu.matmul %138, %140, %cst_133 {dimension_numbers = #tpu.dot_dimension_numbers<[1], [0], [0], [1], [0, 0, 1, 1], [], []>} : vector<50x16xf32>, vector<16x16xf32>, vector<50x16xf32> -> vector<50x16xf32>
    %142 = arith.addf %137, %141 : vector<50x16xf32>
    %c12_134 = arith.constant 12 : index
    %c0_135 = arith.constant 0 : index
    %143 = vector.load %arg12[%c12_134, %c0_135] : memref<66x16xf32, #tpu.memory_space<vmem>>, vector<50x16xf32>
    %c8_136 = arith.constant 8 : index
    %c0_137 = arith.constant 0 : index
    %c0_138 = arith.constant 0 : index
    %144 = vector.load %arg6[%c8_136, %c0_137, %c0_138] : memref<9x16x16xf32, #tpu.memory_space<vmem>>, vector<1x16x16xf32>
    %145 = vector.shape_cast %144 : vector<1x16x16xf32> to vector<16x16xf32>
    %cst_139 = arith.constant dense<0.000000e+00> : vector<50x16xf32>
    %146 = tpu.matmul %143, %145, %cst_139 {dimension_numbers = #tpu.dot_dimension_numbers<[1], [0], [0], [1], [0, 0, 1, 1], [], []>} : vector<50x16xf32>, vector<16x16xf32>, vector<50x16xf32> -> vector<50x16xf32>
    %147 = arith.addf %142, %146 : vector<50x16xf32>
    %c0_140 = arith.constant 0 : index
    %c0_141 = arith.constant 0 : index
    %148 = vector.load %arg7[%c0_140, %c0_141] : memref<1x16xf32, #tpu.memory_space<vmem>>, vector<1x16xf32>
    %149 = vector.broadcast %148 : vector<1x16xf32> to vector<50x16xf32>
    %150 = arith.addf %147, %149 : vector<50x16xf32>
    %cst_142 = arith.constant 0.000000e+00 : f32
    %151 = vector.broadcast %cst_142 : f32 to vector<50x16xf32>
    %152 = arith.cmpf oge, %150, %151 : vector<50x16xf32>
    %cst_143 = arith.constant 0.00999999977 : f32
    %153 = vector.broadcast %cst_143 : f32 to vector<50x16xf32>
    %154 = arith.mulf %153, %150 : vector<50x16xf32>
    %155 = arith.select %152, %150, %154 : vector<50x16xi1>, vector<50x16xf32>
    %cst_144 = arith.constant 0.000000e+00 : f32
    %156 = vector.broadcast %cst_144 : f32 to vector<2x32xf32>
    %157 = vector.extract_strided_slice %155 {offsets = [0, 0], sizes = [1, 16], strides = [1, 1]} : vector<50x16xf32> to vector<1x16xf32>
    %158 = vector.extract_strided_slice %155 {offsets = [25, 0], sizes = [1, 16], strides = [1, 1]} : vector<50x16xf32> to vector<1x16xf32>
    %159 = tpu.concatenate %157, %158 in 0 : vector<1x16xf32>, vector<1x16xf32> -> vector<2x16xf32>
    %c0_145 = arith.constant 0 : index
    %c0_146 = arith.constant 0 : index
    %c0_147 = arith.constant 0 : index
    %160 = vector.load %arg8[%c0_145, %c0_146, %c0_147] : memref<4x16x32xf32, #tpu.memory_space<vmem>>, vector<1x16x32xf32>
    %161 = vector.shape_cast %160 : vector<1x16x32xf32> to vector<16x32xf32>
    %cst_148 = arith.constant dense<0.000000e+00> : vector<2x32xf32>
    %162 = tpu.matmul %159, %161, %cst_148 {dimension_numbers = #tpu.dot_dimension_numbers<[1], [0], [0], [1], [0, 0, 1, 1], [], []>} : vector<2x16xf32>, vector<16x32xf32>, vector<2x32xf32> -> vector<2x32xf32>
    %163 = arith.addf %156, %162 : vector<2x32xf32>
    %164 = vector.extract_strided_slice %155 {offsets = [1, 0], sizes = [1, 16], strides = [1, 1]} : vector<50x16xf32> to vector<1x16xf32>
    %165 = vector.extract_strided_slice %155 {offsets = [26, 0], sizes = [1, 16], strides = [1, 1]} : vector<50x16xf32> to vector<1x16xf32>
    %166 = tpu.concatenate %164, %165 in 0 : vector<1x16xf32>, vector<1x16xf32> -> vector<2x16xf32>
    %c1_149 = arith.constant 1 : index
    %c0_150 = arith.constant 0 : index
    %c0_151 = arith.constant 0 : index
    %167 = vector.load %arg8[%c1_149, %c0_150, %c0_151] : memref<4x16x32xf32, #tpu.memory_space<vmem>>, vector<1x16x32xf32>
    %168 = vector.shape_cast %167 : vector<1x16x32xf32> to vector<16x32xf32>
    %cst_152 = arith.constant dense<0.000000e+00> : vector<2x32xf32>
    %169 = tpu.matmul %166, %168, %cst_152 {dimension_numbers = #tpu.dot_dimension_numbers<[1], [0], [0], [1], [0, 0, 1, 1], [], []>} : vector<2x16xf32>, vector<16x32xf32>, vector<2x32xf32> -> vector<2x32xf32>
    %170 = arith.addf %163, %169 : vector<2x32xf32>
    %171 = vector.extract_strided_slice %155 {offsets = [5, 0], sizes = [1, 16], strides = [1, 1]} : vector<50x16xf32> to vector<1x16xf32>
    %172 = vector.extract_strided_slice %155 {offsets = [30, 0], sizes = [1, 16], strides = [1, 1]} : vector<50x16xf32> to vector<1x16xf32>
    %173 = tpu.concatenate %171, %172 in 0 : vector<1x16xf32>, vector<1x16xf32> -> vector<2x16xf32>
    %c2_153 = arith.constant 2 : index
    %c0_154 = arith.constant 0 : index
    %c0_155 = arith.constant 0 : index
    %174 = vector.load %arg8[%c2_153, %c0_154, %c0_155] : memref<4x16x32xf32, #tpu.memory_space<vmem>>, vector<1x16x32xf32>
    %175 = vector.shape_cast %174 : vector<1x16x32xf32> to vector<16x32xf32>
    %cst_156 = arith.constant dense<0.000000e+00> : vector<2x32xf32>
    %176 = tpu.matmul %173, %175, %cst_156 {dimension_numbers = #tpu.dot_dimension_numbers<[1], [0], [0], [1], [0, 0, 1, 1], [], []>} : vector<2x16xf32>, vector<16x32xf32>, vector<2x32xf32> -> vector<2x32xf32>
    %177 = arith.addf %170, %176 : vector<2x32xf32>
    %178 = vector.extract_strided_slice %155 {offsets = [6, 0], sizes = [1, 16], strides = [1, 1]} : vector<50x16xf32> to vector<1x16xf32>
    %179 = vector.extract_strided_slice %155 {offsets = [31, 0], sizes = [1, 16], strides = [1, 1]} : vector<50x16xf32> to vector<1x16xf32>
    %180 = tpu.concatenate %178, %179 in 0 : vector<1x16xf32>, vector<1x16xf32> -> vector<2x16xf32>
    %c3_157 = arith.constant 3 : index
    %c0_158 = arith.constant 0 : index
    %c0_159 = arith.constant 0 : index
    %181 = vector.load %arg8[%c3_157, %c0_158, %c0_159] : memref<4x16x32xf32, #tpu.memory_space<vmem>>, vector<1x16x32xf32>
    %182 = vector.shape_cast %181 : vector<1x16x32xf32> to vector<16x32xf32>
    %cst_160 = arith.constant dense<0.000000e+00> : vector<2x32xf32>
    %183 = tpu.matmul %180, %182, %cst_160 {dimension_numbers = #tpu.dot_dimension_numbers<[1], [0], [0], [1], [0, 0, 1, 1], [], []>} : vector<2x16xf32>, vector<16x32xf32>, vector<2x32xf32> -> vector<2x32xf32>
    %184 = arith.addf %177, %183 : vector<2x32xf32>
    %c0_161 = arith.constant 0 : index
    %c0_162 = arith.constant 0 : index
    %185 = vector.load %arg9[%c0_161, %c0_162] : memref<1x32xf32, #tpu.memory_space<vmem>>, vector<1x32xf32>
    %186 = vector.broadcast %185 : vector<1x32xf32> to vector<2x32xf32>
    %187 = arith.addf %184, %186 : vector<2x32xf32>
    %c0_163 = arith.constant 0 : index
    %c0_164 = arith.constant 0 : index
    %188 = vector.load %arg10[%c0_163, %c0_164] : memref<2x32xf32, #tpu.memory_space<vmem>>, vector<2x32xf32>
    tpu.vector_store %arg10[%c0_163, %c0_164], %187 {strides = array<i32>} : memref<2x32xf32, #tpu.memory_space<vmem>>, vector<2x32xf32>,
    return
  }
  func.func @transform_0(%arg0: i32) -> (i32, i32) {
    %c0_i32 = arith.constant 0 : i32
    %c0_i32_0 = arith.constant 0 : i32
    return %arg0, %c0_i32 : i32, i32
  }
  func.func @transform_1(%arg0: i32) -> (i32, i32) {
    %c0_i32 = arith.constant 0 : i32
    %c0_i32_0 = arith.constant 0 : i32
    %c0_i32_1 = arith.constant 0 : i32
    return %c0_i32, %c0_i32_0 : i32, i32
  }
  func.func @transform_2(%arg0: i32) -> (i32, i32) {
    %c0_i32 = arith.constant 0 : i32
    %c0_i32_0 = arith.constant 0 : i32
    %c0_i32_1 = arith.constant 0 : i32
    return %c0_i32, %c0_i32_0 : i32, i32
  }
  func.func @transform_3(%arg0: i32) -> (i32, i32, i32) {
    %c0_i32 = arith.constant 0 : i32
    %c0_i32_0 = arith.constant 0 : i32
    %c0_i32_1 = arith.constant 0 : i32
    %c0_i32_2 = arith.constant 0 : i32
    return %c0_i32, %c0_i32_0, %c0_i32_1 : i32, i32, i32
  }
  func.func @transform_4(%arg0: i32) -> (i32, i32) {
    %c0_i32 = arith.constant 0 : i32
    %c0_i32_0 = arith.constant 0 : i32
    %c0_i32_1 = arith.constant 0 : i32
    return %c0_i32, %c0_i32_0 : i32, i32
  }
  func.func @transform_5(%arg0: i32) -> (i32, i32, i32) {
    %c0_i32 = arith.constant 0 : i32
    %c0_i32_0 = arith.constant 0 : i32
    %c0_i32_1 = arith.constant 0 : i32
    %c0_i32_2 = arith.constant 0 : i32
    return %c0_i32, %c0_i32_0, %c0_i32_1 : i32, i32, i32
  }
  func.func @transform_6(%arg0: i32) -> (i32, i32) {
    %c0_i32 = arith.constant 0 : i32
    %c0_i32_0 = arith.constant 0 : i32
    %c0_i32_1 = arith.constant 0 : i32
    return %c0_i32, %c0_i32_0 : i32, i32
  }
  func.func @transform_7(%arg0: i32) -> (i32, i32, i32) {
    %c0_i32 = arith.constant 0 : i32
    %c0_i32_0 = arith.constant 0 : i32
    %c0_i32_1 = arith.constant 0 : i32
    %c0_i32_2 = arith.constant 0 : i32
    return %c0_i32, %c0_i32_0, %c0_i32_1 : i32, i32, i32
  }
  func.func @transform_8(%arg0: i32) -> (i32, i32) {
    %c0_i32 = arith.constant 0 : i32
    %c0_i32_0 = arith.constant 0 : i32
    %c0_i32_1 = arith.constant 0 : i32
    return %c0_i32, %c0_i32_0 : i32, i32
  }
  func.func @transform_9(%arg0: i32) -> (i32, i32) {
    %c0_i32 = arith.constant 0 : i32
    %c0_i32_0 = arith.constant 0 : i32
    return %arg0, %c0_i32 : i32, i32
  }
}

</mosaic_0001>

<llo_original>
// kernel: feature_cnn_forward.1
$region0: #{feature_cnn_forward.1}
  #allocation0 [shape = 'u32[]', space=smem, size = 0x4, offset = 0x4, fixed_abs, tag = 'smem constant byte address 0x4 - core index']
  #allocation1 [shape = 'u32[144,128]{1,0:T(1,128)}', space=vmem, size = 0x12000, scoped, tag = 'internal scratch']
  #allocation2 [shape = 'f32[208,8]{1,0:T(8,128)}', space=vmem, size = 0x1a000, scoped, tag = 'scratch operand']
  #allocation3 [shape = 'f32[66,16]{1,0:T(8,128)}', space=vmem, size = 0x9000, scoped, tag = 'scratch operand']
  %s0 = inlined_call_operand.vmem [shape: f32[200,256], index: 0, kind: input, shape index: {}]
  %s1 = inlined_call_operand.vmem [shape: f32[256,8], index: 1, kind: input, shape index: {}]
  %s2 = inlined_call_operand.vmem [shape: f32[1,8], index: 2, kind: input, shape index: {}]
  %s3 = inlined_call_operand.vmem [shape: f32[16,8,16], index: 3, kind: input, shape index: {}]
  %s4 = inlined_call_operand.vmem [shape: f32[1,16], index: 4, kind: input, shape index: {}]
  %s5 = inlined_call_operand.vmem [shape: f32[9,16,16], index: 5, kind: input, shape index: {}]
  %s6 = inlined_call_operand.vmem [shape: f32[1,16], index: 6, kind: input, shape index: {}]
  %s7 = inlined_call_operand.vmem [shape: f32[4,16,32], index: 7, kind: input, shape index: {}]
  %s8 = inlined_call_operand.vmem [shape: f32[1,32], index: 8, kind: input, shape index: {}]
  %s9 = inlined_call_operand.hbm [shape: f32[2,32], index: 9, kind: output, shape index: {}]
  %s10 = sld [smem:[#allocation0]]
  $region46: #{feature_cnn_forward.1} parent=0
    _
  %s12 = ssub.s32 1, %s10
  %s13 = scalar_select 0, %s12, %s10
  $region1: #{feature_cnn_forward.1} parent=0
    #allocation4 [shape = 'u8[1024]{0}', space=vmem, size = 0x400, scoped, tag = 'output window, operand 0, single buffered']
    #allocation5 [shape = 's32[1]{0}', space=sflag, size = 0x4, scoped, tag = 'scoped memory for feature_cnn_forward.1']
    %14 = vsyncpa [#allocation5], 0
    // Predicated region
    $region2: #{feature_cnn_forward.1} parent=1 // pred_check
      _
    $region3: #{feature_cnn_forward.1} parent=1 // pred_check_branch
      %16 = sbr.rel (0) target = $region5
    $region4: #{feature_cnn_forward.1} parent=1 // pred_region
      _
    $region5: #{feature_cnn_forward.1} parent=1 // pred_fallthru
      _
    // Predicated region
    $region6: #{feature_cnn_forward.1} parent=1 // pred_check
      _
    $region7: #{feature_cnn_forward.1} parent=1 // pred_check_branch
      %18 = sbr.rel (0) target = $region9
    $region8: #{feature_cnn_forward.1} parent=1 // pred_region
      _
    $region9: #{feature_cnn_forward.1} parent=1 // pred_fallthru
      _
    // Predicated region
    $region10: #{feature_cnn_forward.1} parent=1 // pred_check
      _
    $region11: #{feature_cnn_forward.1} parent=1 // pred_check_branch
      %20 = sbr.rel (0) target = $region13
    $region12: #{feature_cnn_forward.1} parent=1 // pred_region
      _
    $region13: #{feature_cnn_forward.1} parent=1 // pred_fallthru
      _
    // Predicated region
    $region14: #{feature_cnn_forward.1} parent=1 // pred_check
      _
    $region15: #{feature_cnn_forward.1} parent=1 // pred_check_branch
      %22 = sbr.rel (0) target = $region17
    $region16: #{feature_cnn_forward.1} parent=1 // pred_region
      _
    $region17: #{feature_cnn_forward.1} parent=1 // pred_fallthru
      _
    // Predicated region
    $region18: #{feature_cnn_forward.1} parent=1 // pred_check
      _
    $region19: #{feature_cnn_forward.1} parent=1 // pred_check_branch
      %24 = sbr.rel (0) target = $region21
    $region20: #{feature_cnn_forward.1} parent=1 // pred_region
      _
    $region21: #{feature_cnn_forward.1} parent=1 // pred_fallthru
      _
    // Predicated region
    $region22: #{feature_cnn_forward.1} parent=1 // pred_check
      _
    $region23: #{feature_cnn_forward.1} parent=1 // pred_check_branch
      %26 = sbr.rel (0) target = $region25
    $region24: #{feature_cnn_forward.1} parent=1 // pred_region
      _
    $region25: #{feature_cnn_forward.1} parent=1 // pred_fallthru
      _
    // Predicated region
    $region26: #{feature_cnn_forward.1} parent=1 // pred_check
      _
    $region27: #{feature_cnn_forward.1} parent=1 // pred_check_branch
      %28 = sbr.rel (0) target = $region29
    $region28: #{feature_cnn_forward.1} parent=1 // pred_region
      _
    $region29: #{feature_cnn_forward.1} parent=1 // pred_fallthru
      _
    // Predicated region
    $region30: #{feature_cnn_forward.1} parent=1 // pred_check
      _
    $region31: #{feature_cnn_forward.1} parent=1 // pred_check_branch
      %30 = sbr.rel (0) target = $region33
    $region32: #{feature_cnn_forward.1} parent=1 // pred_region
      _
    $region33: #{feature_cnn_forward.1} parent=1 // pred_fallthru
      _
    // Predicated region
    $region34: #{feature_cnn_forward.1} parent=1 // pred_check
      _
    $region35: #{feature_cnn_forward.1} parent=1 // pred_check_branch
      %32 = sbr.rel (0) target = $region37
    $region36: #{feature_cnn_forward.1} parent=1 // pred_region
      _
    $region37: #{feature_cnn_forward.1} parent=1 // pred_fallthru
      _
    %v33 = vld [vmem:[%s0] sm:$0xff]
    %v34 = vld [vmem:[%s0 + $0x8] sm:$0xff]
    %v35 = vld [vmem:[%s0 + $0x10] sm:$0xff]
    %v36 = vld [vmem:[%s0 + $0x18] sm:$0xff]
    %v37 = vld [vmem:[%s0 + $0x20] sm:$0xff]
    %v38 = vld [vmem:[%s0 + $0x28] sm:$0xff]
    %v39 = vld [vmem:[%s0 + $0x30] sm:$0xff]
    %v40 = vld [vmem:[%s0 + $0x38] sm:$0xff]
    %v41 = vld [vmem:[%s0 + $0x40] sm:$0xff]
    %v42 = vld [vmem:[%s0 + $0x48] sm:$0xff]
    %v43 = vld [vmem:[%s0 + $0x50] sm:$0xff]
    %v44 = vld [vmem:[%s0 + $0x58] sm:$0xff]
    %v45 = vld [vmem:[%s0 + $0x60] sm:$0xff]
    %v46 = vld [vmem:[%s0 + $0x68] sm:$0xff]
    %v47 = vld [vmem:[%s0 + $0x70] sm:$0xff]
    %v48 = vld [vmem:[%s0 + $0x78] sm:$0xff]
    %v49 = vld [vmem:[%s0 + $0x80] sm:$0xff]
    %v50 = vld [vmem:[%s0 + $0x88] sm:$0xff]
    %v51 = vld [vmem:[%s0 + $0x90] sm:$0xff]
    %v52 = vld [vmem:[%s0 + $0x98] sm:$0xff]
    %v53 = vld [vmem:[%s0 + $0xa0] sm:$0xff]
    %v54 = vld [vmem:[%s0 + $0xa8] sm:$0xff]
    %v55 = vld [vmem:[%s0 + $0xb0] sm:$0xff]
    %v56 = vld [vmem:[%s0 + $0xb8] sm:$0xff]
    %v57 = vld [vmem:[%s0 + $0xc0] sm:$0xff]
    %v58 = vld [vmem:[%s0 + $0xc8] sm:$0xff]
    %v59 = vld [vmem:[%s0 + $0xd0] sm:$0xff]
    %v60 = vld [vmem:[%s0 + $0xd8] sm:$0xff]
    %v61 = vld [vmem:[%s0 + $0xe0] sm:$0xff]
    %v62 = vld [vmem:[%s0 + $0xe8] sm:$0xff]
    %v63 = vld [vmem:[%s0 + $0xf0] sm:$0xff]
    %v64 = vld [vmem:[%s0 + $0xf8] sm:$0xff]
    %v65 = vld [vmem:[%s0 + $0x100] sm:$0xff]
    %v66 = vld [vmem:[%s0 + $0x108] sm:$0xff]
    %v67 = vld [vmem:[%s0 + $0x110] sm:$0xff]
    %v68 = vld [vmem:[%s0 + $0x118] sm:$0xff]
    %v69 = vld [vmem:[%s0 + $0x120] sm:$0xff]
    %v70 = vld [vmem:[%s0 + $0x128] sm:$0xff]
    %v71 = vld [vmem:[%s0 + $0x130] sm:$0xff]
    %v72 = vld [vmem:[%s0 + $0x138] sm:$0xff]
    %v73 = vld [vmem:[%s0 + $0x140] sm:$0xff]
    %v74 = vld [vmem:[%s0 + $0x148] sm:$0xff]
    %v75 = vld [vmem:[%s0 + $0x150] sm:$0xff]
    %v76 = vld [vmem:[%s0 + $0x158] sm:$0xff]
    %v77 = vld [vmem:[%s0 + $0x160] sm:$0xff]
    %v78 = vld [vmem:[%s0 + $0x168] sm:$0xff]
    %v79 = vld [vmem:[%s0 + $0x170] sm:$0xff]
    %v80 = vld [vmem:[%s0 + $0x178] sm:$0xff]
    %v81 = vld [vmem:[%s0 + $0x180] sm:$0xff]
    %v82 = vld [vmem:[%s0 + $0x188] sm:$0xff]
    %v83 = vld [vmem:[%s1] sm:$0xff]
    %v84 = vld [vmem:[%s1 + $0x8] sm:$0xff]
    %v85 = vld [vmem:[%s1 + $0x10] sm:$0xff]
    %v86 = vld [vmem:[%s1 + $0x18] sm:$0xff]
    %v87 = vld [vmem:[%s1 + $0x20] sm:$0xff]
    %v88 = vld [vmem:[%s1 + $0x28] sm:$0xff]
    %v89 = vld [vmem:[%s1 + $0x30] sm:$0xff]
    %v90 = vld [vmem:[%s1 + $0x38] sm:$0xff]
    %v91 = vld [vmem:[%s1 + $0x40] sm:$0xff]
    %v92 = vld [vmem:[%s1 + $0x48] sm:$0xff]
    %v93 = vld [vmem:[%s1 + $0x50] sm:$0xff]
    %v94 = vld [vmem:[%s1 + $0x58] sm:$0xff]
    %v95 = vld [vmem:[%s1 + $0x60] sm:$0xff]
    %v96 = vld [vmem:[%s1 + $0x68] sm:$0xff]
    %v97 = vld [vmem:[%s1 + $0x70] sm:$0xff]
    %v98 = vld [vmem:[%s1 + $0x78] sm:$0xff]
    %v99 = vld [vmem:[%s1 + $0x80] sm:$0xff]
    %v100 = vld [vmem:[%s1 + $0x88] sm:$0xff]
    %v101 = vld [vmem:[%s1 + $0x90] sm:$0xff]
    %v102 = vld [vmem:[%s1 + $0x98] sm:$0xff]
    %v103 = vld [vmem:[%s1 + $0xa0] sm:$0xff]
    %v104 = vld [vmem:[%s1 + $0xa8] sm:$0xff]
    %v105 = vld [vmem:[%s1 + $0xb0] sm:$0xff]
    %v106 = vld [vmem:[%s1 + $0xb8] sm:$0xff]
    %v107 = vld [vmem:[%s1 + $0xc0] sm:$0xff]
    %v108 = vld [vmem:[%s1 + $0xc8] sm:$0xff]
    %v109 = vld [vmem:[%s1 + $0xd0] sm:$0xff]
    %v110 = vld [vmem:[%s1 + $0xd8] sm:$0xff]
    %v111 = vld [vmem:[%s1 + $0xe0] sm:$0xff]
    %v112 = vld [vmem:[%s1 + $0xe8] sm:$0xff]
    %v113 = vld [vmem:[%s1 + $0xf0] sm:$0xff]
    %v114 = vld [vmem:[%s1 + $0xf8] sm:$0xff]
    %v115 = vld [vmem:[%s2] sm:$0x1]
    %v117 = vlaneseq
    %v118 = vshrl.u32 %v117, 7
    %v119 = vsub.s32 0, %v118
    %v120 = vrot.slane %v115, %v119
    %122 = vmatprep.subr.mxu0 0.0
    %123 = vmatpush1.msra.mxu0 %v98
    %124 = vmatprep.subr.mxu0 0.0
    %125 = vmatpush1.msra.mxu0 %v97
    %126 = vmatprep.subr.mxu0 0.0
    %127 = vmatpush1.msra.mxu0 %v96
    %128 = vmatprep.subr.mxu0 0.0
    %129 = vmatpush1.msra.mxu0 %v95
    %130 = vmatprep.subr.mxu0 0.0
    %131 = vmatpush1.msra.mxu0 %v94
    %132 = vmatprep.subr.mxu0 0.0
    %133 = vmatpush1.msra.mxu0 %v93
    %134 = vmatprep.subr.mxu0 0.0
    %135 = vmatpush1.msra.mxu0 %v92
    %136 = vmatprep.subr.mxu0 0.0
    %137 = vmatpush1.msra.mxu0 %v91
    %138 = vmatprep.subr.mxu0 0.0
    %139 = vmatpush1.msra.mxu0 %v90
    %140 = vmatprep.subr.mxu0 0.0
    %141 = vmatpush1.msra.mxu0 %v89
    %142 = vmatprep.subr.mxu0 0.0
    %143 = vmatpush1.msra.mxu0 %v88
    %144 = vmatprep.subr.mxu0 0.0
    %145 = vmatpush1.msra.mxu0 %v87
    %146 = vmatprep.subr.mxu0 0.0
    %147 = vmatpush1.msra.mxu0 %v86
    %148 = vmatprep.subr.mxu0 0.0
    %149 = vmatpush1.msra.mxu0 %v85
    %150 = vmatprep.subr.mxu0 0.0
    %151 = vmatpush1.msra.mxu0 %v84
    %152 = vmatprep.subr.mxu0 0.0
    %153 = vmatpush1.msra.mxu0 %v83
    %154 = vmatprep.subr.mxu0 0.0
    %155 = vmatpush2.msra.mxu0 %v114
    %156 = vmatprep.subr.mxu0 0.0
    %157 = vmatpush2.msra.mxu0 %v113
    %158 = vmatprep.subr.mxu0 0.0
    %159 = vmatpush2.msra.mxu0 %v112
    %160 = vmatprep.subr.mxu0 0.0
    %161 = vmatpush2.msra.mxu0 %v111
    %162 = vmatprep.subr.mxu0 0.0
    %163 = vmatpush2.msra.mxu0 %v110
    %164 = vmatprep.subr.mxu0 0.0
    %165 = vmatpush2.msra.mxu0 %v109
    %166 = vmatprep.subr.mxu0 0.0
    %167 = vmatpush2.msra.mxu0 %v108
    %168 = vmatprep.subr.mxu0 0.0
    %169 = vmatpush2.msra.mxu0 %v107
    %170 = vmatprep.subr.mxu0 0.0
    %171 = vmatpush2.msra.mxu0 %v106
    %172 = vmatprep.subr.mxu0 0.0
    %173 = vmatpush2.msra.mxu0 %v105
    %174 = vmatprep.subr.mxu0 0.0
    %175 = vmatpush2.msra.mxu0 %v104
    %176 = vmatprep.subr.mxu0 0.0
    %177 = vmatpush2.msra.mxu0 %v103
    %178 = vmatprep.subr.mxu0 0.0
    %179 = vmatpush2.msra.mxu0 %v102
    %180 = vmatprep.subr.mxu0 0.0
    %181 = vmatpush2.msra.mxu0 %v101
    %182 = vmatprep.subr.mxu0 0.0
    %183 = vmatpush2.msra.mxu0 %v100
    %184 = vmatprep.subr.mxu0 0.0
    %185 = vmatpush2.msra.mxu0 %v99
    %186 = vmatprep.mubr.f32.mxu0 %v34
    %187 = vmatmul.mubr.f32.gmra.mxu0 %v33
    %v188 = vpop.f32.mrf.mxu0
    %v189 = vadd.f32 %v120, %v188
    %v190 = vpop.f32.mrf.mxu0
    %191 = vmatprep.mubr.f32.mxu0 %v36
    %192 = vmatmul.mubr.f32.gmra.mxu0 %v35
    %v193 = vpop.f32.mrf.mxu0
    %v194 = vadd.f32 %v120, %v193
    %v195 = vpop.f32.mrf.mxu0
    %196 = vmatprep.mubr.f32.mxu0 %v38
    %197 = vmatmul.mubr.f32.gmra.mxu0 %v37
    %v198 = vpop.f32.mrf.mxu0
    %v199 = vadd.f32 %v120, %v198
    %v200 = vpop.f32.mrf.mxu0
    %201 = vmatprep.mubr.f32.mxu0 %v40
    %202 = vmatmul.mubr.f32.gmra.mxu0 %v39
    %v203 = vpop.f32.mrf.mxu0
    %v204 = vadd.f32 %v120, %v203
    %v205 = vpop.f32.mrf.mxu0
    %206 = vmatprep.mubr.f32.mxu0 %v42
    %207 = vmatmul.mubr.f32.gmra.mxu0 %v41
    %v208 = vpop.f32.mrf.mxu0
    %v209 = vadd.f32 %v120, %v208
    %v210 = vpop.f32.mrf.mxu0
    %211 = vmatprep.mubr.f32.mxu0 %v44
    %212 = vmatmul.mubr.f32.gmra.mxu0 %v43
    %v213 = vpop.f32.mrf.mxu0
    %v214 = vadd.f32 %v120, %v213
    %v215 = vpop.f32.mrf.mxu0
    %216 = vmatprep.mubr.f32.mxu0 %v46
    %217 = vmatmul.mubr.f32.gmra.mxu0 %v45
    %v218 = vpop.f32.mrf.mxu0
    %v219 = vadd.f32 %v120, %v218
    %v220 = vpop.f32.mrf.mxu0
    %221 = vmatprep.mubr.f32.mxu0 %v48
    %222 = vmatmul.mubr.f32.gmra.mxu0 %v47
    %v223 = vpop.f32.mrf.mxu0
    %v224 = vadd.f32 %v120, %v223
    %v225 = vpop.f32.mrf.mxu0
    %226 = vmatprep.mubr.f32.mxu0 %v50
    %227 = vmatmul.mubr.f32.gmra.mxu0 %v49
    %v228 = vpop.f32.mrf.mxu0
    %v229 = vadd.f32 %v120, %v228
    %v230 = vpop.f32.mrf.mxu0
    %231 = vmatprep.mubr.f32.mxu0 %v52
    %232 = vmatmul.mubr.f32.gmra.mxu0 %v51
    %v233 = vpop.f32.mrf.mxu0
    %v234 = vadd.f32 %v120, %v233
    %v235 = vpop.f32.mrf.mxu0
    %236 = vmatprep.mubr.f32.mxu0 %v54
    %237 = vmatmul.mubr.f32.gmra.mxu0 %v53
    %v238 = vpop.f32.mrf.mxu0
    %v239 = vadd.f32 %v120, %v238
    %v240 = vpop.f32.mrf.mxu0
    %241 = vmatprep.mubr.f32.mxu0 %v56
    %242 = vmatmul.mubr.f32.gmra.mxu0 %v55
    %v243 = vpop.f32.mrf.mxu0
    %v244 = vadd.f32 %v120, %v243
    %v245 = vpop.f32.mrf.mxu0
    %246 = vmatprep.mubr.f32.mxu0 %v58
    %247 = vmatmul.mubr.f32.gmra.mxu0 %v57
    %v248 = vpop.f32.mrf.mxu0
    %v249 = vadd.f32 %v120, %v248
    %v250 = vpop.f32.mrf.mxu0
    %251 = vmatprep.mubr.f32.mxu0 %v60
    %252 = vmatmul.mubr.f32.gmra.mxu0 %v59
    %v253 = vpop.f32.mrf.mxu0
    %v254 = vadd.f32 %v120, %v253
    %v255 = vpop.f32.mrf.mxu0
    %256 = vmatprep.mubr.f32.mxu0 %v62
    %257 = vmatmul.mubr.f32.gmra.mxu0 %v61
    %v258 = vpop.f32.mrf.mxu0
    %v259 = vadd.f32 %v120, %v258
    %v260 = vpop.f32.mrf.mxu0
    %261 = vmatprep.mubr.f32.mxu0 %v64
    %262 = vmatmul.mubr.f32.gmra.mxu0 %v63
    %v263 = vpop.f32.mrf.mxu0
    %v264 = vadd.f32 %v120, %v263
    %v265 = vpop.f32.mrf.mxu0
    %266 = vmatprep.mubr.f32.mxu0 %v66
    %267 = vmatmul.mubr.f32.gmra.mxu0 %v65
    %v268 = vpop.f32.mrf.mxu0
    %v269 = vadd.f32 %v120, %v268
    %v270 = vpop.f32.mrf.mxu0
    %271 = vmatprep.mubr.f32.mxu0 %v68
    %272 = vmatmul.mubr.f32.gmra.mxu0 %v67
    %v273 = vpop.f32.mrf.mxu0
    %v274 = vadd.f32 %v120, %v273
    %v275 = vpop.f32.mrf.mxu0
    %276 = vmatprep.mubr.f32.mxu0 %v70
    %277 = vmatmul.mubr.f32.gmra.mxu0 %v69
    %v278 = vpop.f32.mrf.mxu0
    %v279 = vadd.f32 %v120, %v278
    %v280 = vpop.f32.mrf.mxu0
    %281 = vmatprep.mubr.f32.mxu0 %v72
    %282 = vmatmul.mubr.f32.gmra.mxu0 %v71
    %v283 = vpop.f32.mrf.mxu0
    %v284 = vadd.f32 %v120, %v283
    %v285 = vpop.f32.mrf.mxu0
    %286 = vmatprep.mubr.f32.mxu0 %v74
    %287 = vmatmul.mubr.f32.gmra.mxu0 %v73
    %v288 = vpop.f32.mrf.mxu0
    %v289 = vadd.f32 %v120, %v288
    %v290 = vpop.f32.mrf.mxu0
    %291 = vmatprep.mubr.f32.mxu0 %v76
    %292 = vmatmul.mubr.f32.gmra.mxu0 %v75
    %v293 = vpop.f32.mrf.mxu0
    %v294 = vadd.f32 %v120, %v293
    %v295 = vpop.f32.mrf.mxu0
    %296 = vmatprep.mubr.f32.mxu0 %v78
    %297 = vmatmul.mubr.f32.gmra.mxu0 %v77
    %v298 = vpop.f32.mrf.mxu0
    %v299 = vadd.f32 %v120, %v298
    %v300 = vpop.f32.mrf.mxu0
    %301 = vmatprep.mubr.f32.mxu0 %v80
    %302 = vmatmul.mubr.f32.gmra.mxu0 %v79
    %v303 = vpop.f32.mrf.mxu0
    %v304 = vadd.f32 %v120, %v303
    %v305 = vpop.f32.mrf.mxu0
    %306 = vmatprep.mubr.f32.mxu0 %v82
    %307 = vmatmul.mubr.f32.gmra.mxu0 %v81
    %v308 = vpop.f32.mrf.mxu0
    %v309 = vadd.f32 %v120, %v308
    %v310 = vpop.f32.mrf.mxu0
    %311 = vdwg.mxu0
    %vm312 = vcmp.ge.f32.partialorder %v189, 0.0
    %vm313 = vcmp.ge.f32.partialorder %v194, 0.0
    %vm314 = vcmp.ge.f32.partialorder %v199, 0.0
    %vm315 = vcmp.ge.f32.partialorder %v204, 0.0
    %vm316 = vcmp.ge.f32.partialorder %v209, 0.0
    %vm317 = vcmp.ge.f32.partialorder %v214, 0.0
    %vm318 = vcmp.ge.f32.partialorder %v219, 0.0
    %vm319 = vcmp.ge.f32.partialorder %v224, 0.0
    %vm320 = vcmp.ge.f32.partialorder %v229, 0.0
    %vm321 = vcmp.ge.f32.partialorder %v234, 0.0
    %vm322 = vcmp.ge.f32.partialorder %v239, 0.0
    %vm323 = vcmp.ge.f32.partialorder %v244, 0.0
    %vm324 = vcmp.ge.f32.partialorder %v249, 0.0
    %vm325 = vcmp.ge.f32.partialorder %v254, 0.0
    %vm326 = vcmp.ge.f32.partialorder %v259, 0.0
    %vm327 = vcmp.ge.f32.partialorder %v264, 0.0
    %vm328 = vcmp.ge.f32.partialorder %v269, 0.0
    %vm329 = vcmp.ge.f32.partialorder %v274, 0.0
    %vm330 = vcmp.ge.f32.partialorder %v279, 0.0
    %vm331 = vcmp.ge.f32.partialorder %v284, 0.0
    %vm332 = vcmp.ge.f32.partialorder %v289, 0.0
    %vm333 = vcmp.ge.f32.partialorder %v294, 0.0
    %vm334 = vcmp.ge.f32.partialorder %v299, 0.0
    %vm335 = vcmp.ge.f32.partialorder %v304, 0.0
    %vm336 = vcmp.ge.f32.partialorder %v309, 0.0
    %v337 = vmul.f32 %v189, 0.01
    %v338 = vmul.f32 %v194, 0.01
    %v339 = vmul.f32 %v199, 0.01
    %v340 = vmul.f32 %v204, 0.01
    %v341 = vmul.f32 %v209, 0.01
    %v342 = vmul.f32 %v214, 0.01
    %v343 = vmul.f32 %v219, 0.01
    %v344 = vmul.f32 %v224, 0.01
    %v345 = vmul.f32 %v229, 0.01
    %v346 = vmul.f32 %v234, 0.01
    %v347 = vmul.f32 %v239, 0.01
    %v348 = vmul.f32 %v244, 0.01
    %v349 = vmul.f32 %v249, 0.01
    %v350 = vmul.f32 %v254, 0.01
    %v351 = vmul.f32 %v259, 0.01
    %v352 = vmul.f32 %v264, 0.01
    %v353 = vmul.f32 %v269, 0.01
    %v354 = vmul.f32 %v274, 0.01
    %v355 = vmul.f32 %v279, 0.01
    %v356 = vmul.f32 %v284, 0.01
    %v357 = vmul.f32 %v289, 0.01
    %v358 = vmul.f32 %v294, 0.01
    %v359 = vmul.f32 %v299, 0.01
    %v360 = vmul.f32 %v304, 0.01
    %v361 = vmul.f32 %v309, 0.01
    %v362 = vsel %vm312, %v189, %v337
    %v363 = vsel %vm313, %v194, %v338
    %v364 = vsel %vm314, %v199, %v339
    %v365 = vsel %vm315, %v204, %v340
    %v366 = vsel %vm316, %v209, %v341
    %v367 = vsel %vm317, %v214, %v342
    %v368 = vsel %vm318, %v219, %v343
    %v369 = vsel %vm319, %v224, %v344
    %v370 = vsel %vm320, %v229, %v345
    %v371 = vsel %vm321, %v234, %v346
    %v372 = vsel %vm322, %v239, %v347
    %v373 = vsel %vm323, %v244, %v348
    %v374 = vsel %vm324, %v249, %v349
    %v375 = vsel %vm325, %v254, %v350
    %v376 = vsel %vm326, %v259, %v351
    %v377 = vsel %vm327, %v264, %v352
    %v378 = vsel %vm328, %v269, %v353
    %v379 = vsel %vm329, %v274, %v354
    %v380 = vsel %vm330, %v279, %v355
    %v381 = vsel %vm331, %v284, %v356
    %v382 = vsel %vm332, %v289, %v357
    %v383 = vsel %vm333, %v294, %v358
    %v384 = vsel %vm334, %v299, %v359
    %v385 = vsel %vm335, %v304, %v360
    %v386 = vsel %vm336, %v309, %v361
    %vm387 = vcmask 64512
    %388 = vst.msk [vmem:[#allocation2] sm:$0xff] %vm387, %v362
    %389 = vst.msk [vmem:[#allocation2 + $0x8] sm:$0xff] %vm387, %v363
    %390 = vst.msk [vmem:[#allocation2 + $0x10] sm:$0xff] %vm387, %v364
    %391 = vst.msk [vmem:[#allocation2 + $0x18] sm:$0xff] %vm387, %v365
    %392 = vst.msk [vmem:[#allocation2 + $0x20] sm:$0xff] %vm387, %v366
    %393 = vst.msk [vmem:[#allocation2 + $0x28] sm:$0xff] %vm387, %v367
    %394 = vst.msk [vmem:[#allocation2 + $0x30] sm:$0xff] %vm387, %v368
    %395 = vst.msk [vmem:[#allocation2 + $0x38] sm:$0xff] %vm387, %v369
    %396 = vst.msk [vmem:[#allocation2 + $0x40] sm:$0xff] %vm387, %v370
    %397 = vst.msk [vmem:[#allocation2 + $0x48] sm:$0xff] %vm387, %v371
    %398 = vst.msk [vmem:[#allocation2 + $0x50] sm:$0xff] %vm387, %v372
    %399 = vst.msk [vmem:[#allocation2 + $0x58] sm:$0xff] %vm387, %v373
    %400 = vst.msk [vmem:[#allocation2 + $0x60] sm:$0xff] %vm387, %v374
    %401 = vst.msk [vmem:[#allocation2 + $0x68] sm:$0xff] %vm387, %v375
    %402 = vst.msk [vmem:[#allocation2 + $0x70] sm:$0xff] %vm387, %v376
    %403 = vst.msk [vmem:[#allocation2 + $0x78] sm:$0xff] %vm387, %v377
    %404 = vst.msk [vmem:[#allocation2 + $0x80] sm:$0xff] %vm387, %v378
    %405 = vst.msk [vmem:[#allocation2 + $0x88] sm:$0xff] %vm387, %v379
    %406 = vst.msk [vmem:[#allocation2 + $0x90] sm:$0xff] %vm387, %v380
    %407 = vst.msk [vmem:[#allocation2 + $0x98] sm:$0xff] %vm387, %v381
    %408 = vst.msk [vmem:[#allocation2 + $0xa0] sm:$0xff] %vm387, %v382
    %409 = vst.msk [vmem:[#allocation2 + $0xa8] sm:$0xff] %vm387, %v383
    %410 = vst.msk [vmem:[#allocation2 + $0xb0] sm:$0xff] %vm387, %v384
    %411 = vst.msk [vmem:[#allocation2 + $0xb8] sm:$0xff] %vm387, %v385
    %412 = vst.msk [vmem:[#allocation2 + $0xc0] sm:$0xff] %vm387, %v386
    %v413 = vld [vmem:[#allocation2] sm:$0xff]
    %v414 = vld [vmem:[#allocation2 + $0x8] sm:$0xff]
    %v415 = vld [vmem:[#allocation2 + $0x10] sm:$0xff]
    %v416 = vld [vmem:[#allocation2 + $0x18] sm:$0xff]
    %v417 = vld [vmem:[#allocation2 + $0x20] sm:$0xff]
    %v418 = vld [vmem:[#allocation2 + $0x28] sm:$0xff]
    %v419 = vld [vmem:[#allocation2 + $0x30] sm:$0x3]
    %v420 = vld [vmem:[%s3] sm:$0xff]
    %v421 = vld [vmem:[#allocation2 + $0x32] sm:$0xff]
    %v422 = vld [vmem:[#allocation2 + $0x3a] sm:$0xff]
    %v423 = vld [vmem:[#allocation2 + $0x42] sm:$0xff]
    %v424 = vld [vmem:[#allocation2 + $0x4a] sm:$0xff]
    %v425 = vld [vmem:[#allocation2 + $0x52] sm:$0xff]
    %v426 = vld [vmem:[#allocation2 + $0x5a] sm:$0xff]
    %v427 = vld [vmem:[#allocation2 + $0x62] sm:$0x3]
    %s428 = scalar_lea.vmem %s3, 8
    %v429 = vld [vmem:[%s428] sm:$0xff]
    %v431 = vsel %vm387, %v421, 0
    %v434 = vsel %vm387, %v422, 0
    %v437 = vsel %vm387, %v423, 0
    %v440 = vsel %vm387, %v424, 0
    %v443 = vsel %vm387, %v425, 0
    %v446 = vsel %vm387, %v426, 0
    %v449 = vsel %vm387, %v427, 0
    %451 = vmatprep.subr.mxu0 0.0
    %452 = vmatpush1.msra.mxu0 0.0
    %453 = vmatprep.subr.mxu0 0.0
    %454 = vmatpush1.msra.mxu0 0.0
    %455 = vmatprep.subr.mxu0 0.0
    %456 = vmatpush1.msra.mxu0 0.0
    %457 = vmatprep.subr.mxu0 0.0
    %458 = vmatpush1.msra.mxu0 0.0
    %459 = vmatprep.subr.mxu0 0.0
    %460 = vmatpush1.msra.mxu0 0.0
    %461 = vmatprep.subr.mxu0 0.0
    %462 = vmatpush1.msra.mxu0 0.0
    %463 = vmatprep.subr.mxu0 0.0
    %464 = vmatpush1.msra.mxu0 0.0
    %465 = vmatprep.subr.mxu0 0.0
    %466 = vmatpush1.msra.mxu0 0.0
    %467 = vmatprep.subr.mxu0 0.0
    %468 = vmatpush1.msra.mxu0 0.0
    %469 = vmatprep.subr.mxu0 0.0
    %470 = vmatpush1.msra.mxu0 0.0
    %471 = vmatprep.subr.mxu0 0.0
    %472 = vmatpush1.msra.mxu0 0.0
    %473 = vmatprep.subr.mxu0 0.0
    %474 = vmatpush1.msra.mxu0 0.0
    %475 = vmatprep.subr.mxu0 0.0
    %476 = vmatpush1.msra.mxu0 0.0
    %477 = vmatprep.subr.mxu0 0.0
    %478 = vmatpush1.msra.mxu0 0.0
    %479 = vmatprep.subr.mxu0 0.0
    %480 = vmatpush1.msra.mxu0 0.0
    %481 = vmatprep.subr.mxu0 0.0
    %482 = vmatpush1.msra.mxu0 %v429
    %483 = vmatprep.subr.mxu0 0.0
    %484 = vmatpush2.msra.mxu0 0.0
    %485 = vmatprep.subr.mxu0 0.0
    %486 = vmatpush2.msra.mxu0 0.0
    %487 = vmatprep.subr.mxu0 0.0
    %488 = vmatpush2.msra.mxu0 0.0
    %489 = vmatprep.subr.mxu0 0.0
    %490 = vmatpush2.msra.mxu0 0.0
    %491 = vmatprep.subr.mxu0 0.0
    %492 = vmatpush2.msra.mxu0 0.0
    %493 = vmatprep.subr.mxu0 0.0
    %494 = vmatpush2.msra.mxu0 0.0
    %495 = vmatprep.subr.mxu0 0.0
    %496 = vmatpush2.msra.mxu0 0.0
    %497 = vmatprep.subr.mxu0 0.0
    %498 = vmatpush2.msra.mxu0 0.0
    %499 = vmatprep.subr.mxu0 0.0
    %500 = vmatpush2.msra.mxu0 0.0
    %501 = vmatprep.subr.mxu0 0.0
    %502 = vmatpush2.msra.mxu0 0.0
    %503 = vmatprep.subr.mxu0 0.0
    %504 = vmatpush2.msra.mxu0 0.0
    %505 = vmatprep.subr.mxu0 0.0
    %506 = vmatpush2.msra.mxu0 0.0
    %507 = vmatprep.subr.mxu0 0.0
    %508 = vmatpush2.msra.mxu0 0.0
    %509 = vmatprep.subr.mxu0 0.0
    %510 = vmatpush2.msra.mxu0 0.0
    %511 = vmatprep.subr.mxu0 0.0
    %512 = vmatpush2.msra.mxu0 0.0
    %513 = vmatprep.subr.mxu0 0.0
    %514 = vmatpush2.msra.mxu0 0.0
    %515 = vmatprep.mubr.f32.mxu0 0.0
    %516 = vmatmul.mubr.f32.gmra.mxu0 %v431
    %v517 = vpop.f32.mrf.mxu0
    %v518 = vadd.f32 0.0, %v517
    %v519 = vpop.f32.mrf.mxu0
    %520 = vmatprep.mubr.f32.mxu0 0.0
    %521 = vmatmul.mubr.f32.gmra.mxu0 %v434
    %v522 = vpop.f32.mrf.mxu0
    %v523 = vadd.f32 0.0, %v522
    %v524 = vpop.f32.mrf.mxu0
    %525 = vmatprep.mubr.f32.mxu0 0.0
    %526 = vmatmul.mubr.f32.gmra.mxu0 %v437
    %v527 = vpop.f32.mrf.mxu0
    %v528 = vadd.f32 0.0, %v527
    %v529 = vpop.f32.mrf.mxu0
    %530 = vmatprep.mubr.f32.mxu0 0.0
    %531 = vmatmul.mubr.f32.gmra.mxu0 %v440
    %v532 = vpop.f32.mrf.mxu0
    %v533 = vadd.f32 0.0, %v532
    %v534 = vpop.f32.mrf.mxu0
    %535 = vmatprep.mubr.f32.mxu0 0.0
    %536 = vmatmul.mubr.f32.gmra.mxu0 %v443
    %v537 = vpop.f32.mrf.mxu0
    %v538 = vadd.f32 0.0, %v537
    %v539 = vpop.f32.mrf.mxu0
    %540 = vmatprep.mubr.f32.mxu0 0.0
    %541 = vmatmul.mubr.f32.gmra.mxu0 %v446
    %v542 = vpop.f32.mrf.mxu0
    %v543 = vadd.f32 0.0, %v542
    %v544 = vpop.f32.mrf.mxu0
    %545 = vmatprep.mubr.f32.mxu0 0.0
    %546 = vmatmul.mubr.f32.gmra.mxu0 %v449
    %v547 = vpop.f32.mrf.mxu0
    %v548 = vadd.f32 0.0, %v547
    %v549 = vpop.f32.mrf.mxu0
    %550 = vdwg.mxu0
    %v552 = vsel %vm387, %v413, 0
    %v555 = vsel %vm387, %v414, 0
    %v558 = vsel %vm387, %v415, 0
    %v561 = vsel %vm387, %v416, 0
    %v564 = vsel %vm387, %v417, 0
    %v567 = vsel %vm387, %v418, 0
    %v570 = vsel %vm387, %v419, 0
    %572 = vmatprep.subr.mxu0 0.0
    %573 = vmatpush1.msra.mxu0 0.0
    %574 = vmatprep.subr.mxu0 0.0
    %575 = vmatpush1.msra.mxu0 0.0
    %576 = vmatprep.subr.mxu0 0.0
    %577 = vmatpush1.msra.mxu0 0.0
    %578 = vmatprep.subr.mxu0 0.0
    %579 = vmatpush1.msra.mxu0 0.0
    %580 = vmatprep.subr.mxu0 0.0
    %581 = vmatpush1.msra.mxu0 0.0
    %582 = vmatprep.subr.mxu0 0.0
    %583 = vmatpush1.msra.mxu0 0.0
    %584 = vmatprep.subr.mxu0 0.0
    %585 = vmatpush1.msra.mxu0 0.0
    %586 = vmatprep.subr.mxu0 0.0
    %587 = vmatpush1.msra.mxu0 0.0
    %588 = vmatprep.subr.mxu0 0.0
    %589 = vmatpush1.msra.mxu0 0.0
    %590 = vmatprep.subr.mxu0 0.0
    %591 = vmatpush1.msra.mxu0 0.0
    %592 = vmatprep.subr.mxu0 0.0
    %593 = vmatpush1.msra.mxu0 0.0
    %594 = vmatprep.subr.mxu0 0.0
    %595 = vmatpush1.msra.mxu0 0.0
    %596 = vmatprep.subr.mxu0 0.0
    %597 = vmatpush1.msra.mxu0 0.0
    %598 = vmatprep.subr.mxu0 0.0
    %599 = vmatpush1.msra.mxu0 0.0
    %600 = vmatprep.subr.mxu0 0.0
    %601 = vmatpush1.msra.mxu0 0.0
    %602 = vmatprep.subr.mxu0 0.0
    %603 = vmatpush1.msra.mxu0 %v420
    %604 = vmatprep.subr.mxu0 0.0
    %605 = vmatpush2.msra.mxu0 0.0
    %606 = vmatprep.subr.mxu0 0.0
    %607 = vmatpush2.msra.mxu0 0.0
    %608 = vmatprep.subr.mxu0 0.0
    %609 = vmatpush2.msra.mxu0 0.0
    %610 = vmatprep.subr.mxu0 0.0
    %611 = vmatpush2.msra.mxu0 0.0
    %612 = vmatprep.subr.mxu0 0.0
    %613 = vmatpush2.msra.mxu0 0.0
    %614 = vmatprep.subr.mxu0 0.0
    %615 = vmatpush2.msra.mxu0 0.0
    %616 = vmatprep.subr.mxu0 0.0
    %617 = vmatpush2.msra.mxu0 0.0
    %618 = vmatprep.subr.mxu0 0.0
    %619 = vmatpush2.msra.mxu0 0.0
    %620 = vmatprep.subr.mxu0 0.0
    %621 = vmatpush2.msra.mxu0 0.0
    %622 = vmatprep.subr.mxu0 0.0
    %623 = vmatpush2.msra.mxu0 0.0
    %624 = vmatprep.subr.mxu0 0.0
    %625 = vmatpush2.msra.mxu0 0.0
    %626 = vmatprep.subr.mxu0 0.0
    %627 = vmatpush2.msra.mxu0 0.0
    %628 = vmatprep.subr.mxu0 0.0
    %629 = vmatpush2.msra.mxu0 0.0
    %630 = vmatprep.subr.mxu0 0.0
    %631 = vmatpush2.msra.mxu0 0.0
    %632 = vmatprep.subr.mxu0 0.0
    %633 = vmatpush2.msra.mxu0 0.0
    %634 = vmatprep.subr.mxu0 0.0
    %635 = vmatpush2.msra.mxu0 0.0
    %636 = vmatprep.mubr.f32.mxu0 0.0
    %637 = vmatmul.mubr.f32.gmra.mxu0 %v552
    %v638 = vpop.f32.mrf.mxu0
    %v639 = vadd.f32 %v518, %v638
    %v640 = vpop.f32.mrf.mxu0
    %641 = vmatprep.mubr.f32.mxu0 0.0
    %642 = vmatmul.mubr.f32.gmra.mxu0 %v555
    %v643 = vpop.f32.mrf.mxu0
    %v644 = vadd.f32 %v523, %v643
    %v645 = vpop.f32.mrf.mxu0
    %646 = vmatprep.mubr.f32.mxu0 0.0
    %647 = vmatmul.mubr.f32.gmra.mxu0 %v558
    %v648 = vpop.f32.mrf.mxu0
    %v649 = vadd.f32 %v528, %v648
    %v650 = vpop.f32.mrf.mxu0
    %651 = vmatprep.mubr.f32.mxu0 0.0
    %652 = vmatmul.mubr.f32.gmra.mxu0 %v561
    %v653 = vpop.f32.mrf.mxu0
    %v654 = vadd.f32 %v533, %v653
    %v655 = vpop.f32.mrf.mxu0
    %656 = vmatprep.mubr.f32.mxu0 0.0
    %657 = vmatmul.mubr.f32.gmra.mxu0 %v564
    %v658 = vpop.f32.mrf.mxu0
    %v659 = vadd.f32 %v538, %v658
    %v660 = vpop.f32.mrf.mxu0
    %661 = vmatprep.mubr.f32.mxu0 0.0
    %662 = vmatmul.mubr.f32.gmra.mxu0 %v567
    %v663 = vpop.f32.mrf.mxu0
    %v664 = vadd.f32 %v543, %v663
    %v665 = vpop.f32.mrf.mxu0
    %666 = vmatprep.mubr.f32.mxu0 0.0
    %667 = vmatmul.mubr.f32.gmra.mxu0 %v570
    %v668 = vpop.f32.mrf.mxu0
    %v669 = vadd.f32 %v548, %v668
    %v670 = vpop.f32.mrf.mxu0
    %671 = vdwg.mxu0
    %v672 = vld [vmem:[#allocation2 + $0x1] sm:$0xff]
    %v673 = vld [vmem:[#allocation2 + $0x9] sm:$0xff]
    %v674 = vld [vmem:[#allocation2 + $0x11] sm:$0xff]
    %v675 = vld [vmem:[#allocation2 + $0x19] sm:$0xff]
    %v676 = vld [vmem:[#allocation2 + $0x21] sm:$0xff]
    %v677 = vld [vmem:[#allocation2 + $0x29] sm:$0xff]
    %v678 = vld [vmem:[#allocation2 + $0x31] sm:$0x3]
    %s679 = scalar_lea.vmem %s3, 16
    %v680 = vld [vmem:[%s679] sm:$0xff]
    %v682 = vsel %vm387, %v672, 0
    %v685 = vsel %vm387, %v673, 0
    %v688 = vsel %vm387, %v674, 0
    %v691 = vsel %vm387, %v675, 0
    %v694 = vsel %vm387, %v676, 0
    %v697 = vsel %vm387, %v677, 0
    %v700 = vsel %vm387, %v678, 0
    %702 = vmatprep.subr.mxu0 0.0
    %703 = vmatpush1.msra.mxu0 0.0
    %704 = vmatprep.subr.mxu0 0.0
    %705 = vmatpush1.msra.mxu0 0.0
    %706 = vmatprep.subr.mxu0 0.0
    %707 = vmatpush1.msra.mxu0 0.0
    %708 = vmatprep.subr.mxu0 0.0
    %709 = vmatpush1.msra.mxu0 0.0
    %710 = vmatprep.subr.mxu0 0.0
    %711 = vmatpush1.msra.mxu0 0.0
    %712 = vmatprep.subr.mxu0 0.0
    %713 = vmatpush1.msra.mxu0 0.0
    %714 = vmatprep.subr.mxu0 0.0
    %715 = vmatpush1.msra.mxu0 0.0
    %716 = vmatprep.subr.mxu0 0.0
    %717 = vmatpush1.msra.mxu0 0.0
    %718 = vmatprep.subr.mxu0 0.0
    %719 = vmatpush1.msra.mxu0 0.0
    %720 = vmatprep.subr.mxu0 0.0
    %721 = vmatpush1.msra.mxu0 0.0
    %722 = vmatprep.subr.mxu0 0.0
    %723 = vmatpush1.msra.mxu0 0.0
    %724 = vmatprep.subr.mxu0 0.0
    %725 = vmatpush1.msra.mxu0 0.0
    %726 = vmatprep.subr.mxu0 0.0
    %727 = vmatpush1.msra.mxu0 0.0
    %728 = vmatprep.subr.mxu0 0.0
    %729 = vmatpush1.msra.mxu0 0.0
    %730 = vmatprep.subr.mxu0 0.0
    %731 = vmatpush1.msra.mxu0 0.0
    %732 = vmatprep.subr.mxu0 0.0
    %733 = vmatpush1.msra.mxu0 %v680
    %734 = vmatprep.subr.mxu0 0.0
    %735 = vmatpush2.msra.mxu0 0.0
    %736 = vmatprep.subr.mxu0 0.0
    %737 = vmatpush2.msra.mxu0 0.0
    %738 = vmatprep.subr.mxu0 0.0
    %739 = vmatpush2.msra.mxu0 0.0
    %740 = vmatprep.subr.mxu0 0.0
    %741 = vmatpush2.msra.mxu0 0.0
    %742 = vmatprep.subr.mxu0 0.0
    %743 = vmatpush2.msra.mxu0 0.0
    %744 = vmatprep.subr.mxu0 0.0
    %745 = vmatpush2.msra.mxu0 0.0
    %746 = vmatprep.subr.mxu0 0.0
    %747 = vmatpush2.msra.mxu0 0.0
    %748 = vmatprep.subr.mxu0 0.0
    %749 = vmatpush2.msra.mxu0 0.0
    %750 = vmatprep.subr.mxu0 0.0
    %751 = vmatpush2.msra.mxu0 0.0
    %752 = vmatprep.subr.mxu0 0.0
    %753 = vmatpush2.msra.mxu0 0.0
    %754 = vmatprep.subr.mxu0 0.0
    %755 = vmatpush2.msra.mxu0 0.0
    %756 = vmatprep.subr.mxu0 0.0
    %757 = vmatpush2.msra.mxu0 0.0
    %758 = vmatprep.subr.mxu0 0.0
    %759 = vmatpush2.msra.mxu0 0.0
    %760 = vmatprep.subr.mxu0 0.0
    %761 = vmatpush2.msra.mxu0 0.0
    %762 = vmatprep.subr.mxu0 0.0
    %763 = vmatpush2.msra.mxu0 0.0
    %764 = vmatprep.subr.mxu0 0.0
    %765 = vmatpush2.msra.mxu0 0.0
    %766 = vmatprep.mubr.f32.mxu0 0.0
    %767 = vmatmul.mubr.f32.gmra.mxu0 %v682
    %v768 = vpop.f32.mrf.mxu0
    %v769 = vadd.f32 0.0, %v768
    %v770 = vpop.f32.mrf.mxu0
    %771 = vmatprep.mubr.f32.mxu0 0.0
    %772 = vmatmul.mubr.f32.gmra.mxu0 %v685
    %v773 = vpop.f32.mrf.mxu0
    %v774 = vadd.f32 0.0, %v773
    %v775 = vpop.f32.mrf.mxu0
    %776 = vmatprep.mubr.f32.mxu0 0.0
    %777 = vmatmul.mubr.f32.gmra.mxu0 %v688
    %v778 = vpop.f32.mrf.mxu0
    %v779 = vadd.f32 0.0, %v778
    %v780 = vpop.f32.mrf.mxu0
    %781 = vmatprep.mubr.f32.mxu0 0.0
    %782 = vmatmul.mubr.f32.gmra.mxu0 %v691
    %v783 = vpop.f32.mrf.mxu0
    %v784 = vadd.f32 0.0, %v783
    %v785 = vpop.f32.mrf.mxu0
    %786 = vmatprep.mubr.f32.mxu0 0.0
    %787 = vmatmul.mubr.f32.gmra.mxu0 %v694
    %v788 = vpop.f32.mrf.mxu0
    %v789 = vadd.f32 0.0, %v788
    %v790 = vpop.f32.mrf.mxu0
    %791 = vmatprep.mubr.f32.mxu0 0.0
    %792 = vmatmul.mubr.f32.gmra.mxu0 %v697
    %v793 = vpop.f32.mrf.mxu0
    %v794 = vadd.f32 0.0, %v793
    %v795 = vpop.f32.mrf.mxu0
    %796 = vmatprep.mubr.f32.mxu0 0.0
    %797 = vmatmul.mubr.f32.gmra.mxu0 %v700
    %v798 = vpop.f32.mrf.mxu0
    %v799 = vadd.f32 0.0, %v798
    %v800 = vpop.f32.mrf.mxu0
    %801 = vdwg.mxu0
    %v802 = vadd.f32 %v639, %v769
    %v803 = vadd.f32 %v644, %v774
    %v804 = vadd.f32 %v649, %v779
    %v805 = vadd.f32 %v654, %v784
    %v806 = vadd.f32 %v659, %v789
    %v807 = vadd.f32 %v664, %v794
    %v808 = vadd.f32 %v669, %v799
    %v809 = vld [vmem:[#allocation2 + $0x33] sm:$0xff]
    %v810 = vld [vmem:[#allocation2 + $0x3b] sm:$0xff]
    %v811 = vld [vmem:[#allocation2 + $0x43] sm:$0xff]
    %v812 = vld [vmem:[#allocation2 + $0x4b] sm:$0xff]
    %v813 = vld [vmem:[#allocation2 + $0x53] sm:$0xff]
    %v814 = vld [vmem:[#allocation2 + $0x5b] sm:$0xff]
    %v815 = vld [vmem:[#allocation2 + $0x63] sm:$0x3]
    %s816 = scalar_lea.vmem %s3, 24
    %v817 = vld [vmem:[%s816] sm:$0xff]
    %v819 = vsel %vm387, %v809, 0
    %v822 = vsel %vm387, %v810, 0
    %v825 = vsel %vm387, %v811, 0
    %v828 = vsel %vm387, %v812, 0
    %v831 = vsel %vm387, %v813, 0
    %v834 = vsel %vm387, %v814, 0
    %v837 = vsel %vm387, %v815, 0
    %839 = vmatprep.subr.mxu0 0.0
    %840 = vmatpush1.msra.mxu0 0.0
    %841 = vmatprep.subr.mxu0 0.0
    %842 = vmatpush1.msra.mxu0 0.0
    %843 = vmatprep.subr.mxu0 0.0
    %844 = vmatpush1.msra.mxu0 0.0
    %845 = vmatprep.subr.mxu0 0.0
    %846 = vmatpush1.msra.mxu0 0.0
    %847 = vmatprep.subr.mxu0 0.0
    %848 = vmatpush1.msra.mxu0 0.0
    %849 = vmatprep.subr.mxu0 0.0
    %850 = vmatpush1.msra.mxu0 0.0
    %851 = vmatprep.subr.mxu0 0.0
    %852 = vmatpush1.msra.mxu0 0.0
    %853 = vmatprep.subr.mxu0 0.0
    %854 = vmatpush1.msra.mxu0 0.0
    %855 = vmatprep.subr.mxu0 0.0
    %856 = vmatpush1.msra.mxu0 0.0
    %857 = vmatprep.subr.mxu0 0.0
    %858 = vmatpush1.msra.mxu0 0.0
    %859 = vmatprep.subr.mxu0 0.0
    %860 = vmatpush1.msra.mxu0 0.0
    %861 = vmatprep.subr.mxu0 0.0
    %862 = vmatpush1.msra.mxu0 0.0
    %863 = vmatprep.subr.mxu0 0.0
    %864 = vmatpush1.msra.mxu0 0.0
    %865 = vmatprep.subr.mxu0 0.0
    %866 = vmatpush1.msra.mxu0 0.0
    %867 = vmatprep.subr.mxu0 0.0
    %868 = vmatpush1.msra.mxu0 0.0
    %869 = vmatprep.subr.mxu0 0.0
    %870 = vmatpush1.msra.mxu0 %v817
    %871 = vmatprep.subr.mxu0 0.0
    %872 = vmatpush2.msra.mxu0 0.0
    %873 = vmatprep.subr.mxu0 0.0
    %874 = vmatpush2.msra.mxu0 0.0
    %875 = vmatprep.subr.mxu0 0.0
    %876 = vmatpush2.msra.mxu0 0.0
    %877 = vmatprep.subr.mxu0 0.0
    %878 = vmatpush2.msra.mxu0 0.0
    %879 = vmatprep.subr.mxu0 0.0
    %880 = vmatpush2.msra.mxu0 0.0
    %881 = vmatprep.subr.mxu0 0.0
    %882 = vmatpush2.msra.mxu0 0.0
    %883 = vmatprep.subr.mxu0 0.0
    %884 = vmatpush2.msra.mxu0 0.0
    %885 = vmatprep.subr.mxu0 0.0
    %886 = vmatpush2.msra.mxu0 0.0
    %887 = vmatprep.subr.mxu0 0.0
    %888 = vmatpush2.msra.mxu0 0.0
    %889 = vmatprep.subr.mxu0 0.0
    %890 = vmatpush2.msra.mxu0 0.0
    %891 = vmatprep.subr.mxu0 0.0
    %892 = vmatpush2.msra.mxu0 0.0
    %893 = vmatprep.subr.mxu0 0.0
    %894 = vmatpush2.msra.mxu0 0.0
    %895 = vmatprep.subr.mxu0 0.0
    %896 = vmatpush2.msra.mxu0 0.0
    %897 = vmatprep.subr.mxu0 0.0
    %898 = vmatpush2.msra.mxu0 0.0
    %899 = vmatprep.subr.mxu0 0.0
    %900 = vmatpush2.msra.mxu0 0.0
    %901 = vmatprep.subr.mxu0 0.0
    %902 = vmatpush2.msra.mxu0 0.0
    %903 = vmatprep.mubr.f32.mxu0 0.0
    %904 = vmatmul.mubr.f32.gmra.mxu0 %v819
    %v905 = vpop.f32.mrf.mxu0
    %v906 = vadd.f32 0.0, %v905
    %v907 = vpop.f32.mrf.mxu0
    %908 = vmatprep.mubr.f32.mxu0 0.0
    %909 = vmatmul.mubr.f32.gmra.mxu0 %v822
    %v910 = vpop.f32.mrf.mxu0
    %v911 = vadd.f32 0.0, %v910
    %v912 = vpop.f32.mrf.mxu0
    %913 = vmatprep.mubr.f32.mxu0 0.0
    %914 = vmatmul.mubr.f32.gmra.mxu0 %v825
    %v915 = vpop.f32.mrf.mxu0
    %v916 = vadd.f32 0.0, %v915
    %v917 = vpop.f32.mrf.mxu0
    %918 = vmatprep.mubr.f32.mxu0 0.0
    %919 = vmatmul.mubr.f32.gmra.mxu0 %v828
    %v920 = vpop.f32.mrf.mxu0
    %v921 = vadd.f32 0.0, %v920
    %v922 = vpop.f32.mrf.mxu0
    %923 = vmatprep.mubr.f32.mxu0 0.0
    %924 = vmatmul.mubr.f32.gmra.mxu0 %v831
    %v925 = vpop.f32.mrf.mxu0
    %v926 = vadd.f32 0.0, %v925
    %v927 = vpop.f32.mrf.mxu0
    %928 = vmatprep.mubr.f32.mxu0 0.0
    %929 = vmatmul.mubr.f32.gmra.mxu0 %v834
    %v930 = vpop.f32.mrf.mxu0
    %v931 = vadd.f32 0.0, %v930
    %v932 = vpop.f32.mrf.mxu0
    %933 = vmatprep.mubr.f32.mxu0 0.0
    %934 = vmatmul.mubr.f32.gmra.mxu0 %v837
    %v935 = vpop.f32.mrf.mxu0
    %v936 = vadd.f32 0.0, %v935
    %v937 = vpop.f32.mrf.mxu0
    %938 = vdwg.mxu0
    %v939 = vadd.f32 %v802, %v906
    %v940 = vadd.f32 %v803, %v911
    %v941 = vadd.f32 %v804, %v916
    %v942 = vadd.f32 %v805, %v921
    %v943 = vadd.f32 %v806, %v926
    %v944 = vadd.f32 %v807, %v931
    %v945 = vadd.f32 %v808, %v936
    %v946 = vld [vmem:[#allocation2 + $0x64] sm:$0xff]
    %v947 = vld [vmem:[#allocation2 + $0x6c] sm:$0xff]
    %v948 = vld [vmem:[#allocation2 + $0x74] sm:$0xff]
    %v949 = vld [vmem:[#allocation2 + $0x7c] sm:$0xff]
    %v950 = vld [vmem:[#allocation2 + $0x84] sm:$0xff]
    %v951 = vld [vmem:[#allocation2 + $0x8c] sm:$0xff]
    %v952 = vld [vmem:[#allocation2 + $0x94] sm:$0x3]
    %s953 = scalar_lea.vmem %s3, 32
    %v954 = vld [vmem:[%s953] sm:$0xff]
    %v956 = vsel %vm387, %v946, 0
    %v959 = vsel %vm387, %v947, 0
    %v962 = vsel %vm387, %v948, 0
    %v965 = vsel %vm387, %v949, 0
    %v968 = vsel %vm387, %v950, 0
    %v971 = vsel %vm387, %v951, 0
    %v974 = vsel %vm387, %v952, 0
    %976 = vmatprep.subr.mxu0 0.0
    %977 = vmatpush1.msra.mxu0 0.0
    %978 = vmatprep.subr.mxu0 0.0
    %979 = vmatpush1.msra.mxu0 0.0
    %980 = vmatprep.subr.mxu0 0.0
    %981 = vmatpush1.msra.mxu0 0.0
    %982 = vmatprep.subr.mxu0 0.0
    %983 = vmatpush1.msra.mxu0 0.0
    %984 = vmatprep.subr.mxu0 0.0
    %985 = vmatpush1.msra.mxu0 0.0
    %986 = vmatprep.subr.mxu0 0.0
    %987 = vmatpush1.msra.mxu0 0.0
    %988 = vmatprep.subr.mxu0 0.0
    %989 = vmatpush1.msra.mxu0 0.0
    %990 = vmatprep.subr.mxu0 0.0
    %991 = vmatpush1.msra.mxu0 0.0
    %992 = vmatprep.subr.mxu0 0.0
    %993 = vmatpush1.msra.mxu0 0.0
    %994 = vmatprep.subr.mxu0 0.0
    %995 = vmatpush1.msra.mxu0 0.0
    %996 = vmatprep.subr.mxu0 0.0
    %997 = vmatpush1.msra.mxu0 0.0
    %998 = vmatprep.subr.mxu0 0.0
    %999 = vmatpush1.msra.mxu0 0.0
    %1000 = vmatprep.subr.mxu0 0.0
    %1001 = vmatpush1.msra.mxu0 0.0
    %1002 = vmatprep.subr.mxu0 0.0
    %1003 = vmatpush1.msra.mxu0 0.0
    %1004 = vmatprep.subr.mxu0 0.0
    %1005 = vmatpush1.msra.mxu0 0.0
    %1006 = vmatprep.subr.mxu0 0.0
    %1007 = vmatpush1.msra.mxu0 %v954
    %1008 = vmatprep.subr.mxu0 0.0
    %1009 = vmatpush2.msra.mxu0 0.0
    %1010 = vmatprep.subr.mxu0 0.0
    %1011 = vmatpush2.msra.mxu0 0.0
    %1012 = vmatprep.subr.mxu0 0.0
    %1013 = vmatpush2.msra.mxu0 0.0
    %1014 = vmatprep.subr.mxu0 0.0
    %1015 = vmatpush2.msra.mxu0 0.0
    %1016 = vmatprep.subr.mxu0 0.0
    %1017 = vmatpush2.msra.mxu0 0.0
    %1018 = vmatprep.subr.mxu0 0.0
    %1019 = vmatpush2.msra.mxu0 0.0
    %1020 = vmatprep.subr.mxu0 0.0
    %1021 = vmatpush2.msra.mxu0 0.0
    %1022 = vmatprep.subr.mxu0 0.0
    %1023 = vmatpush2.msra.mxu0 0.0
    %1024 = vmatprep.subr.mxu0 0.0
    %1025 = vmatpush2.msra.mxu0 0.0
    %1026 = vmatprep.subr.mxu0 0.0
    %1027 = vmatpush2.msra.mxu0 0.0
    %1028 = vmatprep.subr.mxu0 0.0
    %1029 = vmatpush2.msra.mxu0 0.0
    %1030 = vmatprep.subr.mxu0 0.0
    %1031 = vmatpush2.msra.mxu0 0.0
    %1032 = vmatprep.subr.mxu0 0.0
    %1033 = vmatpush2.msra.mxu0 0.0
    %1034 = vmatprep.subr.mxu0 0.0
    %1035 = vmatpush2.msra.mxu0 0.0
    %1036 = vmatprep.subr.mxu0 0.0
    %1037 = vmatpush2.msra.mxu0 0.0
    %1038 = vmatprep.subr.mxu0 0.0
    %1039 = vmatpush2.msra.mxu0 0.0
    %1040 = vmatprep.mubr.f32.mxu0 0.0
    %1041 = vmatmul.mubr.f32.gmra.mxu0 %v956
    %v1042 = vpop.f32.mrf.mxu0
    %v1043 = vadd.f32 0.0, %v1042
    %v1044 = vpop.f32.mrf.mxu0
    %1045 = vmatprep.mubr.f32.mxu0 0.0
    %1046 = vmatmul.mubr.f32.gmra.mxu0 %v959
    %v1047 = vpop.f32.mrf.mxu0
    %v1048 = vadd.f32 0.0, %v1047
    %v1049 = vpop.f32.mrf.mxu0
    %1050 = vmatprep.mubr.f32.mxu0 0.0
    %1051 = vmatmul.mubr.f32.gmra.mxu0 %v962
    %v1052 = vpop.f32.mrf.mxu0
    %v1053 = vadd.f32 0.0, %v1052
    %v1054 = vpop.f32.mrf.mxu0
    %1055 = vmatprep.mubr.f32.mxu0 0.0
    %1056 = vmatmul.mubr.f32.gmra.mxu0 %v965
    %v1057 = vpop.f32.mrf.mxu0
    %v1058 = vadd.f32 0.0, %v1057
    %v1059 = vpop.f32.mrf.mxu0
    %1060 = vmatprep.mubr.f32.mxu0 0.0
    %1061 = vmatmul.mubr.f32.gmra.mxu0 %v968
    %v1062 = vpop.f32.mrf.mxu0
    %v1063 = vadd.f32 0.0, %v1062
    %v1064 = vpop.f32.mrf.mxu0
    %1065 = vmatprep.mubr.f32.mxu0 0.0
    %1066 = vmatmul.mubr.f32.gmra.mxu0 %v971
    %v1067 = vpop.f32.mrf.mxu0
    %v1068 = vadd.f32 0.0, %v1067
    %v1069 = vpop.f32.mrf.mxu0
    %1070 = vmatprep.mubr.f32.mxu0 0.0
    %1071 = vmatmul.mubr.f32.gmra.mxu0 %v974
    %v1072 = vpop.f32.mrf.mxu0
    %v1073 = vadd.f32 0.0, %v1072
    %v1074 = vpop.f32.mrf.mxu0
    %1075 = vdwg.mxu0
    %v1076 = vadd.f32 %v939, %v1043
    %v1077 = vadd.f32 %v940, %v1048
    %v1078 = vadd.f32 %v941, %v1053
    %v1079 = vadd.f32 %v942, %v1058
    %v1080 = vadd.f32 %v943, %v1063
    %v1081 = vadd.f32 %v944, %v1068
    %v1082 = vadd.f32 %v945, %v1073
    %v1083 = vld [vmem:[#allocation2 + $0x96] sm:$0xff]
    %v1084 = vld [vmem:[#allocation2 + $0x9e] sm:$0xff]
    %v1085 = vld [vmem:[#allocation2 + $0xa6] sm:$0xff]
    %v1086 = vld [vmem:[#allocation2 + $0xae] sm:$0xff]
    %v1087 = vld [vmem:[#allocation2 + $0xb6] sm:$0xff]
    %v1088 = vld [vmem:[#allocation2 + $0xbe] sm:$0xff]
    %v1089 = vld [vmem:[#allocation2 + $0xc6] sm:$0x3]
    %s1090 = scalar_lea.vmem %s3, 40
    %v1091 = vld [vmem:[%s1090] sm:$0xff]
    %v1093 = vsel %vm387, %v1083, 0
    %v1096 = vsel %vm387, %v1084, 0
    %v1099 = vsel %vm387, %v1085, 0
    %v1102 = vsel %vm387, %v1086, 0
    %v1105 = vsel %vm387, %v1087, 0
    %v1108 = vsel %vm387, %v1088, 0
    %v1111 = vsel %vm387, %v1089, 0
    %1113 = vmatprep.subr.mxu0 0.0
    %1114 = vmatpush1.msra.mxu0 0.0
    %1115 = vmatprep.subr.mxu0 0.0
    %1116 = vmatpush1.msra.mxu0 0.0
    %1117 = vmatprep.subr.mxu0 0.0
    %1118 = vmatpush1.msra.mxu0 0.0
    %1119 = vmatprep.subr.mxu0 0.0
    %1120 = vmatpush1.msra.mxu0 0.0
    %1121 = vmatprep.subr.mxu0 0.0
    %1122 = vmatpush1.msra.mxu0 0.0
    %1123 = vmatprep.subr.mxu0 0.0
    %1124 = vmatpush1.msra.mxu0 0.0
    %1125 = vmatprep.subr.mxu0 0.0
    %1126 = vmatpush1.msra.mxu0 0.0
    %1127 = vmatprep.subr.mxu0 0.0
    %1128 = vmatpush1.msra.mxu0 0.0
    %1129 = vmatprep.subr.mxu0 0.0
    %1130 = vmatpush1.msra.mxu0 0.0
    %1131 = vmatprep.subr.mxu0 0.0
    %1132 = vmatpush1.msra.mxu0 0.0
    %1133 = vmatprep.subr.mxu0 0.0
    %1134 = vmatpush1.msra.mxu0 0.0
    %1135 = vmatprep.subr.mxu0 0.0
    %1136 = vmatpush1.msra.mxu0 0.0
    %1137 = vmatprep.subr.mxu0 0.0
    %1138 = vmatpush1.msra.mxu0 0.0
    %1139 = vmatprep.subr.mxu0 0.0
    %1140 = vmatpush1.msra.mxu0 0.0
    %1141 = vmatprep.subr.mxu0 0.0
    %1142 = vmatpush1.msra.mxu0 0.0
    %1143 = vmatprep.subr.mxu0 0.0
    %1144 = vmatpush1.msra.mxu0 %v1091
    %1145 = vmatprep.subr.mxu0 0.0
    %1146 = vmatpush2.msra.mxu0 0.0
    %1147 = vmatprep.subr.mxu0 0.0
    %1148 = vmatpush2.msra.mxu0 0.0
    %1149 = vmatprep.subr.mxu0 0.0
    %1150 = vmatpush2.msra.mxu0 0.0
    %1151 = vmatprep.subr.mxu0 0.0
    %1152 = vmatpush2.msra.mxu0 0.0
    %1153 = vmatprep.subr.mxu0 0.0
    %1154 = vmatpush2.msra.mxu0 0.0
    %1155 = vmatprep.subr.mxu0 0.0
    %1156 = vmatpush2.msra.mxu0 0.0
    %1157 = vmatprep.subr.mxu0 0.0
    %1158 = vmatpush2.msra.mxu0 0.0
    %1159 = vmatprep.subr.mxu0 0.0
    %1160 = vmatpush2.msra.mxu0 0.0
    %1161 = vmatprep.subr.mxu0 0.0
    %1162 = vmatpush2.msra.mxu0 0.0
    %1163 = vmatprep.subr.mxu0 0.0
    %1164 = vmatpush2.msra.mxu0 0.0
    %1165 = vmatprep.subr.mxu0 0.0
    %1166 = vmatpush2.msra.mxu0 0.0
    %1167 = vmatprep.subr.mxu0 0.0
    %1168 = vmatpush2.msra.mxu0 0.0
    %1169 = vmatprep.subr.mxu0 0.0
    %1170 = vmatpush2.msra.mxu0 0.0
    %1171 = vmatprep.subr.mxu0 0.0
    %1172 = vmatpush2.msra.mxu0 0.0
    %1173 = vmatprep.subr.mxu0 0.0
    %1174 = vmatpush2.msra.mxu0 0.0
    %1175 = vmatprep.subr.mxu0 0.0
    %1176 = vmatpush2.msra.mxu0 0.0
    %1177 = vmatprep.mubr.f32.mxu0 0.0
    %1178 = vmatmul.mubr.f32.gmra.mxu0 %v1093
    %v1179 = vpop.f32.mrf.mxu0
    %v1180 = vadd.f32 0.0, %v1179
    %v1181 = vpop.f32.mrf.mxu0
    %1182 = vmatprep.mubr.f32.mxu0 0.0
    %1183 = vmatmul.mubr.f32.gmra.mxu0 %v1096
    %v1184 = vpop.f32.mrf.mxu0
    %v1185 = vadd.f32 0.0, %v1184
    %v1186 = vpop.f32.mrf.mxu0
    %1187 = vmatprep.mubr.f32.mxu0 0.0
    %1188 = vmatmul.mubr.f32.gmra.mxu0 %v1099
    %v1189 = vpop.f32.mrf.mxu0
    %v1190 = vadd.f32 0.0, %v1189
    %v1191 = vpop.f32.mrf.mxu0
    %1192 = vmatprep.mubr.f32.mxu0 0.0
    %1193 = vmatmul.mubr.f32.gmra.mxu0 %v1102
    %v1194 = vpop.f32.mrf.mxu0
    %v1195 = vadd.f32 0.0, %v1194
    %v1196 = vpop.f32.mrf.mxu0
    %1197 = vmatprep.mubr.f32.mxu0 0.0
    %1198 = vmatmul.mubr.f32.gmra.mxu0 %v1105
    %v1199 = vpop.f32.mrf.mxu0
    %v1200 = vadd.f32 0.0, %v1199
    %v1201 = vpop.f32.mrf.mxu0
    %1202 = vmatprep.mubr.f32.mxu0 0.0
    %1203 = vmatmul.mubr.f32.gmra.mxu0 %v1108
    %v1204 = vpop.f32.mrf.mxu0
    %v1205 = vadd.f32 0.0, %v1204
    %v1206 = vpop.f32.mrf.mxu0
    %1207 = vmatprep.mubr.f32.mxu0 0.0
    %1208 = vmatmul.mubr.f32.gmra.mxu0 %v1111
    %v1209 = vpop.f32.mrf.mxu0
    %v1210 = vadd.f32 0.0, %v1209
    %v1211 = vpop.f32.mrf.mxu0
    %1212 = vdwg.mxu0
    %v1213 = vadd.f32 %v1076, %v1180
    %v1214 = vadd.f32 %v1077, %v1185
    %v1215 = vadd.f32 %v1078, %v1190
    %v1216 = vadd.f32 %v1079, %v1195
    %v1217 = vadd.f32 %v1080, %v1200
    %v1218 = vadd.f32 %v1081, %v1205
    %v1219 = vadd.f32 %v1082, %v1210
    %v1220 = vld [vmem:[#allocation2 + $0x65] sm:$0xff]
    %v1221 = vld [vmem:[#allocation2 + $0x6d] sm:$0xff]
    %v1222 = vld [vmem:[#allocation2 + $0x75] sm:$0xff]
    %v1223 = vld [vmem:[#allocation2 + $0x7d] sm:$0xff]
    %v1224 = vld [vmem:[#allocation2 + $0x85] sm:$0xff]
    %v1225 = vld [vmem:[#allocation2 + $0x8d] sm:$0xff]
    %v1226 = vld [vmem:[#allocation2 + $0x95] sm:$0x3]
    %s1227 = scalar_lea.vmem %s3, 48
    %v1228 = vld [vmem:[%s1227] sm:$0xff]
    %v1230 = vsel %vm387, %v1220, 0
    %v1233 = vsel %vm387, %v1221, 0
    %v1236 = vsel %vm387, %v1222, 0
    %v1239 = vsel %vm387, %v1223, 0
    %v1242 = vsel %vm387, %v1224, 0
    %v1245 = vsel %vm387, %v1225, 0
    %v1248 = vsel %vm387, %v1226, 0
    %1250 = vmatprep.subr.mxu0 0.0
    %1251 = vmatpush1.msra.mxu0 0.0
    %1252 = vmatprep.subr.mxu0 0.0
    %1253 = vmatpush1.msra.mxu0 0.0
    %1254 = vmatprep.subr.mxu0 0.0
    %1255 = vmatpush1.msra.mxu0 0.0
    %1256 = vmatprep.subr.mxu0 0.0
    %1257 = vmatpush1.msra.mxu0 0.0
    %1258 = vmatprep.subr.mxu0 0.0
    %1259 = vmatpush1.msra.mxu0 0.0
    %1260 = vmatprep.subr.mxu0 0.0
    %1261 = vmatpush1.msra.mxu0 0.0
    %1262 = vmatprep.subr.mxu0 0.0
    %1263 = vmatpush1.msra.mxu0 0.0
    %1264 = vmatprep.subr.mxu0 0.0
    %1265 = vmatpush1.msra.mxu0 0.0
    %1266 = vmatprep.subr.mxu0 0.0
    %1267 = vmatpush1.msra.mxu0 0.0
    %1268 = vmatprep.subr.mxu0 0.0
    %1269 = vmatpush1.msra.mxu0 0.0
    %1270 = vmatprep.subr.mxu0 0.0
    %1271 = vmatpush1.msra.mxu0 0.0
    %1272 = vmatprep.subr.mxu0 0.0
    %1273 = vmatpush1.msra.mxu0 0.0
    %1274 = vmatprep.subr.mxu0 0.0
    %1275 = vmatpush1.msra.mxu0 0.0
    %1276 = vmatprep.subr.mxu0 0.0
    %1277 = vmatpush1.msra.mxu0 0.0
    %1278 = vmatprep.subr.mxu0 0.0
    %1279 = vmatpush1.msra.mxu0 0.0
    %1280 = vmatprep.subr.mxu0 0.0
    %1281 = vmatpush1.msra.mxu0 %v1228
    %1282 = vmatprep.subr.mxu0 0.0
    %1283 = vmatpush2.msra.mxu0 0.0
    %1284 = vmatprep.subr.mxu0 0.0
    %1285 = vmatpush2.msra.mxu0 0.0
    %1286 = vmatprep.subr.mxu0 0.0
    %1287 = vmatpush2.msra.mxu0 0.0
    %1288 = vmatprep.subr.mxu0 0.0
    %1289 = vmatpush2.msra.mxu0 0.0
    %1290 = vmatprep.subr.mxu0 0.0
    %1291 = vmatpush2.msra.mxu0 0.0
    %1292 = vmatprep.subr.mxu0 0.0
    %1293 = vmatpush2.msra.mxu0 0.0
    %1294 = vmatprep.subr.mxu0 0.0
    %1295 = vmatpush2.msra.mxu0 0.0
    %1296 = vmatprep.subr.mxu0 0.0
    %1297 = vmatpush2.msra.mxu0 0.0
    %1298 = vmatprep.subr.mxu0 0.0
    %1299 = vmatpush2.msra.mxu0 0.0
    %1300 = vmatprep.subr.mxu0 0.0
    %1301 = vmatpush2.msra.mxu0 0.0
    %1302 = vmatprep.subr.mxu0 0.0
    %1303 = vmatpush2.msra.mxu0 0.0
    %1304 = vmatprep.subr.mxu0 0.0
    %1305 = vmatpush2.msra.mxu0 0.0
    %1306 = vmatprep.subr.mxu0 0.0
    %1307 = vmatpush2.msra.mxu0 0.0
    %1308 = vmatprep.subr.mxu0 0.0
    %1309 = vmatpush2.msra.mxu0 0.0
    %1310 = vmatprep.subr.mxu0 0.0
    %1311 = vmatpush2.msra.mxu0 0.0
    %1312 = vmatprep.subr.mxu0 0.0
    %1313 = vmatpush2.msra.mxu0 0.0
    %1314 = vmatprep.mubr.f32.mxu0 0.0
    %1315 = vmatmul.mubr.f32.gmra.mxu0 %v1230
    %v1316 = vpop.f32.mrf.mxu0
    %v1317 = vadd.f32 0.0, %v1316
    %v1318 = vpop.f32.mrf.mxu0
    %1319 = vmatprep.mubr.f32.mxu0 0.0
    %1320 = vmatmul.mubr.f32.gmra.mxu0 %v1233
    %v1321 = vpop.f32.mrf.mxu0
    %v1322 = vadd.f32 0.0, %v1321
    %v1323 = vpop.f32.mrf.mxu0
    %1324 = vmatprep.mubr.f32.mxu0 0.0
    %1325 = vmatmul.mubr.f32.gmra.mxu0 %v1236
    %v1326 = vpop.f32.mrf.mxu0
    %v1327 = vadd.f32 0.0, %v1326
    %v1328 = vpop.f32.mrf.mxu0
    %1329 = vmatprep.mubr.f32.mxu0 0.0
    %1330 = vmatmul.mubr.f32.gmra.mxu0 %v1239
    %v1331 = vpop.f32.mrf.mxu0
    %v1332 = vadd.f32 0.0, %v1331
    %v1333 = vpop.f32.mrf.mxu0
    %1334 = vmatprep.mubr.f32.mxu0 0.0
    %1335 = vmatmul.mubr.f32.gmra.mxu0 %v1242
    %v1336 = vpop.f32.mrf.mxu0
    %v1337 = vadd.f32 0.0, %v1336
    %v1338 = vpop.f32.mrf.mxu0
    %1339 = vmatprep.mubr.f32.mxu0 0.0
    %1340 = vmatmul.mubr.f32.gmra.mxu0 %v1245
    %v1341 = vpop.f32.mrf.mxu0
    %v1342 = vadd.f32 0.0, %v1341
    %v1343 = vpop.f32.mrf.mxu0
    %1344 = vmatprep.mubr.f32.mxu0 0.0
    %1345 = vmatmul.mubr.f32.gmra.mxu0 %v1248
    %v1346 = vpop.f32.mrf.mxu0
    %v1347 = vadd.f32 0.0, %v1346
    %v1348 = vpop.f32.mrf.mxu0
    %1349 = vdwg.mxu0
    %v1350 = vadd.f32 %v1213, %v1317
    %v1351 = vadd.f32 %v1214, %v1322
    %v1352 = vadd.f32 %v1215, %v1327
    %v1353 = vadd.f32 %v1216, %v1332
    %v1354 = vadd.f32 %v1217, %v1337
    %v1355 = vadd.f32 %v1218, %v1342
    %v1356 = vadd.f32 %v1219, %v1347
    %v1357 = vld [vmem:[#allocation2 + $0x97] sm:$0xff]
    %v1358 = vld [vmem:[#allocation2 + $0x9f] sm:$0xff]
    %v1359 = vld [vmem:[#allocation2 + $0xa7] sm:$0xff]
    %v1360 = vld [vmem:[#allocation2 + $0xaf] sm:$0xff]
    %v1361 = vld [vmem:[#allocation2 + $0xb7] sm:$0xff]
    %v1362 = vld [vmem:[#allocation2 + $0xbf] sm:$0xff]
    %v1363 = vld [vmem:[#allocation2 + $0xc7] sm:$0x3]
    %s1364 = scalar_lea.vmem %s3, 56
    %v1365 = vld [vmem:[%s1364] sm:$0xff]
    %v1367 = vsel %vm387, %v1357, 0
    %v1370 = vsel %vm387, %v1358, 0
    %v1373 = vsel %vm387, %v1359, 0
    %v1376 = vsel %vm387, %v1360, 0
    %v1379 = vsel %vm387, %v1361, 0
    %v1382 = vsel %vm387, %v1362, 0
    %v1385 = vsel %vm387, %v1363, 0
    %1387 = vmatprep.subr.mxu0 0.0
    %1388 = vmatpush1.msra.mxu0 0.0
    %1389 = vmatprep.subr.mxu0 0.0
    %1390 = vmatpush1.msra.mxu0 0.0
    %1391 = vmatprep.subr.mxu0 0.0
    %1392 = vmatpush1.msra.mxu0 0.0
    %1393 = vmatprep.subr.mxu0 0.0
    %1394 = vmatpush1.msra.mxu0 0.0
    %1395 = vmatprep.subr.mxu0 0.0
    %1396 = vmatpush1.msra.mxu0 0.0
    %1397 = vmatprep.subr.mxu0 0.0
    %1398 = vmatpush1.msra.mxu0 0.0
    %1399 = vmatprep.subr.mxu0 0.0
    %1400 = vmatpush1.msra.mxu0 0.0
    %1401 = vmatprep.subr.mxu0 0.0
    %1402 = vmatpush1.msra.mxu0 0.0
    %1403 = vmatprep.subr.mxu0 0.0
    %1404 = vmatpush1.msra.mxu0 0.0
    %1405 = vmatprep.subr.mxu0 0.0
    %1406 = vmatpush1.msra.mxu0 0.0
    %1407 = vmatprep.subr.mxu0 0.0
    %1408 = vmatpush1.msra.mxu0 0.0
    %1409 = vmatprep.subr.mxu0 0.0
    %1410 = vmatpush1.msra.mxu0 0.0
    %1411 = vmatprep.subr.mxu0 0.0
    %1412 = vmatpush1.msra.mxu0 0.0
    %1413 = vmatprep.subr.mxu0 0.0
    %1414 = vmatpush1.msra.mxu0 0.0
    %1415 = vmatprep.subr.mxu0 0.0
    %1416 = vmatpush1.msra.mxu0 0.0
    %1417 = vmatprep.subr.mxu0 0.0
    %1418 = vmatpush1.msra.mxu0 %v1365
    %1419 = vmatprep.subr.mxu0 0.0
    %1420 = vmatpush2.msra.mxu0 0.0
    %1421 = vmatprep.subr.mxu0 0.0
    %1422 = vmatpush2.msra.mxu0 0.0
    %1423 = vmatprep.subr.mxu0 0.0
    %1424 = vmatpush2.msra.mxu0 0.0
    %1425 = vmatprep.subr.mxu0 0.0
    %1426 = vmatpush2.msra.mxu0 0.0
    %1427 = vmatprep.subr.mxu0 0.0
    %1428 = vmatpush2.msra.mxu0 0.0
    %1429 = vmatprep.subr.mxu0 0.0
    %1430 = vmatpush2.msra.mxu0 0.0
    %1431 = vmatprep.subr.mxu0 0.0
    %1432 = vmatpush2.msra.mxu0 0.0
    %1433 = vmatprep.subr.mxu0 0.0
    %1434 = vmatpush2.msra.mxu0 0.0
    %1435 = vmatprep.subr.mxu0 0.0
    %1436 = vmatpush2.msra.mxu0 0.0
    %1437 = vmatprep.subr.mxu0 0.0
    %1438 = vmatpush2.msra.mxu0 0.0
    %1439 = vmatprep.subr.mxu0 0.0
    %1440 = vmatpush2.msra.mxu0 0.0
    %1441 = vmatprep.subr.mxu0 0.0
    %1442 = vmatpush2.msra.mxu0 0.0
    %1443 = vmatprep.subr.mxu0 0.0
    %1444 = vmatpush2.msra.mxu0 0.0
    %1445 = vmatprep.subr.mxu0 0.0
    %1446 = vmatpush2.msra.mxu0 0.0
    %1447 = vmatprep.subr.mxu0 0.0
    %1448 = vmatpush2.msra.mxu0 0.0
    %1449 = vmatprep.subr.mxu0 0.0
    %1450 = vmatpush2.msra.mxu0 0.0
    %1451 = vmatprep.mubr.f32.mxu0 0.0
    %1452 = vmatmul.mubr.f32.gmra.mxu0 %v1367
    %v1453 = vpop.f32.mrf.mxu0
    %v1454 = vadd.f32 0.0, %v1453
    %v1455 = vpop.f32.mrf.mxu0
    %1456 = vmatprep.mubr.f32.mxu0 0.0
    %1457 = vmatmul.mubr.f32.gmra.mxu0 %v1370
    %v1458 = vpop.f32.mrf.mxu0
    %v1459 = vadd.f32 0.0, %v1458
    %v1460 = vpop.f32.mrf.mxu0
    %1461 = vmatprep.mubr.f32.mxu0 0.0
    %1462 = vmatmul.mubr.f32.gmra.mxu0 %v1373
    %v1463 = vpop.f32.mrf.mxu0
    %v1464 = vadd.f32 0.0, %v1463
    %v1465 = vpop.f32.mrf.mxu0
    %1466 = vmatprep.mubr.f32.mxu0 0.0
    %1467 = vmatmul.mubr.f32.gmra.mxu0 %v1376
    %v1468 = vpop.f32.mrf.mxu0
    %v1469 = vadd.f32 0.0, %v1468
    %v1470 = vpop.f32.mrf.mxu0
    %1471 = vmatprep.mubr.f32.mxu0 0.0
    %1472 = vmatmul.mubr.f32.gmra.mxu0 %v1379
    %v1473 = vpop.f32.mrf.mxu0
    %v1474 = vadd.f32 0.0, %v1473
    %v1475 = vpop.f32.mrf.mxu0
    %1476 = vmatprep.mubr.f32.mxu0 0.0
    %1477 = vmatmul.mubr.f32.gmra.mxu0 %v1382
    %v1478 = vpop.f32.mrf.mxu0
    %v1479 = vadd.f32 0.0, %v1478
    %v1480 = vpop.f32.mrf.mxu0
    %1481 = vmatprep.mubr.f32.mxu0 0.0
    %1482 = vmatmul.mubr.f32.gmra.mxu0 %v1385
    %v1483 = vpop.f32.mrf.mxu0
    %v1484 = vadd.f32 0.0, %v1483
    %v1485 = vpop.f32.mrf.mxu0
    %1486 = vdwg.mxu0
    %v1487 = vadd.f32 %v1350, %v1454
    %v1488 = vadd.f32 %v1351, %v1459
    %v1489 = vadd.f32 %v1352, %v1464
    %v1490 = vadd.f32 %v1353, %v1469
    %v1491 = vadd.f32 %v1354, %v1474
    %v1492 = vadd.f32 %v1355, %v1479
    %v1493 = vadd.f32 %v1356, %v1484
    %v1494 = vld [vmem:[#allocation2 + $0x5] sm:$0xff]
    %v1495 = vld [vmem:[#allocation2 + $0xd] sm:$0xff]
    %v1496 = vld [vmem:[#allocation2 + $0x15] sm:$0xff]
    %v1497 = vld [vmem:[#allocation2 + $0x1d] sm:$0xff]
    %v1498 = vld [vmem:[#allocation2 + $0x25] sm:$0xff]
    %v1499 = vld [vmem:[#allocation2 + $0x2d] sm:$0xff]
    %v1500 = vld [vmem:[#allocation2 + $0x35] sm:$0x3]
    %s1501 = scalar_lea.vmem %s3, 64
    %v1502 = vld [vmem:[%s1501] sm:$0xff]
    %v1504 = vsel %vm387, %v1494, 0
    %v1507 = vsel %vm387, %v1495, 0
    %v1510 = vsel %vm387, %v1496, 0
    %v1513 = vsel %vm387, %v1497, 0
    %v1516 = vsel %vm387, %v1498, 0
    %v1519 = vsel %vm387, %v1499, 0
    %v1522 = vsel %vm387, %v1500, 0
    %1524 = vmatprep.subr.mxu0 0.0
    %1525 = vmatpush1.msra.mxu0 0.0
    %1526 = vmatprep.subr.mxu0 0.0
    %1527 = vmatpush1.msra.mxu0 0.0
    %1528 = vmatprep.subr.mxu0 0.0
    %1529 = vmatpush1.msra.mxu0 0.0
    %1530 = vmatprep.subr.mxu0 0.0
    %1531 = vmatpush1.msra.mxu0 0.0
    %1532 = vmatprep.subr.mxu0 0.0
    %1533 = vmatpush1.msra.mxu0 0.0
    %1534 = vmatprep.subr.mxu0 0.0
    %1535 = vmatpush1.msra.mxu0 0.0
    %1536 = vmatprep.subr.mxu0 0.0
    %1537 = vmatpush1.msra.mxu0 0.0
    %1538 = vmatprep.subr.mxu0 0.0
    %1539 = vmatpush1.msra.mxu0 0.0
    %1540 = vmatprep.subr.mxu0 0.0
    %1541 = vmatpush1.msra.mxu0 0.0
    %1542 = vmatprep.subr.mxu0 0.0
    %1543 = vmatpush1.msra.mxu0 0.0
    %1544 = vmatprep.subr.mxu0 0.0
    %1545 = vmatpush1.msra.mxu0 0.0
    %1546 = vmatprep.subr.mxu0 0.0
    %1547 = vmatpush1.msra.mxu0 0.0
    %1548 = vmatprep.subr.mxu0 0.0
    %1549 = vmatpush1.msra.mxu0 0.0
    %1550 = vmatprep.subr.mxu0 0.0
    %1551 = vmatpush1.msra.mxu0 0.0
    %1552 = vmatprep.subr.mxu0 0.0
    %1553 = vmatpush1.msra.mxu0 0.0
    %1554 = vmatprep.subr.mxu0 0.0
    %1555 = vmatpush1.msra.mxu0 %v1502
    %1556 = vmatprep.subr.mxu0 0.0
    %1557 = vmatpush2.msra.mxu0 0.0
    %1558 = vmatprep.subr.mxu0 0.0
    %1559 = vmatpush2.msra.mxu0 0.0
    %1560 = vmatprep.subr.mxu0 0.0
    %1561 = vmatpush2.msra.mxu0 0.0
    %1562 = vmatprep.subr.mxu0 0.0
    %1563 = vmatpush2.msra.mxu0 0.0
    %1564 = vmatprep.subr.mxu0 0.0
    %1565 = vmatpush2.msra.mxu0 0.0
    %1566 = vmatprep.subr.mxu0 0.0
    %1567 = vmatpush2.msra.mxu0 0.0
    %1568 = vmatprep.subr.mxu0 0.0
    %1569 = vmatpush2.msra.mxu0 0.0
    %1570 = vmatprep.subr.mxu0 0.0
    %1571 = vmatpush2.msra.mxu0 0.0
    %1572 = vmatprep.subr.mxu0 0.0
    %1573 = vmatpush2.msra.mxu0 0.0
    %1574 = vmatprep.subr.mxu0 0.0
    %1575 = vmatpush2.msra.mxu0 0.0
    %1576 = vmatprep.subr.mxu0 0.0
    %1577 = vmatpush2.msra.mxu0 0.0
    %1578 = vmatprep.subr.mxu0 0.0
    %1579 = vmatpush2.msra.mxu0 0.0
    %1580 = vmatprep.subr.mxu0 0.0
    %1581 = vmatpush2.msra.mxu0 0.0
    %1582 = vmatprep.subr.mxu0 0.0
    %1583 = vmatpush2.msra.mxu0 0.0
    %1584 = vmatprep.subr.mxu0 0.0
    %1585 = vmatpush2.msra.mxu0 0.0
    %1586 = vmatprep.subr.mxu0 0.0
    %1587 = vmatpush2.msra.mxu0 0.0
    %1588 = vmatprep.mubr.f32.mxu0 0.0
    %1589 = vmatmul.mubr.f32.gmra.mxu0 %v1504
    %v1590 = vpop.f32.mrf.mxu0
    %v1591 = vadd.f32 0.0, %v1590
    %v1592 = vpop.f32.mrf.mxu0
    %1593 = vmatprep.mubr.f32.mxu0 0.0
    %1594 = vmatmul.mubr.f32.gmra.mxu0 %v1507
    %v1595 = vpop.f32.mrf.mxu0
    %v1596 = vadd.f32 0.0, %v1595
    %v1597 = vpop.f32.mrf.mxu0
    %1598 = vmatprep.mubr.f32.mxu0 0.0
    %1599 = vmatmul.mubr.f32.gmra.mxu0 %v1510
    %v1600 = vpop.f32.mrf.mxu0
    %v1601 = vadd.f32 0.0, %v1600
    %v1602 = vpop.f32.mrf.mxu0
    %1603 = vmatprep.mubr.f32.mxu0 0.0
    %1604 = vmatmul.mubr.f32.gmra.mxu0 %v1513
    %v1605 = vpop.f32.mrf.mxu0
    %v1606 = vadd.f32 0.0, %v1605
    %v1607 = vpop.f32.mrf.mxu0
    %1608 = vmatprep.mubr.f32.mxu0 0.0
    %1609 = vmatmul.mubr.f32.gmra.mxu0 %v1516
    %v1610 = vpop.f32.mrf.mxu0
    %v1611 = vadd.f32 0.0, %v1610
    %v1612 = vpop.f32.mrf.mxu0
    %1613 = vmatprep.mubr.f32.mxu0 0.0
    %1614 = vmatmul.mubr.f32.gmra.mxu0 %v1519
    %v1615 = vpop.f32.mrf.mxu0
    %v1616 = vadd.f32 0.0, %v1615
    %v1617 = vpop.f32.mrf.mxu0
    %1618 = vmatprep.mubr.f32.mxu0 0.0
    %1619 = vmatmul.mubr.f32.gmra.mxu0 %v1522
    %v1620 = vpop.f32.mrf.mxu0
    %v1621 = vadd.f32 0.0, %v1620
    %v1622 = vpop.f32.mrf.mxu0
    %1623 = vdwg.mxu0
    %v1624 = vadd.f32 %v1487, %v1591
    %v1625 = vadd.f32 %v1488, %v1596
    %v1626 = vadd.f32 %v1489, %v1601
    %v1627 = vadd.f32 %v1490, %v1606
    %v1628 = vadd.f32 %v1491, %v1611
    %v1629 = vadd.f32 %v1492, %v1616
    %v1630 = vadd.f32 %v1493, %v1621
    %v1631 = vld [vmem:[#allocation2 + $0x37] sm:$0xff]
    %v1632 = vld [vmem:[#allocation2 + $0x3f] sm:$0xff]
    %v1633 = vld [vmem:[#allocation2 + $0x47] sm:$0xff]
    %v1634 = vld [vmem:[#allocation2 + $0x4f] sm:$0xff]
    %v1635 = vld [vmem:[#allocation2 + $0x57] sm:$0xff]
    %v1636 = vld [vmem:[#allocation2 + $0x5f] sm:$0xff]
    %v1637 = vld [vmem:[#allocation2 + $0x67] sm:$0x3]
    %s1638 = scalar_lea.vmem %s3, 72
    %v1639 = vld [vmem:[%s1638] sm:$0xff]
    %v1641 = vsel %vm387, %v1631, 0
    %v1644 = vsel %vm387, %v1632, 0
    %v1647 = vsel %vm387, %v1633, 0
    %v1650 = vsel %vm387, %v1634, 0
    %v1653 = vsel %vm387, %v1635, 0
    %v1656 = vsel %vm387, %v1636, 0
    %v1659 = vsel %vm387, %v1637, 0
    %1661 = vmatprep.subr.mxu0 0.0
    %1662 = vmatpush1.msra.mxu0 0.0
    %1663 = vmatprep.subr.mxu0 0.0
    %1664 = vmatpush1.msra.mxu0 0.0
    %1665 = vmatprep.subr.mxu0 0.0
    %1666 = vmatpush1.msra.mxu0 0.0
    %1667 = vmatprep.subr.mxu0 0.0
    %1668 = vmatpush1.msra.mxu0 0.0
    %1669 = vmatprep.subr.mxu0 0.0
    %1670 = vmatpush1.msra.mxu0 0.0
    %1671 = vmatprep.subr.mxu0 0.0
    %1672 = vmatpush1.msra.mxu0 0.0
    %1673 = vmatprep.subr.mxu0 0.0
    %1674 = vmatpush1.msra.mxu0 0.0
    %1675 = vmatprep.subr.mxu0 0.0
    %1676 = vmatpush1.msra.mxu0 0.0
    %1677 = vmatprep.subr.mxu0 0.0
    %1678 = vmatpush1.msra.mxu0 0.0
    %1679 = vmatprep.subr.mxu0 0.0
    %1680 = vmatpush1.msra.mxu0 0.0
    %1681 = vmatprep.subr.mxu0 0.0
    %1682 = vmatpush1.msra.mxu0 0.0
    %1683 = vmatprep.subr.mxu0 0.0
    %1684 = vmatpush1.msra.mxu0 0.0
    %1685 = vmatprep.subr.mxu0 0.0
    %1686 = vmatpush1.msra.mxu0 0.0
    %1687 = vmatprep.subr.mxu0 0.0
    %1688 = vmatpush1.msra.mxu0 0.0
    %1689 = vmatprep.subr.mxu0 0.0
    %1690 = vmatpush1.msra.mxu0 0.0
    %1691 = vmatprep.subr.mxu0 0.0
    %1692 = vmatpush1.msra.mxu0 %v1639
    %1693 = vmatprep.subr.mxu0 0.0
    %1694 = vmatpush2.msra.mxu0 0.0
    %1695 = vmatprep.subr.mxu0 0.0
    %1696 = vmatpush2.msra.mxu0 0.0
    %1697 = vmatprep.subr.mxu0 0.0
    %1698 = vmatpush2.msra.mxu0 0.0
    %1699 = vmatprep.subr.mxu0 0.0
    %1700 = vmatpush2.msra.mxu0 0.0
    %1701 = vmatprep.subr.mxu0 0.0
    %1702 = vmatpush2.msra.mxu0 0.0
    %1703 = vmatprep.subr.mxu0 0.0
    %1704 = vmatpush2.msra.mxu0 0.0
    %1705 = vmatprep.subr.mxu0 0.0
    %1706 = vmatpush2.msra.mxu0 0.0
    %1707 = vmatprep.subr.mxu0 0.0
    %1708 = vmatpush2.msra.mxu0 0.0
    %1709 = vmatprep.subr.mxu0 0.0
    %1710 = vmatpush2.msra.mxu0 0.0
    %1711 = vmatprep.subr.mxu0 0.0
    %1712 = vmatpush2.msra.mxu0 0.0
    %1713 = vmatprep.subr.mxu0 0.0
    %1714 = vmatpush2.msra.mxu0 0.0
    %1715 = vmatprep.subr.mxu0 0.0
    %1716 = vmatpush2.msra.mxu0 0.0
    %1717 = vmatprep.subr.mxu0 0.0
    %1718 = vmatpush2.msra.mxu0 0.0
    %1719 = vmatprep.subr.mxu0 0.0
    %1720 = vmatpush2.msra.mxu0 0.0
    %1721 = vmatprep.subr.mxu0 0.0
    %1722 = vmatpush2.msra.mxu0 0.0
    %1723 = vmatprep.subr.mxu0 0.0
    %1724 = vmatpush2.msra.mxu0 0.0
    %1725 = vmatprep.mubr.f32.mxu0 0.0
    %1726 = vmatmul.mubr.f32.gmra.mxu0 %v1641
    %v1727 = vpop.f32.mrf.mxu0
    %v1728 = vadd.f32 0.0, %v1727
    %v1729 = vpop.f32.mrf.mxu0
    %1730 = vmatprep.mubr.f32.mxu0 0.0
    %1731 = vmatmul.mubr.f32.gmra.mxu0 %v1644
    %v1732 = vpop.f32.mrf.mxu0
    %v1733 = vadd.f32 0.0, %v1732
    %v1734 = vpop.f32.mrf.mxu0
    %1735 = vmatprep.mubr.f32.mxu0 0.0
    %1736 = vmatmul.mubr.f32.gmra.mxu0 %v1647
    %v1737 = vpop.f32.mrf.mxu0
    %v1738 = vadd.f32 0.0, %v1737
    %v1739 = vpop.f32.mrf.mxu0
    %1740 = vmatprep.mubr.f32.mxu0 0.0
    %1741 = vmatmul.mubr.f32.gmra.mxu0 %v1650
    %v1742 = vpop.f32.mrf.mxu0
    %v1743 = vadd.f32 0.0, %v1742
    %v1744 = vpop.f32.mrf.mxu0
    %1745 = vmatprep.mubr.f32.mxu0 0.0
    %1746 = vmatmul.mubr.f32.gmra.mxu0 %v1653
    %v1747 = vpop.f32.mrf.mxu0
    %v1748 = vadd.f32 0.0, %v1747
    %v1749 = vpop.f32.mrf.mxu0
    %1750 = vmatprep.mubr.f32.mxu0 0.0
    %1751 = vmatmul.mubr.f32.gmra.mxu0 %v1656
    %v1752 = vpop.f32.mrf.mxu0
    %v1753 = vadd.f32 0.0, %v1752
    %v1754 = vpop.f32.mrf.mxu0
    %1755 = vmatprep.mubr.f32.mxu0 0.0
    %1756 = vmatmul.mubr.f32.gmra.mxu0 %v1659
    %v1757 = vpop.f32.mrf.mxu0
    %v1758 = vadd.f32 0.0, %v1757
    %v1759 = vpop.f32.mrf.mxu0
    %1760 = vdwg.mxu0
    %v1761 = vadd.f32 %v1624, %v1728
    %v1762 = vadd.f32 %v1625, %v1733
    %v1763 = vadd.f32 %v1626, %v1738
    %v1764 = vadd.f32 %v1627, %v1743
    %v1765 = vadd.f32 %v1628, %v1748
    %v1766 = vadd.f32 %v1629, %v1753
    %v1767 = vadd.f32 %v1630, %v1758
    %v1768 = vld [vmem:[#allocation2 + $0x6] sm:$0xff]
    %v1769 = vld [vmem:[#allocation2 + $0xe] sm:$0xff]
    %v1770 = vld [vmem:[#allocation2 + $0x16] sm:$0xff]
    %v1771 = vld [vmem:[#allocation2 + $0x1e] sm:$0xff]
    %v1772 = vld [vmem:[#allocation2 + $0x26] sm:$0xff]
    %v1773 = vld [vmem:[#allocation2 + $0x2e] sm:$0xff]
    %v1774 = vld [vmem:[#allocation2 + $0x36] sm:$0x3]
    %s1775 = scalar_lea.vmem %s3, 80
    %v1776 = vld [vmem:[%s1775] sm:$0xff]
    %v1778 = vsel %vm387, %v1768, 0
    %v1781 = vsel %vm387, %v1769, 0
    %v1784 = vsel %vm387, %v1770, 0
    %v1787 = vsel %vm387, %v1771, 0
    %v1790 = vsel %vm387, %v1772, 0
    %v1793 = vsel %vm387, %v1773, 0
    %v1796 = vsel %vm387, %v1774, 0
    %1798 = vmatprep.subr.mxu0 0.0
    %1799 = vmatpush1.msra.mxu0 0.0
    %1800 = vmatprep.subr.mxu0 0.0
    %1801 = vmatpush1.msra.mxu0 0.0
    %1802 = vmatprep.subr.mxu0 0.0
    %1803 = vmatpush1.msra.mxu0 0.0
    %1804 = vmatprep.subr.mxu0 0.0
    %1805 = vmatpush1.msra.mxu0 0.0
    %1806 = vmatprep.subr.mxu0 0.0
    %1807 = vmatpush1.msra.mxu0 0.0
    %1808 = vmatprep.subr.mxu0 0.0
    %1809 = vmatpush1.msra.mxu0 0.0
    %1810 = vmatprep.subr.mxu0 0.0
    %1811 = vmatpush1.msra.mxu0 0.0
    %1812 = vmatprep.subr.mxu0 0.0
    %1813 = vmatpush1.msra.mxu0 0.0
    %1814 = vmatprep.subr.mxu0 0.0
    %1815 = vmatpush1.msra.mxu0 0.0
    %1816 = vmatprep.subr.mxu0 0.0
    %1817 = vmatpush1.msra.mxu0 0.0
    %1818 = vmatprep.subr.mxu0 0.0
    %1819 = vmatpush1.msra.mxu0 0.0
    %1820 = vmatprep.subr.mxu0 0.0
    %1821 = vmatpush1.msra.mxu0 0.0
    %1822 = vmatprep.subr.mxu0 0.0
    %1823 = vmatpush1.msra.mxu0 0.0
    %1824 = vmatprep.subr.mxu0 0.0
    %1825 = vmatpush1.msra.mxu0 0.0
    %1826 = vmatprep.subr.mxu0 0.0
    %1827 = vmatpush1.msra.mxu0 0.0
    %1828 = vmatprep.subr.mxu0 0.0
    %1829 = vmatpush1.msra.mxu0 %v1776
    %1830 = vmatprep.subr.mxu0 0.0
    %1831 = vmatpush2.msra.mxu0 0.0
    %1832 = vmatprep.subr.mxu0 0.0
    %1833 = vmatpush2.msra.mxu0 0.0
    %1834 = vmatprep.subr.mxu0 0.0
    %1835 = vmatpush2.msra.mxu0 0.0
    %1836 = vmatprep.subr.mxu0 0.0
    %1837 = vmatpush2.msra.mxu0 0.0
    %1838 = vmatprep.subr.mxu0 0.0
    %1839 = vmatpush2.msra.mxu0 0.0
    %1840 = vmatprep.subr.mxu0 0.0
    %1841 = vmatpush2.msra.mxu0 0.0
    %1842 = vmatprep.subr.mxu0 0.0
    %1843 = vmatpush2.msra.mxu0 0.0
    %1844 = vmatprep.subr.mxu0 0.0
    %1845 = vmatpush2.msra.mxu0 0.0
    %1846 = vmatprep.subr.mxu0 0.0
    %1847 = vmatpush2.msra.mxu0 0.0
    %1848 = vmatprep.subr.mxu0 0.0
    %1849 = vmatpush2.msra.mxu0 0.0
    %1850 = vmatprep.subr.mxu0 0.0
    %1851 = vmatpush2.msra.mxu0 0.0
    %1852 = vmatprep.subr.mxu0 0.0
    %1853 = vmatpush2.msra.mxu0 0.0
    %1854 = vmatprep.subr.mxu0 0.0
    %1855 = vmatpush2.msra.mxu0 0.0
    %1856 = vmatprep.subr.mxu0 0.0
    %1857 = vmatpush2.msra.mxu0 0.0
    %1858 = vmatprep.subr.mxu0 0.0
    %1859 = vmatpush2.msra.mxu0 0.0
    %1860 = vmatprep.subr.mxu0 0.0
    %1861 = vmatpush2.msra.mxu0 0.0
    %1862 = vmatprep.mubr.f32.mxu0 0.0
    %1863 = vmatmul.mubr.f32.gmra.mxu0 %v1778
    %v1864 = vpop.f32.mrf.mxu0
    %v1865 = vadd.f32 0.0, %v1864
    %v1866 = vpop.f32.mrf.mxu0
    %1867 = vmatprep.mubr.f32.mxu0 0.0
    %1868 = vmatmul.mubr.f32.gmra.mxu0 %v1781
    %v1869 = vpop.f32.mrf.mxu0
    %v1870 = vadd.f32 0.0, %v1869
    %v1871 = vpop.f32.mrf.mxu0
    %1872 = vmatprep.mubr.f32.mxu0 0.0
    %1873 = vmatmul.mubr.f32.gmra.mxu0 %v1784
    %v1874 = vpop.f32.mrf.mxu0
    %v1875 = vadd.f32 0.0, %v1874
    %v1876 = vpop.f32.mrf.mxu0
    %1877 = vmatprep.mubr.f32.mxu0 0.0
    %1878 = vmatmul.mubr.f32.gmra.mxu0 %v1787
    %v1879 = vpop.f32.mrf.mxu0
    %v1880 = vadd.f32 0.0, %v1879
    %v1881 = vpop.f32.mrf.mxu0
    %1882 = vmatprep.mubr.f32.mxu0 0.0
    %1883 = vmatmul.mubr.f32.gmra.mxu0 %v1790
    %v1884 = vpop.f32.mrf.mxu0
    %v1885 = vadd.f32 0.0, %v1884
    %v1886 = vpop.f32.mrf.mxu0
    %1887 = vmatprep.mubr.f32.mxu0 0.0
    %1888 = vmatmul.mubr.f32.gmra.mxu0 %v1793
    %v1889 = vpop.f32.mrf.mxu0
    %v1890 = vadd.f32 0.0, %v1889
    %v1891 = vpop.f32.mrf.mxu0
    %1892 = vmatprep.mubr.f32.mxu0 0.0
    %1893 = vmatmul.mubr.f32.gmra.mxu0 %v1796
    %v1894 = vpop.f32.mrf.mxu0
    %v1895 = vadd.f32 0.0, %v1894
    %v1896 = vpop.f32.mrf.mxu0
    %1897 = vdwg.mxu0
    %v1898 = vadd.f32 %v1761, %v1865
    %v1899 = vadd.f32 %v1762, %v1870
    %v1900 = vadd.f32 %v1763, %v1875
    %v1901 = vadd.f32 %v1764, %v1880
    %v1902 = vadd.f32 %v1765, %v1885
    %v1903 = vadd.f32 %v1766, %v1890
    %v1904 = vadd.f32 %v1767, %v1895
    %v1905 = vld [vmem:[#allocation2 + $0x38] sm:$0xff]
    %v1906 = vld [vmem:[#allocation2 + $0x40] sm:$0xff]
    %v1907 = vld [vmem:[#allocation2 + $0x48] sm:$0xff]
    %v1908 = vld [vmem:[#allocation2 + $0x50] sm:$0xff]
    %v1909 = vld [vmem:[#allocation2 + $0x58] sm:$0xff]
    %v1910 = vld [vmem:[#allocation2 + $0x60] sm:$0xff]
    %v1911 = vld [vmem:[#allocation2 + $0x68] sm:$0x3]
    %s1912 = scalar_lea.vmem %s3, 88
    %v1913 = vld [vmem:[%s1912] sm:$0xff]
    %v1915 = vsel %vm387, %v1905, 0
    %v1918 = vsel %vm387, %v1906, 0
    %v1921 = vsel %vm387, %v1907, 0
    %v1924 = vsel %vm387, %v1908, 0
    %v1927 = vsel %vm387, %v1909, 0
    %v1930 = vsel %vm387, %v1910, 0
    %v1933 = vsel %vm387, %v1911, 0
    %1935 = vmatprep.subr.mxu0 0.0
    %1936 = vmatpush1.msra.mxu0 0.0
    %1937 = vmatprep.subr.mxu0 0.0
    %1938 = vmatpush1.msra.mxu0 0.0
    %1939 = vmatprep.subr.mxu0 0.0
    %1940 = vmatpush1.msra.mxu0 0.0
    %1941 = vmatprep.subr.mxu0 0.0
    %1942 = vmatpush1.msra.mxu0 0.0
    %1943 = vmatprep.subr.mxu0 0.0
    %1944 = vmatpush1.msra.mxu0 0.0
    %1945 = vmatprep.subr.mxu0 0.0
    %1946 = vmatpush1.msra.mxu0 0.0
    %1947 = vmatprep.subr.mxu0 0.0
    %1948 = vmatpush1.msra.mxu0 0.0
    %1949 = vmatprep.subr.mxu0 0.0
    %1950 = vmatpush1.msra.mxu0 0.0
    %1951 = vmatprep.subr.mxu0 0.0
    %1952 = vmatpush1.msra.mxu0 0.0
    %1953 = vmatprep.subr.mxu0 0.0
    %1954 = vmatpush1.msra.mxu0 0.0
    %1955 = vmatprep.subr.mxu0 0.0
    %1956 = vmatpush1.msra.mxu0 0.0
    %1957 = vmatprep.subr.mxu0 0.0
    %1958 = vmatpush1.msra.mxu0 0.0
    %1959 = vmatprep.subr.mxu0 0.0
    %1960 = vmatpush1.msra.mxu0 0.0
    %1961 = vmatprep.subr.mxu0 0.0
    %1962 = vmatpush1.msra.mxu0 0.0
    %1963 = vmatprep.subr.mxu0 0.0
    %1964 = vmatpush1.msra.mxu0 0.0
    %1965 = vmatprep.subr.mxu0 0.0
    %1966 = vmatpush1.msra.mxu0 %v1913
    %1967 = vmatprep.subr.mxu0 0.0
    %1968 = vmatpush2.msra.mxu0 0.0
    %1969 = vmatprep.subr.mxu0 0.0
    %1970 = vmatpush2.msra.mxu0 0.0
    %1971 = vmatprep.subr.mxu0 0.0
    %1972 = vmatpush2.msra.mxu0 0.0
    %1973 = vmatprep.subr.mxu0 0.0
    %1974 = vmatpush2.msra.mxu0 0.0
    %1975 = vmatprep.subr.mxu0 0.0
    %1976 = vmatpush2.msra.mxu0 0.0
    %1977 = vmatprep.subr.mxu0 0.0
    %1978 = vmatpush2.msra.mxu0 0.0
    %1979 = vmatprep.subr.mxu0 0.0
    %1980 = vmatpush2.msra.mxu0 0.0
    %1981 = vmatprep.subr.mxu0 0.0
    %1982 = vmatpush2.msra.mxu0 0.0
    %1983 = vmatprep.subr.mxu0 0.0
    %1984 = vmatpush2.msra.mxu0 0.0
    %1985 = vmatprep.subr.mxu0 0.0
    %1986 = vmatpush2.msra.mxu0 0.0
    %1987 = vmatprep.subr.mxu0 0.0
    %1988 = vmatpush2.msra.mxu0 0.0
    %1989 = vmatprep.subr.mxu0 0.0
    %1990 = vmatpush2.msra.mxu0 0.0
    %1991 = vmatprep.subr.mxu0 0.0
    %1992 = vmatpush2.msra.mxu0 0.0
    %1993 = vmatprep.subr.mxu0 0.0
    %1994 = vmatpush2.msra.mxu0 0.0
    %1995 = vmatprep.subr.mxu0 0.0
    %1996 = vmatpush2.msra.mxu0 0.0
    %1997 = vmatprep.subr.mxu0 0.0
    %1998 = vmatpush2.msra.mxu0 0.0
    %1999 = vmatprep.mubr.f32.mxu0 0.0
    %2000 = vmatmul.mubr.f32.gmra.mxu0 %v1915
    %v2001 = vpop.f32.mrf.mxu0
    %v2002 = vadd.f32 0.0, %v2001
    %v2003 = vpop.f32.mrf.mxu0
    %2004 = vmatprep.mubr.f32.mxu0 0.0
    %2005 = vmatmul.mubr.f32.gmra.mxu0 %v1918
    %v2006 = vpop.f32.mrf.mxu0
    %v2007 = vadd.f32 0.0, %v2006
    %v2008 = vpop.f32.mrf.mxu0
    %2009 = vmatprep.mubr.f32.mxu0 0.0
    %2010 = vmatmul.mubr.f32.gmra.mxu0 %v1921
    %v2011 = vpop.f32.mrf.mxu0
    %v2012 = vadd.f32 0.0, %v2011
    %v2013 = vpop.f32.mrf.mxu0
    %2014 = vmatprep.mubr.f32.mxu0 0.0
    %2015 = vmatmul.mubr.f32.gmra.mxu0 %v1924
    %v2016 = vpop.f32.mrf.mxu0
    %v2017 = vadd.f32 0.0, %v2016
    %v2018 = vpop.f32.mrf.mxu0
    %2019 = vmatprep.mubr.f32.mxu0 0.0
    %2020 = vmatmul.mubr.f32.gmra.mxu0 %v1927
    %v2021 = vpop.f32.mrf.mxu0
    %v2022 = vadd.f32 0.0, %v2021
    %v2023 = vpop.f32.mrf.mxu0
    %2024 = vmatprep.mubr.f32.mxu0 0.0
    %2025 = vmatmul.mubr.f32.gmra.mxu0 %v1930
    %v2026 = vpop.f32.mrf.mxu0
    %v2027 = vadd.f32 0.0, %v2026
    %v2028 = vpop.f32.mrf.mxu0
    %2029 = vmatprep.mubr.f32.mxu0 0.0
    %2030 = vmatmul.mubr.f32.gmra.mxu0 %v1933
    %v2031 = vpop.f32.mrf.mxu0
    %v2032 = vadd.f32 0.0, %v2031
    %v2033 = vpop.f32.mrf.mxu0
    %2034 = vdwg.mxu0
    %v2035 = vadd.f32 %v1898, %v2002
    %v2036 = vadd.f32 %v1899, %v2007
    %v2037 = vadd.f32 %v1900, %v2012
    %v2038 = vadd.f32 %v1901, %v2017
    %v2039 = vadd.f32 %v1902, %v2022
    %v2040 = vadd.f32 %v1903, %v2027
    %v2041 = vadd.f32 %v1904, %v2032
    %v2042 = vld [vmem:[#allocation2 + $0x69] sm:$0xff]
    %v2043 = vld [vmem:[#allocation2 + $0x71] sm:$0xff]
    %v2044 = vld [vmem:[#allocation2 + $0x79] sm:$0xff]
    %v2045 = vld [vmem:[#allocation2 + $0x81] sm:$0xff]
    %v2046 = vld [vmem:[#allocation2 + $0x89] sm:$0xff]
    %v2047 = vld [vmem:[#allocation2 + $0x91] sm:$0xff]
    %v2048 = vld [vmem:[#allocation2 + $0x99] sm:$0x3]
    %s2049 = scalar_lea.vmem %s3, 96
    %v2050 = vld [vmem:[%s2049] sm:$0xff]
    %v2052 = vsel %vm387, %v2042, 0
    %v2055 = vsel %vm387, %v2043, 0
    %v2058 = vsel %vm387, %v2044, 0
    %v2061 = vsel %vm387, %v2045, 0
    %v2064 = vsel %vm387, %v2046, 0
    %v2067 = vsel %vm387, %v2047, 0
    %v2070 = vsel %vm387, %v2048, 0
    %2072 = vmatprep.subr.mxu0 0.0
    %2073 = vmatpush1.msra.mxu0 0.0
    %2074 = vmatprep.subr.mxu0 0.0
    %2075 = vmatpush1.msra.mxu0 0.0
    %2076 = vmatprep.subr.mxu0 0.0
    %2077 = vmatpush1.msra.mxu0 0.0
    %2078 = vmatprep.subr.mxu0 0.0
    %2079 = vmatpush1.msra.mxu0 0.0
    %2080 = vmatprep.subr.mxu0 0.0
    %2081 = vmatpush1.msra.mxu0 0.0
    %2082 = vmatprep.subr.mxu0 0.0
    %2083 = vmatpush1.msra.mxu0 0.0
    %2084 = vmatprep.subr.mxu0 0.0
    %2085 = vmatpush1.msra.mxu0 0.0
    %2086 = vmatprep.subr.mxu0 0.0
    %2087 = vmatpush1.msra.mxu0 0.0
    %2088 = vmatprep.subr.mxu0 0.0
    %2089 = vmatpush1.msra.mxu0 0.0
    %2090 = vmatprep.subr.mxu0 0.0
    %2091 = vmatpush1.msra.mxu0 0.0
    %2092 = vmatprep.subr.mxu0 0.0
    %2093 = vmatpush1.msra.mxu0 0.0
    %2094 = vmatprep.subr.mxu0 0.0
    %2095 = vmatpush1.msra.mxu0 0.0
    %2096 = vmatprep.subr.mxu0 0.0
    %2097 = vmatpush1.msra.mxu0 0.0
    %2098 = vmatprep.subr.mxu0 0.0
    %2099 = vmatpush1.msra.mxu0 0.0
    %2100 = vmatprep.subr.mxu0 0.0
    %2101 = vmatpush1.msra.mxu0 0.0
    %2102 = vmatprep.subr.mxu0 0.0
    %2103 = vmatpush1.msra.mxu0 %v2050
    %2104 = vmatprep.subr.mxu0 0.0
    %2105 = vmatpush2.msra.mxu0 0.0
    %2106 = vmatprep.subr.mxu0 0.0
    %2107 = vmatpush2.msra.mxu0 0.0
    %2108 = vmatprep.subr.mxu0 0.0
    %2109 = vmatpush2.msra.mxu0 0.0
    %2110 = vmatprep.subr.mxu0 0.0
    %2111 = vmatpush2.msra.mxu0 0.0
    %2112 = vmatprep.subr.mxu0 0.0
    %2113 = vmatpush2.msra.mxu0 0.0
    %2114 = vmatprep.subr.mxu0 0.0
    %2115 = vmatpush2.msra.mxu0 0.0
    %2116 = vmatprep.subr.mxu0 0.0
    %2117 = vmatpush2.msra.mxu0 0.0
    %2118 = vmatprep.subr.mxu0 0.0
    %2119 = vmatpush2.msra.mxu0 0.0
    %2120 = vmatprep.subr.mxu0 0.0
    %2121 = vmatpush2.msra.mxu0 0.0
    %2122 = vmatprep.subr.mxu0 0.0
    %2123 = vmatpush2.msra.mxu0 0.0
    %2124 = vmatprep.subr.mxu0 0.0
    %2125 = vmatpush2.msra.mxu0 0.0
    %2126 = vmatprep.subr.mxu0 0.0
    %2127 = vmatpush2.msra.mxu0 0.0
    %2128 = vmatprep.subr.mxu0 0.0
    %2129 = vmatpush2.msra.mxu0 0.0
    %2130 = vmatprep.subr.mxu0 0.0
    %2131 = vmatpush2.msra.mxu0 0.0
    %2132 = vmatprep.subr.mxu0 0.0
    %2133 = vmatpush2.msra.mxu0 0.0
    %2134 = vmatprep.subr.mxu0 0.0
    %2135 = vmatpush2.msra.mxu0 0.0
    %2136 = vmatprep.mubr.f32.mxu0 0.0
    %2137 = vmatmul.mubr.f32.gmra.mxu0 %v2052
    %v2138 = vpop.f32.mrf.mxu0
    %v2139 = vadd.f32 0.0, %v2138
    %v2140 = vpop.f32.mrf.mxu0
    %2141 = vmatprep.mubr.f32.mxu0 0.0
    %2142 = vmatmul.mubr.f32.gmra.mxu0 %v2055
    %v2143 = vpop.f32.mrf.mxu0
    %v2144 = vadd.f32 0.0, %v2143
    %v2145 = vpop.f32.mrf.mxu0
    %2146 = vmatprep.mubr.f32.mxu0 0.0
    %2147 = vmatmul.mubr.f32.gmra.mxu0 %v2058
    %v2148 = vpop.f32.mrf.mxu0
    %v2149 = vadd.f32 0.0, %v2148
    %v2150 = vpop.f32.mrf.mxu0
    %2151 = vmatprep.mubr.f32.mxu0 0.0
    %2152 = vmatmul.mubr.f32.gmra.mxu0 %v2061
    %v2153 = vpop.f32.mrf.mxu0
    %v2154 = vadd.f32 0.0, %v2153
    %v2155 = vpop.f32.mrf.mxu0
    %2156 = vmatprep.mubr.f32.mxu0 0.0
    %2157 = vmatmul.mubr.f32.gmra.mxu0 %v2064
    %v2158 = vpop.f32.mrf.mxu0
    %v2159 = vadd.f32 0.0, %v2158
    %v2160 = vpop.f32.mrf.mxu0
    %2161 = vmatprep.mubr.f32.mxu0 0.0
    %2162 = vmatmul.mubr.f32.gmra.mxu0 %v2067
    %v2163 = vpop.f32.mrf.mxu0
    %v2164 = vadd.f32 0.0, %v2163
    %v2165 = vpop.f32.mrf.mxu0
    %2166 = vmatprep.mubr.f32.mxu0 0.0
    %2167 = vmatmul.mubr.f32.gmra.mxu0 %v2070
    %v2168 = vpop.f32.mrf.mxu0
    %v2169 = vadd.f32 0.0, %v2168
    %v2170 = vpop.f32.mrf.mxu0
    %2171 = vdwg.mxu0
    %v2172 = vadd.f32 %v2035, %v2139
    %v2173 = vadd.f32 %v2036, %v2144
    %v2174 = vadd.f32 %v2037, %v2149
    %v2175 = vadd.f32 %v2038, %v2154
    %v2176 = vadd.f32 %v2039, %v2159
    %v2177 = vadd.f32 %v2040, %v2164
    %v2178 = vadd.f32 %v2041, %v2169
    %v2179 = vld [vmem:[#allocation2 + $0x9b] sm:$0xff]
    %v2180 = vld [vmem:[#allocation2 + $0xa3] sm:$0xff]
    %v2181 = vld [vmem:[#allocation2 + $0xab] sm:$0xff]
    %v2182 = vld [vmem:[#allocation2 + $0xb3] sm:$0xff]
    %v2183 = vld [vmem:[#allocation2 + $0xbb] sm:$0xff]
    %v2184 = vld [vmem:[#allocation2 + $0xc3] sm:$0xff]
    %v2185 = vld [vmem:[#allocation2 + $0xcb] sm:$0x3]
    %s2186 = scalar_lea.vmem %s3, 104
    %v2187 = vld [vmem:[%s2186] sm:$0xff]
    %v2189 = vsel %vm387, %v2179, 0
    %v2192 = vsel %vm387, %v2180, 0
    %v2195 = vsel %vm387, %v2181, 0
    %v2198 = vsel %vm387, %v2182, 0
    %v2201 = vsel %vm387, %v2183, 0
    %v2204 = vsel %vm387, %v2184, 0
    %v2207 = vsel %vm387, %v2185, 0
    %2209 = vmatprep.subr.mxu0 0.0
    %2210 = vmatpush1.msra.mxu0 0.0
    %2211 = vmatprep.subr.mxu0 0.0
    %2212 = vmatpush1.msra.mxu0 0.0
    %2213 = vmatprep.subr.mxu0 0.0
    %2214 = vmatpush1.msra.mxu0 0.0
    %2215 = vmatprep.subr.mxu0 0.0
    %2216 = vmatpush1.msra.mxu0 0.0
    %2217 = vmatprep.subr.mxu0 0.0
    %2218 = vmatpush1.msra.mxu0 0.0
    %2219 = vmatprep.subr.mxu0 0.0
    %2220 = vmatpush1.msra.mxu0 0.0
    %2221 = vmatprep.subr.mxu0 0.0
    %2222 = vmatpush1.msra.mxu0 0.0
    %2223 = vmatprep.subr.mxu0 0.0
    %2224 = vmatpush1.msra.mxu0 0.0
    %2225 = vmatprep.subr.mxu0 0.0
    %2226 = vmatpush1.msra.mxu0 0.0
    %2227 = vmatprep.subr.mxu0 0.0
    %2228 = vmatpush1.msra.mxu0 0.0
    %2229 = vmatprep.subr.mxu0 0.0
    %2230 = vmatpush1.msra.mxu0 0.0
    %2231 = vmatprep.subr.mxu0 0.0
    %2232 = vmatpush1.msra.mxu0 0.0
    %2233 = vmatprep.subr.mxu0 0.0
    %2234 = vmatpush1.msra.mxu0 0.0
    %2235 = vmatprep.subr.mxu0 0.0
    %2236 = vmatpush1.msra.mxu0 0.0
    %2237 = vmatprep.subr.mxu0 0.0
    %2238 = vmatpush1.msra.mxu0 0.0
    %2239 = vmatprep.subr.mxu0 0.0
    %2240 = vmatpush1.msra.mxu0 %v2187
    %2241 = vmatprep.subr.mxu0 0.0
    %2242 = vmatpush2.msra.mxu0 0.0
    %2243 = vmatprep.subr.mxu0 0.0
    %2244 = vmatpush2.msra.mxu0 0.0
    %2245 = vmatprep.subr.mxu0 0.0
    %2246 = vmatpush2.msra.mxu0 0.0
    %2247 = vmatprep.subr.mxu0 0.0
    %2248 = vmatpush2.msra.mxu0 0.0
    %2249 = vmatprep.subr.mxu0 0.0
    %2250 = vmatpush2.msra.mxu0 0.0
    %2251 = vmatprep.subr.mxu0 0.0
    %2252 = vmatpush2.msra.mxu0 0.0
    %2253 = vmatprep.subr.mxu0 0.0
    %2254 = vmatpush2.msra.mxu0 0.0
    %2255 = vmatprep.subr.mxu0 0.0
    %2256 = vmatpush2.msra.mxu0 0.0
    %2257 = vmatprep.subr.mxu0 0.0
    %2258 = vmatpush2.msra.mxu0 0.0
    %2259 = vmatprep.subr.mxu0 0.0
    %2260 = vmatpush2.msra.mxu0 0.0
    %2261 = vmatprep.subr.mxu0 0.0
    %2262 = vmatpush2.msra.mxu0 0.0
    %2263 = vmatprep.subr.mxu0 0.0
    %2264 = vmatpush2.msra.mxu0 0.0
    %2265 = vmatprep.subr.mxu0 0.0
    %2266 = vmatpush2.msra.mxu0 0.0
    %2267 = vmatprep.subr.mxu0 0.0
    %2268 = vmatpush2.msra.mxu0 0.0
    %2269 = vmatprep.subr.mxu0 0.0
    %2270 = vmatpush2.msra.mxu0 0.0
    %2271 = vmatprep.subr.mxu0 0.0
    %2272 = vmatpush2.msra.mxu0 0.0
    %2273 = vmatprep.mubr.f32.mxu0 0.0
    %2274 = vmatmul.mubr.f32.gmra.mxu0 %v2189
    %v2275 = vpop.f32.mrf.mxu0
    %v2276 = vadd.f32 0.0, %v2275
    %v2277 = vpop.f32.mrf.mxu0
    %2278 = vmatprep.mubr.f32.mxu0 0.0
    %2279 = vmatmul.mubr.f32.gmra.mxu0 %v2192
    %v2280 = vpop.f32.mrf.mxu0
    %v2281 = vadd.f32 0.0, %v2280
    %v2282 = vpop.f32.mrf.mxu0
    %2283 = vmatprep.mubr.f32.mxu0 0.0
    %2284 = vmatmul.mubr.f32.gmra.mxu0 %v2195
    %v2285 = vpop.f32.mrf.mxu0
    %v2286 = vadd.f32 0.0, %v2285
    %v2287 = vpop.f32.mrf.mxu0
    %2288 = vmatprep.mubr.f32.mxu0 0.0
    %2289 = vmatmul.mubr.f32.gmra.mxu0 %v2198
    %v2290 = vpop.f32.mrf.mxu0
    %v2291 = vadd.f32 0.0, %v2290
    %v2292 = vpop.f32.mrf.mxu0
    %2293 = vmatprep.mubr.f32.mxu0 0.0
    %2294 = vmatmul.mubr.f32.gmra.mxu0 %v2201
    %v2295 = vpop.f32.mrf.mxu0
    %v2296 = vadd.f32 0.0, %v2295
    %v2297 = vpop.f32.mrf.mxu0
    %2298 = vmatprep.mubr.f32.mxu0 0.0
    %2299 = vmatmul.mubr.f32.gmra.mxu0 %v2204
    %v2300 = vpop.f32.mrf.mxu0
    %v2301 = vadd.f32 0.0, %v2300
    %v2302 = vpop.f32.mrf.mxu0
    %2303 = vmatprep.mubr.f32.mxu0 0.0
    %2304 = vmatmul.mubr.f32.gmra.mxu0 %v2207
    %v2305 = vpop.f32.mrf.mxu0
    %v2306 = vadd.f32 0.0, %v2305
    %v2307 = vpop.f32.mrf.mxu0
    %2308 = vdwg.mxu0
    %v2309 = vadd.f32 %v2172, %v2276
    %v2310 = vadd.f32 %v2173, %v2281
    %v2311 = vadd.f32 %v2174, %v2286
    %v2312 = vadd.f32 %v2175, %v2291
    %v2313 = vadd.f32 %v2176, %v2296
    %v2314 = vadd.f32 %v2177, %v2301
    %v2315 = vadd.f32 %v2178, %v2306
    %v2316 = vld [vmem:[#allocation2 + $0x6a] sm:$0xff]
    %v2317 = vld [vmem:[#allocation2 + $0x72] sm:$0xff]
    %v2318 = vld [vmem:[#allocation2 + $0x7a] sm:$0xff]
    %v2319 = vld [vmem:[#allocation2 + $0x82] sm:$0xff]
    %v2320 = vld [vmem:[#allocation2 + $0x8a] sm:$0xff]
    %v2321 = vld [vmem:[#allocation2 + $0x92] sm:$0xff]
    %v2322 = vld [vmem:[#allocation2 + $0x9a] sm:$0x3]
    %s2323 = scalar_lea.vmem %s3, 112
    %v2324 = vld [vmem:[%s2323] sm:$0xff]
    %v2326 = vsel %vm387, %v2316, 0
    %v2329 = vsel %vm387, %v2317, 0
    %v2332 = vsel %vm387, %v2318, 0
    %v2335 = vsel %vm387, %v2319, 0
    %v2338 = vsel %vm387, %v2320, 0
    %v2341 = vsel %vm387, %v2321, 0
    %v2344 = vsel %vm387, %v2322, 0
    %2346 = vmatprep.subr.mxu0 0.0
    %2347 = vmatpush1.msra.mxu0 0.0
    %2348 = vmatprep.subr.mxu0 0.0
    %2349 = vmatpush1.msra.mxu0 0.0
    %2350 = vmatprep.subr.mxu0 0.0
    %2351 = vmatpush1.msra.mxu0 0.0
    %2352 = vmatprep.subr.mxu0 0.0
    %2353 = vmatpush1.msra.mxu0 0.0
    %2354 = vmatprep.subr.mxu0 0.0
    %2355 = vmatpush1.msra.mxu0 0.0
    %2356 = vmatprep.subr.mxu0 0.0
    %2357 = vmatpush1.msra.mxu0 0.0
    %2358 = vmatprep.subr.mxu0 0.0
    %2359 = vmatpush1.msra.mxu0 0.0
    %2360 = vmatprep.subr.mxu0 0.0
    %2361 = vmatpush1.msra.mxu0 0.0
    %2362 = vmatprep.subr.mxu0 0.0
    %2363 = vmatpush1.msra.mxu0 0.0
    %2364 = vmatprep.subr.mxu0 0.0
    %2365 = vmatpush1.msra.mxu0 0.0
    %2366 = vmatprep.subr.mxu0 0.0
    %2367 = vmatpush1.msra.mxu0 0.0
    %2368 = vmatprep.subr.mxu0 0.0
    %2369 = vmatpush1.msra.mxu0 0.0
    %2370 = vmatprep.subr.mxu0 0.0
    %2371 = vmatpush1.msra.mxu0 0.0
    %2372 = vmatprep.subr.mxu0 0.0
    %2373 = vmatpush1.msra.mxu0 0.0
    %2374 = vmatprep.subr.mxu0 0.0
    %2375 = vmatpush1.msra.mxu0 0.0
    %2376 = vmatprep.subr.mxu0 0.0
    %2377 = vmatpush1.msra.mxu0 %v2324
    %2378 = vmatprep.subr.mxu0 0.0
    %2379 = vmatpush2.msra.mxu0 0.0
    %2380 = vmatprep.subr.mxu0 0.0
    %2381 = vmatpush2.msra.mxu0 0.0
    %2382 = vmatprep.subr.mxu0 0.0
    %2383 = vmatpush2.msra.mxu0 0.0
    %2384 = vmatprep.subr.mxu0 0.0
    %2385 = vmatpush2.msra.mxu0 0.0
    %2386 = vmatprep.subr.mxu0 0.0
    %2387 = vmatpush2.msra.mxu0 0.0
    %2388 = vmatprep.subr.mxu0 0.0
    %2389 = vmatpush2.msra.mxu0 0.0
    %2390 = vmatprep.subr.mxu0 0.0
    %2391 = vmatpush2.msra.mxu0 0.0
    %2392 = vmatprep.subr.mxu0 0.0
    %2393 = vmatpush2.msra.mxu0 0.0
    %2394 = vmatprep.subr.mxu0 0.0
    %2395 = vmatpush2.msra.mxu0 0.0
    %2396 = vmatprep.subr.mxu0 0.0
    %2397 = vmatpush2.msra.mxu0 0.0
    %2398 = vmatprep.subr.mxu0 0.0
    %2399 = vmatpush2.msra.mxu0 0.0
    %2400 = vmatprep.subr.mxu0 0.0
    %2401 = vmatpush2.msra.mxu0 0.0
    %2402 = vmatprep.subr.mxu0 0.0
    %2403 = vmatpush2.msra.mxu0 0.0
    %2404 = vmatprep.subr.mxu0 0.0
    %2405 = vmatpush2.msra.mxu0 0.0
    %2406 = vmatprep.subr.mxu0 0.0
    %2407 = vmatpush2.msra.mxu0 0.0
    %2408 = vmatprep.subr.mxu0 0.0
    %2409 = vmatpush2.msra.mxu0 0.0
    %2410 = vmatprep.mubr.f32.mxu0 0.0
    %2411 = vmatmul.mubr.f32.gmra.mxu0 %v2326
    %v2412 = vpop.f32.mrf.mxu0
    %v2413 = vadd.f32 0.0, %v2412
    %v2414 = vpop.f32.mrf.mxu0
    %2415 = vmatprep.mubr.f32.mxu0 0.0
    %2416 = vmatmul.mubr.f32.gmra.mxu0 %v2329
    %v2417 = vpop.f32.mrf.mxu0
    %v2418 = vadd.f32 0.0, %v2417
    %v2419 = vpop.f32.mrf.mxu0
    %2420 = vmatprep.mubr.f32.mxu0 0.0
    %2421 = vmatmul.mubr.f32.gmra.mxu0 %v2332
    %v2422 = vpop.f32.mrf.mxu0
    %v2423 = vadd.f32 0.0, %v2422
    %v2424 = vpop.f32.mrf.mxu0
    %2425 = vmatprep.mubr.f32.mxu0 0.0
    %2426 = vmatmul.mubr.f32.gmra.mxu0 %v2335
    %v2427 = vpop.f32.mrf.mxu0
    %v2428 = vadd.f32 0.0, %v2427
    %v2429 = vpop.f32.mrf.mxu0
    %2430 = vmatprep.mubr.f32.mxu0 0.0
    %2431 = vmatmul.mubr.f32.gmra.mxu0 %v2338
    %v2432 = vpop.f32.mrf.mxu0
    %v2433 = vadd.f32 0.0, %v2432
    %v2434 = vpop.f32.mrf.mxu0
    %2435 = vmatprep.mubr.f32.mxu0 0.0
    %2436 = vmatmul.mubr.f32.gmra.mxu0 %v2341
    %v2437 = vpop.f32.mrf.mxu0
    %v2438 = vadd.f32 0.0, %v2437
    %v2439 = vpop.f32.mrf.mxu0
    %2440 = vmatprep.mubr.f32.mxu0 0.0
    %2441 = vmatmul.mubr.f32.gmra.mxu0 %v2344
    %v2442 = vpop.f32.mrf.mxu0
    %v2443 = vadd.f32 0.0, %v2442
    %v2444 = vpop.f32.mrf.mxu0
    %2445 = vdwg.mxu0
    %v2446 = vadd.f32 %v2309, %v2413
    %v2447 = vadd.f32 %v2310, %v2418
    %v2448 = vadd.f32 %v2311, %v2423
    %v2449 = vadd.f32 %v2312, %v2428
    %v2450 = vadd.f32 %v2313, %v2433
    %v2451 = vadd.f32 %v2314, %v2438
    %v2452 = vadd.f32 %v2315, %v2443
    %v2453 = vld [vmem:[#allocation2 + $0x9c] sm:$0xff]
    %v2454 = vld [vmem:[#allocation2 + $0xa4] sm:$0xff]
    %v2455 = vld [vmem:[#allocation2 + $0xac] sm:$0xff]
    %v2456 = vld [vmem:[#allocation2 + $0xb4] sm:$0xff]
    %v2457 = vld [vmem:[#allocation2 + $0xbc] sm:$0xff]
    %v2458 = vld [vmem:[#allocation2 + $0xc4] sm:$0xff]
    %v2459 = vld [vmem:[#allocation2 + $0xcc] sm:$0x3]
    %s2460 = scalar_lea.vmem %s3, 120
    %v2461 = vld [vmem:[%s2460] sm:$0xff]
    %v2463 = vsel %vm387, %v2453, 0
    %v2466 = vsel %vm387, %v2454, 0
    %v2469 = vsel %vm387, %v2455, 0
    %v2472 = vsel %vm387, %v2456, 0
    %v2475 = vsel %vm387, %v2457, 0
    %v2478 = vsel %vm387, %v2458, 0
    %v2481 = vsel %vm387, %v2459, 0
    %2483 = vmatprep.subr.mxu0 0.0
    %2484 = vmatpush1.msra.mxu0 0.0
    %2485 = vmatprep.subr.mxu0 0.0
    %2486 = vmatpush1.msra.mxu0 0.0
    %2487 = vmatprep.subr.mxu0 0.0
    %2488 = vmatpush1.msra.mxu0 0.0
    %2489 = vmatprep.subr.mxu0 0.0
    %2490 = vmatpush1.msra.mxu0 0.0
    %2491 = vmatprep.subr.mxu0 0.0
    %2492 = vmatpush1.msra.mxu0 0.0
    %2493 = vmatprep.subr.mxu0 0.0
    %2494 = vmatpush1.msra.mxu0 0.0
    %2495 = vmatprep.subr.mxu0 0.0
    %2496 = vmatpush1.msra.mxu0 0.0
    %2497 = vmatprep.subr.mxu0 0.0
    %2498 = vmatpush1.msra.mxu0 0.0
    %2499 = vmatprep.subr.mxu0 0.0
    %2500 = vmatpush1.msra.mxu0 0.0
    %2501 = vmatprep.subr.mxu0 0.0
    %2502 = vmatpush1.msra.mxu0 0.0
    %2503 = vmatprep.subr.mxu0 0.0
    %2504 = vmatpush1.msra.mxu0 0.0
    %2505 = vmatprep.subr.mxu0 0.0
    %2506 = vmatpush1.msra.mxu0 0.0
    %2507 = vmatprep.subr.mxu0 0.0
    %2508 = vmatpush1.msra.mxu0 0.0
    %2509 = vmatprep.subr.mxu0 0.0
    %2510 = vmatpush1.msra.mxu0 0.0
    %2511 = vmatprep.subr.mxu0 0.0
    %2512 = vmatpush1.msra.mxu0 0.0
    %2513 = vmatprep.subr.mxu0 0.0
    %2514 = vmatpush1.msra.mxu0 %v2461
    %2515 = vmatprep.subr.mxu0 0.0
    %2516 = vmatpush2.msra.mxu0 0.0
    %2517 = vmatprep.subr.mxu0 0.0
    %2518 = vmatpush2.msra.mxu0 0.0
    %2519 = vmatprep.subr.mxu0 0.0
    %2520 = vmatpush2.msra.mxu0 0.0
    %2521 = vmatprep.subr.mxu0 0.0
    %2522 = vmatpush2.msra.mxu0 0.0
    %2523 = vmatprep.subr.mxu0 0.0
    %2524 = vmatpush2.msra.mxu0 0.0
    %2525 = vmatprep.subr.mxu0 0.0
    %2526 = vmatpush2.msra.mxu0 0.0
    %2527 = vmatprep.subr.mxu0 0.0
    %2528 = vmatpush2.msra.mxu0 0.0
    %2529 = vmatprep.subr.mxu0 0.0
    %2530 = vmatpush2.msra.mxu0 0.0
    %2531 = vmatprep.subr.mxu0 0.0
    %2532 = vmatpush2.msra.mxu0 0.0
    %2533 = vmatprep.subr.mxu0 0.0
    %2534 = vmatpush2.msra.mxu0 0.0
    %2535 = vmatprep.subr.mxu0 0.0
    %2536 = vmatpush2.msra.mxu0 0.0
    %2537 = vmatprep.subr.mxu0 0.0
    %2538 = vmatpush2.msra.mxu0 0.0
    %2539 = vmatprep.subr.mxu0 0.0
    %2540 = vmatpush2.msra.mxu0 0.0
    %2541 = vmatprep.subr.mxu0 0.0
    %2542 = vmatpush2.msra.mxu0 0.0
    %2543 = vmatprep.subr.mxu0 0.0
    %2544 = vmatpush2.msra.mxu0 0.0
    %2545 = vmatprep.subr.mxu0 0.0
    %2546 = vmatpush2.msra.mxu0 0.0
    %2547 = vmatprep.mubr.f32.mxu0 0.0
    %2548 = vmatmul.mubr.f32.gmra.mxu0 %v2463
    %v2549 = vpop.f32.mrf.mxu0
    %v2550 = vadd.f32 0.0, %v2549
    %v2551 = vpop.f32.mrf.mxu0
    %2552 = vmatprep.mubr.f32.mxu0 0.0
    %2553 = vmatmul.mubr.f32.gmra.mxu0 %v2466
    %v2554 = vpop.f32.mrf.mxu0
    %v2555 = vadd.f32 0.0, %v2554
    %v2556 = vpop.f32.mrf.mxu0
    %2557 = vmatprep.mubr.f32.mxu0 0.0
    %2558 = vmatmul.mubr.f32.gmra.mxu0 %v2469
    %v2559 = vpop.f32.mrf.mxu0
    %v2560 = vadd.f32 0.0, %v2559
    %v2561 = vpop.f32.mrf.mxu0
    %2562 = vmatprep.mubr.f32.mxu0 0.0
    %2563 = vmatmul.mubr.f32.gmra.mxu0 %v2472
    %v2564 = vpop.f32.mrf.mxu0
    %v2565 = vadd.f32 0.0, %v2564
    %v2566 = vpop.f32.mrf.mxu0
    %2567 = vmatprep.mubr.f32.mxu0 0.0
    %2568 = vmatmul.mubr.f32.gmra.mxu0 %v2475
    %v2569 = vpop.f32.mrf.mxu0
    %v2570 = vadd.f32 0.0, %v2569
    %v2571 = vpop.f32.mrf.mxu0
    %2572 = vmatprep.mubr.f32.mxu0 0.0
    %2573 = vmatmul.mubr.f32.gmra.mxu0 %v2478
    %v2574 = vpop.f32.mrf.mxu0
    %v2575 = vadd.f32 0.0, %v2574
    %v2576 = vpop.f32.mrf.mxu0
    %2577 = vmatprep.mubr.f32.mxu0 0.0
    %2578 = vmatmul.mubr.f32.gmra.mxu0 %v2481
    %v2579 = vpop.f32.mrf.mxu0
    %v2580 = vadd.f32 0.0, %v2579
    %v2581 = vpop.f32.mrf.mxu0
    %2582 = vdwg.mxu0
    %v2583 = vadd.f32 %v2446, %v2550
    %v2584 = vadd.f32 %v2447, %v2555
    %v2585 = vadd.f32 %v2448, %v2560
    %v2586 = vadd.f32 %v2449, %v2565
    %v2587 = vadd.f32 %v2450, %v2570
    %v2588 = vadd.f32 %v2451, %v2575
    %v2589 = vadd.f32 %v2452, %v2580
    %v2590 = vld [vmem:[%s4] sm:$0x1]
    %v2592 = vlaneseq
    %v2593 = vshrl.u32 %v2592, 7
    %v2594 = vsub.s32 0, %v2593
    %v2595 = vrot.slane %v2590, %v2594
    %v2597 = vadd.f32 %v2583, %v2595
    %v2598 = vadd.f32 %v2584, %v2595
    %v2599 = vadd.f32 %v2585, %v2595
    %v2600 = vadd.f32 %v2586, %v2595
    %v2601 = vadd.f32 %v2587, %v2595
    %v2602 = vadd.f32 %v2588, %v2595
    %v2603 = vadd.f32 %v2589, %v2595
    %vm2604 = vcmp.ge.f32.partialorder %v2597, 0.0
    %vm2605 = vcmp.ge.f32.partialorder %v2598, 0.0
    %vm2606 = vcmp.ge.f32.partialorder %v2599, 0.0
    %vm2607 = vcmp.ge.f32.partialorder %v2600, 0.0
    %vm2608 = vcmp.ge.f32.partialorder %v2601, 0.0
    %vm2609 = vcmp.ge.f32.partialorder %v2602, 0.0
    %vm2610 = vcmp.ge.f32.partialorder %v2603, 0.0
    %v2611 = vmul.f32 %v2597, 0.01
    %v2612 = vmul.f32 %v2598, 0.01
    %v2613 = vmul.f32 %v2599, 0.01
    %v2614 = vmul.f32 %v2600, 0.01
    %v2615 = vmul.f32 %v2601, 0.01
    %v2616 = vmul.f32 %v2602, 0.01
    %v2617 = vmul.f32 %v2603, 0.01
    %v2618 = vsel %vm2604, %v2597, %v2611
    %v2619 = vsel %vm2605, %v2598, %v2612
    %v2620 = vsel %vm2606, %v2599, %v2613
    %v2621 = vsel %vm2607, %v2600, %v2614
    %v2622 = vsel %vm2608, %v2601, %v2615
    %v2623 = vsel %vm2609, %v2602, %v2616
    %v2624 = vsel %vm2610, %v2603, %v2617
    %vm2625 = vcmask 130048
    %2626 = vst.msk [vmem:[#allocation3] sm:$0xff] %vm2625, %v2618
    %2627 = vst.msk [vmem:[#allocation3 + $0x8] sm:$0xff] %vm2625, %v2619
    %2628 = vst.msk [vmem:[#allocation3 + $0x10] sm:$0xff] %vm2625, %v2620
    %2629 = vst.msk [vmem:[#allocation3 + $0x18] sm:$0xff] %vm2625, %v2621
    %2630 = vst.msk [vmem:[#allocation3 + $0x20] sm:$0xff] %vm2625, %v2622
    %2631 = vst.msk [vmem:[#allocation3 + $0x28] sm:$0xff] %vm2625, %v2623
    %vm2632 = vcmask 123904
    %2633 = vst.msk [vmem:[#allocation3 + $0x30] sm:$0x3] %vm2632, %v2624
    %v2634 = vld [vmem:[#allocation3] sm:$0xff]
    %v2635 = vld [vmem:[#allocation3 + $0x8] sm:$0xff]
    %v2636 = vld [vmem:[#allocation3 + $0x10] sm:$0xff]
    %v2637 = vld [vmem:[#allocation3 + $0x18] sm:$0xff]
    %v2638 = vld [vmem:[#allocation3 + $0x20] sm:$0xff]
    %v2639 = vld [vmem:[#allocation3 + $0x28] sm:$0xff]
    %v2640 = vld [vmem:[#allocation3 + $0x30] sm:$0x3]
    %v2641 = vld [vmem:[%s5] sm:$0xff]
    %v2642 = vld [vmem:[%s5 + $0x8] sm:$0xff]
    %v2643 = vld [vmem:[#allocation3 + $0x1] sm:$0xff]
    %v2644 = vld [vmem:[#allocation3 + $0x9] sm:$0xff]
    %v2645 = vld [vmem:[#allocation3 + $0x11] sm:$0xff]
    %v2646 = vld [vmem:[#allocation3 + $0x19] sm:$0xff]
    %v2647 = vld [vmem:[#allocation3 + $0x21] sm:$0xff]
    %v2648 = vld [vmem:[#allocation3 + $0x29] sm:$0xff]
    %v2649 = vld [vmem:[#allocation3 + $0x31] sm:$0x3]
    %s2650 = scalar_lea.vmem %s5, 16
    %v2651 = vld [vmem:[%s2650] sm:$0xff]
    %v2652 = vld [vmem:[%s2650 + $0x8] sm:$0xff]
    %v2654 = vsel %vm2625, %v2643, 0
    %v2657 = vsel %vm2625, %v2644, 0
    %v2660 = vsel %vm2625, %v2645, 0
    %v2663 = vsel %vm2625, %v2646, 0
    %v2666 = vsel %vm2625, %v2647, 0
    %v2669 = vsel %vm2625, %v2648, 0
    %v2672 = vsel %vm2625, %v2649, 0
    %2674 = vmatprep.subr.mxu0 0.0
    %2675 = vmatpush1.msra.mxu0 0.0
    %2676 = vmatprep.subr.mxu0 0.0
    %2677 = vmatpush1.msra.mxu0 0.0
    %2678 = vmatprep.subr.mxu0 0.0
    %2679 = vmatpush1.msra.mxu0 0.0
    %2680 = vmatprep.subr.mxu0 0.0
    %2681 = vmatpush1.msra.mxu0 0.0
    %2682 = vmatprep.subr.mxu0 0.0
    %2683 = vmatpush1.msra.mxu0 0.0
    %2684 = vmatprep.subr.mxu0 0.0
    %2685 = vmatpush1.msra.mxu0 0.0
    %2686 = vmatprep.subr.mxu0 0.0
    %2687 = vmatpush1.msra.mxu0 0.0
    %2688 = vmatprep.subr.mxu0 0.0
    %2689 = vmatpush1.msra.mxu0 0.0
    %2690 = vmatprep.subr.mxu0 0.0
    %2691 = vmatpush1.msra.mxu0 0.0
    %2692 = vmatprep.subr.mxu0 0.0
    %2693 = vmatpush1.msra.mxu0 0.0
    %2694 = vmatprep.subr.mxu0 0.0
    %2695 = vmatpush1.msra.mxu0 0.0
    %2696 = vmatprep.subr.mxu0 0.0
    %2697 = vmatpush1.msra.mxu0 0.0
    %2698 = vmatprep.subr.mxu0 0.0
    %2699 = vmatpush1.msra.mxu0 0.0
    %2700 = vmatprep.subr.mxu0 0.0
    %2701 = vmatpush1.msra.mxu0 0.0
    %2702 = vmatprep.subr.mxu0 0.0
    %2703 = vmatpush1.msra.mxu0 %v2652
    %2704 = vmatprep.subr.mxu0 0.0
    %2705 = vmatpush1.msra.mxu0 %v2651
    %2706 = vmatprep.subr.mxu0 0.0
    %2707 = vmatpush2.msra.mxu0 0.0
    %2708 = vmatprep.subr.mxu0 0.0
    %2709 = vmatpush2.msra.mxu0 0.0
    %2710 = vmatprep.subr.mxu0 0.0
    %2711 = vmatpush2.msra.mxu0 0.0
    %2712 = vmatprep.subr.mxu0 0.0
    %2713 = vmatpush2.msra.mxu0 0.0
    %2714 = vmatprep.subr.mxu0 0.0
    %2715 = vmatpush2.msra.mxu0 0.0
    %2716 = vmatprep.subr.mxu0 0.0
    %2717 = vmatpush2.msra.mxu0 0.0
    %2718 = vmatprep.subr.mxu0 0.0
    %2719 = vmatpush2.msra.mxu0 0.0
    %2720 = vmatprep.subr.mxu0 0.0
    %2721 = vmatpush2.msra.mxu0 0.0
    %2722 = vmatprep.subr.mxu0 0.0
    %2723 = vmatpush2.msra.mxu0 0.0
    %2724 = vmatprep.subr.mxu0 0.0
    %2725 = vmatpush2.msra.mxu0 0.0
    %2726 = vmatprep.subr.mxu0 0.0
    %2727 = vmatpush2.msra.mxu0 0.0
    %2728 = vmatprep.subr.mxu0 0.0
    %2729 = vmatpush2.msra.mxu0 0.0
    %2730 = vmatprep.subr.mxu0 0.0
    %2731 = vmatpush2.msra.mxu0 0.0
    %2732 = vmatprep.subr.mxu0 0.0
    %2733 = vmatpush2.msra.mxu0 0.0
    %2734 = vmatprep.subr.mxu0 0.0
    %2735 = vmatpush2.msra.mxu0 0.0
    %2736 = vmatprep.subr.mxu0 0.0
    %2737 = vmatpush2.msra.mxu0 0.0
    %2738 = vmatprep.mubr.f32.mxu0 0.0
    %2739 = vmatmul.mubr.f32.gmra.mxu0 %v2654
    %v2740 = vpop.f32.mrf.mxu0
    %v2741 = vadd.f32 0.0, %v2740
    %v2742 = vpop.f32.mrf.mxu0
    %2743 = vmatprep.mubr.f32.mxu0 0.0
    %2744 = vmatmul.mubr.f32.gmra.mxu0 %v2657
    %v2745 = vpop.f32.mrf.mxu0
    %v2746 = vpop.f32.mrf.mxu0
    %2747 = vmatprep.mubr.f32.mxu0 0.0
    %2748 = vmatmul.mubr.f32.gmra.mxu0 %v2660
    %v2749 = vpop.f32.mrf.mxu0
    %v2750 = vpop.f32.mrf.mxu0
    %2751 = vmatprep.mubr.f32.mxu0 0.0
    %2752 = vmatmul.mubr.f32.gmra.mxu0 %v2663
    %v2753 = vpop.f32.mrf.mxu0
    %v2754 = vadd.f32 0.0, %v2753
    %v2755 = vpop.f32.mrf.mxu0
    %2756 = vmatprep.mubr.f32.mxu0 0.0
    %2757 = vmatmul.mubr.f32.gmra.mxu0 %v2666
    %v2758 = vpop.f32.mrf.mxu0
    %v2759 = vpop.f32.mrf.mxu0
    %2760 = vmatprep.mubr.f32.mxu0 0.0
    %2761 = vmatmul.mubr.f32.gmra.mxu0 %v2669
    %v2762 = vpop.f32.mrf.mxu0
    %v2763 = vpop.f32.mrf.mxu0
    %2764 = vmatprep.mubr.f32.mxu0 0.0
    %2765 = vmatmul.mubr.f32.gmra.mxu0 %v2672
    %v2766 = vpop.f32.mrf.mxu0
    %v2767 = vpop.f32.mrf.mxu0
    %2768 = vdwg.mxu0
    %v2770 = vsel %vm2625, %v2634, 0
    %v2773 = vsel %vm2625, %v2635, 0
    %v2776 = vsel %vm2625, %v2636, 0
    %v2779 = vsel %vm2625, %v2637, 0
    %v2782 = vsel %vm2625, %v2638, 0
    %v2785 = vsel %vm2625, %v2639, 0
    %v2788 = vsel %vm2625, %v2640, 0
    %2790 = vmatprep.subr.mxu0 0.0
    %2791 = vmatpush1.msra.mxu0 0.0
    %2792 = vmatprep.subr.mxu0 0.0
    %2793 = vmatpush1.msra.mxu0 0.0
    %2794 = vmatprep.subr.mxu0 0.0
    %2795 = vmatpush1.msra.mxu0 0.0
    %2796 = vmatprep.subr.mxu0 0.0
    %2797 = vmatpush1.msra.mxu0 0.0
    %2798 = vmatprep.subr.mxu0 0.0
    %2799 = vmatpush1.msra.mxu0 0.0
    %2800 = vmatprep.subr.mxu0 0.0
    %2801 = vmatpush1.msra.mxu0 0.0
    %2802 = vmatprep.subr.mxu0 0.0
    %2803 = vmatpush1.msra.mxu0 0.0
    %2804 = vmatprep.subr.mxu0 0.0
    %2805 = vmatpush1.msra.mxu0 0.0
    %2806 = vmatprep.subr.mxu0 0.0
    %2807 = vmatpush1.msra.mxu0 0.0
    %2808 = vmatprep.subr.mxu0 0.0
    %2809 = vmatpush1.msra.mxu0 0.0
    %2810 = vmatprep.subr.mxu0 0.0
    %2811 = vmatpush1.msra.mxu0 0.0
    %2812 = vmatprep.subr.mxu0 0.0
    %2813 = vmatpush1.msra.mxu0 0.0
    %2814 = vmatprep.subr.mxu0 0.0
    %2815 = vmatpush1.msra.mxu0 0.0
    %2816 = vmatprep.subr.mxu0 0.0
    %2817 = vmatpush1.msra.mxu0 0.0
    %2818 = vmatprep.subr.mxu0 0.0
    %2819 = vmatpush1.msra.mxu0 %v2642
    %2820 = vmatprep.subr.mxu0 0.0
    %2821 = vmatpush1.msra.mxu0 %v2641
    %2822 = vmatprep.subr.mxu0 0.0
    %2823 = vmatpush2.msra.mxu0 0.0
    %2824 = vmatprep.subr.mxu0 0.0
    %2825 = vmatpush2.msra.mxu0 0.0
    %2826 = vmatprep.subr.mxu0 0.0
    %2827 = vmatpush2.msra.mxu0 0.0
    %2828 = vmatprep.subr.mxu0 0.0
    %2829 = vmatpush2.msra.mxu0 0.0
    %2830 = vmatprep.subr.mxu0 0.0
    %2831 = vmatpush2.msra.mxu0 0.0
    %2832 = vmatprep.subr.mxu0 0.0
    %2833 = vmatpush2.msra.mxu0 0.0
    %2834 = vmatprep.subr.mxu0 0.0
    %2835 = vmatpush2.msra.mxu0 0.0
    %2836 = vmatprep.subr.mxu0 0.0
    %2837 = vmatpush2.msra.mxu0 0.0
    %2838 = vmatprep.subr.mxu0 0.0
    %2839 = vmatpush2.msra.mxu0 0.0
    %2840 = vmatprep.subr.mxu0 0.0
    %2841 = vmatpush2.msra.mxu0 0.0
    %2842 = vmatprep.subr.mxu0 0.0
    %2843 = vmatpush2.msra.mxu0 0.0
    %2844 = vmatprep.subr.mxu0 0.0
    %2845 = vmatpush2.msra.mxu0 0.0
    %2846 = vmatprep.subr.mxu0 0.0
    %2847 = vmatpush2.msra.mxu0 0.0
    %2848 = vmatprep.subr.mxu0 0.0
    %2849 = vmatpush2.msra.mxu0 0.0
    %2850 = vmatprep.subr.mxu0 0.0
    %2851 = vmatpush2.msra.mxu0 0.0
    %2852 = vmatprep.subr.mxu0 0.0
    %2853 = vmatpush2.msra.mxu0 0.0
    %2854 = vmatprep.mubr.f32.mxu0 0.0
    %2855 = vmatmul.mubr.f32.gmra.mxu0 %v2770
    %v2856 = vpop.f32.mrf.mxu0
    %v2857 = vadd.f32 %v2741, %v2856
    %v2858 = vpop.f32.mrf.mxu0
    %2859 = vmatprep.mubr.f32.mxu0 0.0
    %2860 = vmatmul.mubr.f32.gmra.mxu0 %v2773
    %v2861 = vpop.f32.mrf.mxu0
    %v2862 = vpop.f32.mrf.mxu0
    %2863 = vmatprep.mubr.f32.mxu0 0.0
    %2864 = vmatmul.mubr.f32.gmra.mxu0 %v2776
    %v2865 = vpop.f32.mrf.mxu0
    %v2866 = vpop.f32.mrf.mxu0
    %2867 = vmatprep.mubr.f32.mxu0 0.0
    %2868 = vmatmul.mubr.f32.gmra.mxu0 %v2779
    %v2869 = vpop.f32.mrf.mxu0
    %v2870 = vadd.f32 %v2754, %v2869
    %v2871 = vpop.f32.mrf.mxu0
    %2872 = vmatprep.mubr.f32.mxu0 0.0
    %2873 = vmatmul.mubr.f32.gmra.mxu0 %v2782
    %v2874 = vpop.f32.mrf.mxu0
    %v2875 = vpop.f32.mrf.mxu0
    %2876 = vmatprep.mubr.f32.mxu0 0.0
    %2877 = vmatmul.mubr.f32.gmra.mxu0 %v2785
    %v2878 = vpop.f32.mrf.mxu0
    %v2879 = vpop.f32.mrf.mxu0
    %2880 = vmatprep.mubr.f32.mxu0 0.0
    %2881 = vmatmul.mubr.f32.gmra.mxu0 %v2788
    %v2882 = vpop.f32.mrf.mxu0
    %v2883 = vpop.f32.mrf.mxu0
    %2884 = vdwg.mxu0
    %v2885 = vld [vmem:[#allocation3 + $0x2] sm:$0xff]
    %v2886 = vld [vmem:[#allocation3 + $0xa] sm:$0xff]
    %v2887 = vld [vmem:[#allocation3 + $0x12] sm:$0xff]
    %v2888 = vld [vmem:[#allocation3 + $0x1a] sm:$0xff]
    %v2889 = vld [vmem:[#allocation3 + $0x22] sm:$0xff]
    %v2890 = vld [vmem:[#allocation3 + $0x2a] sm:$0xff]
    %v2891 = vld [vmem:[#allocation3 + $0x32] sm:$0x3]
    %s2892 = scalar_lea.vmem %s5, 32
    %v2893 = vld [vmem:[%s2892] sm:$0xff]
    %v2894 = vld [vmem:[%s2892 + $0x8] sm:$0xff]
    %v2896 = vsel %vm2625, %v2885, 0
    %v2899 = vsel %vm2625, %v2886, 0
    %v2902 = vsel %vm2625, %v2887, 0
    %v2905 = vsel %vm2625, %v2888, 0
    %v2908 = vsel %vm2625, %v2889, 0
    %v2911 = vsel %vm2625, %v2890, 0
    %v2914 = vsel %vm2625, %v2891, 0
    %2916 = vmatprep.subr.mxu0 0.0
    %2917 = vmatpush1.msra.mxu0 0.0
    %2918 = vmatprep.subr.mxu0 0.0
    %2919 = vmatpush1.msra.mxu0 0.0
    %2920 = vmatprep.subr.mxu0 0.0
    %2921 = vmatpush1.msra.mxu0 0.0
    %2922 = vmatprep.subr.mxu0 0.0
    %2923 = vmatpush1.msra.mxu0 0.0
    %2924 = vmatprep.subr.mxu0 0.0
    %2925 = vmatpush1.msra.mxu0 0.0
    %2926 = vmatprep.subr.mxu0 0.0
    %2927 = vmatpush1.msra.mxu0 0.0
    %2928 = vmatprep.subr.mxu0 0.0
    %2929 = vmatpush1.msra.mxu0 0.0
    %2930 = vmatprep.subr.mxu0 0.0
    %2931 = vmatpush1.msra.mxu0 0.0
    %2932 = vmatprep.subr.mxu0 0.0
    %2933 = vmatpush1.msra.mxu0 0.0
    %2934 = vmatprep.subr.mxu0 0.0
    %2935 = vmatpush1.msra.mxu0 0.0
    %2936 = vmatprep.subr.mxu0 0.0
    %2937 = vmatpush1.msra.mxu0 0.0
    %2938 = vmatprep.subr.mxu0 0.0
    %2939 = vmatpush1.msra.mxu0 0.0
    %2940 = vmatprep.subr.mxu0 0.0
    %2941 = vmatpush1.msra.mxu0 0.0
    %2942 = vmatprep.subr.mxu0 0.0
    %2943 = vmatpush1.msra.mxu0 0.0
    %2944 = vmatprep.subr.mxu0 0.0
    %2945 = vmatpush1.msra.mxu0 %v2894
    %2946 = vmatprep.subr.mxu0 0.0
    %2947 = vmatpush1.msra.mxu0 %v2893
    %2948 = vmatprep.subr.mxu0 0.0
    %2949 = vmatpush2.msra.mxu0 0.0
    %2950 = vmatprep.subr.mxu0 0.0
    %2951 = vmatpush2.msra.mxu0 0.0
    %2952 = vmatprep.subr.mxu0 0.0
    %2953 = vmatpush2.msra.mxu0 0.0
    %2954 = vmatprep.subr.mxu0 0.0
    %2955 = vmatpush2.msra.mxu0 0.0
    %2956 = vmatprep.subr.mxu0 0.0
    %2957 = vmatpush2.msra.mxu0 0.0
    %2958 = vmatprep.subr.mxu0 0.0
    %2959 = vmatpush2.msra.mxu0 0.0
    %2960 = vmatprep.subr.mxu0 0.0
    %2961 = vmatpush2.msra.mxu0 0.0
    %2962 = vmatprep.subr.mxu0 0.0
    %2963 = vmatpush2.msra.mxu0 0.0
    %2964 = vmatprep.subr.mxu0 0.0
    %2965 = vmatpush2.msra.mxu0 0.0
    %2966 = vmatprep.subr.mxu0 0.0
    %2967 = vmatpush2.msra.mxu0 0.0
    %2968 = vmatprep.subr.mxu0 0.0
    %2969 = vmatpush2.msra.mxu0 0.0
    %2970 = vmatprep.subr.mxu0 0.0
    %2971 = vmatpush2.msra.mxu0 0.0
    %2972 = vmatprep.subr.mxu0 0.0
    %2973 = vmatpush2.msra.mxu0 0.0
    %2974 = vmatprep.subr.mxu0 0.0
    %2975 = vmatpush2.msra.mxu0 0.0
    %2976 = vmatprep.subr.mxu0 0.0
    %2977 = vmatpush2.msra.mxu0 0.0
    %2978 = vmatprep.subr.mxu0 0.0
    %2979 = vmatpush2.msra.mxu0 0.0
    %2980 = vmatprep.mubr.f32.mxu0 0.0
    %2981 = vmatmul.mubr.f32.gmra.mxu0 %v2896
    %v2982 = vpop.f32.mrf.mxu0
    %v2983 = vadd.f32 0.0, %v2982
    %v2984 = vpop.f32.mrf.mxu0
    %2985 = vmatprep.mubr.f32.mxu0 0.0
    %2986 = vmatmul.mubr.f32.gmra.mxu0 %v2899
    %v2987 = vpop.f32.mrf.mxu0
    %v2988 = vpop.f32.mrf.mxu0
    %2989 = vmatprep.mubr.f32.mxu0 0.0
    %2990 = vmatmul.mubr.f32.gmra.mxu0 %v2902
    %v2991 = vpop.f32.mrf.mxu0
    %v2992 = vpop.f32.mrf.mxu0
    %2993 = vmatprep.mubr.f32.mxu0 0.0
    %2994 = vmatmul.mubr.f32.gmra.mxu0 %v2905
    %v2995 = vpop.f32.mrf.mxu0
    %v2996 = vadd.f32 0.0, %v2995
    %v2997 = vpop.f32.mrf.mxu0
    %2998 = vmatprep.mubr.f32.mxu0 0.0
    %2999 = vmatmul.mubr.f32.gmra.mxu0 %v2908
    %v3000 = vpop.f32.mrf.mxu0
    %v3001 = vpop.f32.mrf.mxu0
    %3002 = vmatprep.mubr.f32.mxu0 0.0
    %3003 = vmatmul.mubr.f32.gmra.mxu0 %v2911
    %v3004 = vpop.f32.mrf.mxu0
    %v3005 = vpop.f32.mrf.mxu0
    %3006 = vmatprep.mubr.f32.mxu0 0.0
    %3007 = vmatmul.mubr.f32.gmra.mxu0 %v2914
    %v3008 = vpop.f32.mrf.mxu0
    %v3009 = vpop.f32.mrf.mxu0
    %3010 = vdwg.mxu0
    %v3011 = vadd.f32 %v2857, %v2983
    %v3012 = vadd.f32 %v2870, %v2996
    %v3013 = vld [vmem:[#allocation3 + $0x5] sm:$0xff]
    %v3014 = vld [vmem:[#allocation3 + $0xd] sm:$0xff]
    %v3015 = vld [vmem:[#allocation3 + $0x15] sm:$0xff]
    %v3016 = vld [vmem:[#allocation3 + $0x1d] sm:$0xff]
    %v3017 = vld [vmem:[#allocation3 + $0x25] sm:$0xff]
    %v3018 = vld [vmem:[#allocation3 + $0x2d] sm:$0xff]
    %v3019 = vld [vmem:[#allocation3 + $0x35] sm:$0x3]
    %s3020 = scalar_lea.vmem %s5, 48
    %v3021 = vld [vmem:[%s3020] sm:$0xff]
    %v3022 = vld [vmem:[%s3020 + $0x8] sm:$0xff]
    %v3024 = vsel %vm2625, %v3013, 0
    %v3027 = vsel %vm2625, %v3014, 0
    %v3030 = vsel %vm2625, %v3015, 0
    %v3033 = vsel %vm2625, %v3016, 0
    %v3036 = vsel %vm2625, %v3017, 0
    %v3039 = vsel %vm2625, %v3018, 0
    %v3042 = vsel %vm2625, %v3019, 0
    %3044 = vmatprep.subr.mxu0 0.0
    %3045 = vmatpush1.msra.mxu0 0.0
    %3046 = vmatprep.subr.mxu0 0.0
    %3047 = vmatpush1.msra.mxu0 0.0
    %3048 = vmatprep.subr.mxu0 0.0
    %3049 = vmatpush1.msra.mxu0 0.0
    %3050 = vmatprep.subr.mxu0 0.0
    %3051 = vmatpush1.msra.mxu0 0.0
    %3052 = vmatprep.subr.mxu0 0.0
    %3053 = vmatpush1.msra.mxu0 0.0
    %3054 = vmatprep.subr.mxu0 0.0
    %3055 = vmatpush1.msra.mxu0 0.0
    %3056 = vmatprep.subr.mxu0 0.0
    %3057 = vmatpush1.msra.mxu0 0.0
    %3058 = vmatprep.subr.mxu0 0.0
    %3059 = vmatpush1.msra.mxu0 0.0
    %3060 = vmatprep.subr.mxu0 0.0
    %3061 = vmatpush1.msra.mxu0 0.0
    %3062 = vmatprep.subr.mxu0 0.0
    %3063 = vmatpush1.msra.mxu0 0.0
    %3064 = vmatprep.subr.mxu0 0.0
    %3065 = vmatpush1.msra.mxu0 0.0
    %3066 = vmatprep.subr.mxu0 0.0
    %3067 = vmatpush1.msra.mxu0 0.0
    %3068 = vmatprep.subr.mxu0 0.0
    %3069 = vmatpush1.msra.mxu0 0.0
    %3070 = vmatprep.subr.mxu0 0.0
    %3071 = vmatpush1.msra.mxu0 0.0
    %3072 = vmatprep.subr.mxu0 0.0
    %3073 = vmatpush1.msra.mxu0 %v3022
    %3074 = vmatprep.subr.mxu0 0.0
    %3075 = vmatpush1.msra.mxu0 %v3021
    %3076 = vmatprep.subr.mxu0 0.0
    %3077 = vmatpush2.msra.mxu0 0.0
    %3078 = vmatprep.subr.mxu0 0.0
    %3079 = vmatpush2.msra.mxu0 0.0
    %3080 = vmatprep.subr.mxu0 0.0
    %3081 = vmatpush2.msra.mxu0 0.0
    %3082 = vmatprep.subr.mxu0 0.0
    %3083 = vmatpush2.msra.mxu0 0.0
    %3084 = vmatprep.subr.mxu0 0.0
    %3085 = vmatpush2.msra.mxu0 0.0
    %3086 = vmatprep.subr.mxu0 0.0
    %3087 = vmatpush2.msra.mxu0 0.0
    %3088 = vmatprep.subr.mxu0 0.0
    %3089 = vmatpush2.msra.mxu0 0.0
    %3090 = vmatprep.subr.mxu0 0.0
    %3091 = vmatpush2.msra.mxu0 0.0
    %3092 = vmatprep.subr.mxu0 0.0
    %3093 = vmatpush2.msra.mxu0 0.0
    %3094 = vmatprep.subr.mxu0 0.0
    %3095 = vmatpush2.msra.mxu0 0.0
    %3096 = vmatprep.subr.mxu0 0.0
    %3097 = vmatpush2.msra.mxu0 0.0
    %3098 = vmatprep.subr.mxu0 0.0
    %3099 = vmatpush2.msra.mxu0 0.0
    %3100 = vmatprep.subr.mxu0 0.0
    %3101 = vmatpush2.msra.mxu0 0.0
    %3102 = vmatprep.subr.mxu0 0.0
    %3103 = vmatpush2.msra.mxu0 0.0
    %3104 = vmatprep.subr.mxu0 0.0
    %3105 = vmatpush2.msra.mxu0 0.0
    %3106 = vmatprep.subr.mxu0 0.0
    %3107 = vmatpush2.msra.mxu0 0.0
    %3108 = vmatprep.mubr.f32.mxu0 0.0
    %3109 = vmatmul.mubr.f32.gmra.mxu0 %v3024
    %v3110 = vpop.f32.mrf.mxu0
    %v3111 = vadd.f32 0.0, %v3110
    %v3112 = vpop.f32.mrf.mxu0
    %3113 = vmatprep.mubr.f32.mxu0 0.0
    %3114 = vmatmul.mubr.f32.gmra.mxu0 %v3027
    %v3115 = vpop.f32.mrf.mxu0
    %v3116 = vpop.f32.mrf.mxu0
    %3117 = vmatprep.mubr.f32.mxu0 0.0
    %3118 = vmatmul.mubr.f32.gmra.mxu0 %v3030
    %v3119 = vpop.f32.mrf.mxu0
    %v3120 = vpop.f32.mrf.mxu0
    %3121 = vmatprep.mubr.f32.mxu0 0.0
    %3122 = vmatmul.mubr.f32.gmra.mxu0 %v3033
    %v3123 = vpop.f32.mrf.mxu0
    %v3124 = vadd.f32 0.0, %v3123
    %v3125 = vpop.f32.mrf.mxu0
    %3126 = vmatprep.mubr.f32.mxu0 0.0
    %3127 = vmatmul.mubr.f32.gmra.mxu0 %v3036
    %v3128 = vpop.f32.mrf.mxu0
    %v3129 = vpop.f32.mrf.mxu0
    %3130 = vmatprep.mubr.f32.mxu0 0.0
    %3131 = vmatmul.mubr.f32.gmra.mxu0 %v3039
    %v3132 = vpop.f32.mrf.mxu0
    %v3133 = vpop.f32.mrf.mxu0
    %3134 = vmatprep.mubr.f32.mxu0 0.0
    %3135 = vmatmul.mubr.f32.gmra.mxu0 %v3042
    %v3136 = vpop.f32.mrf.mxu0
    %v3137 = vpop.f32.mrf.mxu0
    %3138 = vdwg.mxu0
    %v3139 = vadd.f32 %v3011, %v3111
    %v3140 = vadd.f32 %v3012, %v3124
    %v3141 = vld [vmem:[#allocation3 + $0x6] sm:$0xff]
    %v3142 = vld [vmem:[#allocation3 + $0xe] sm:$0xff]
    %v3143 = vld [vmem:[#allocation3 + $0x16] sm:$0xff]
    %v3144 = vld [vmem:[#allocation3 + $0x1e] sm:$0xff]
    %v3145 = vld [vmem:[#allocation3 + $0x26] sm:$0xff]
    %v3146 = vld [vmem:[#allocation3 + $0x2e] sm:$0xff]
    %v3147 = vld [vmem:[#allocation3 + $0x36] sm:$0x3]
    %s3148 = scalar_lea.vmem %s5, 64
    %v3149 = vld [vmem:[%s3148] sm:$0xff]
    %v3150 = vld [vmem:[%s3148 + $0x8] sm:$0xff]
    %v3152 = vsel %vm2625, %v3141, 0
    %v3155 = vsel %vm2625, %v3142, 0
    %v3158 = vsel %vm2625, %v3143, 0
    %v3161 = vsel %vm2625, %v3144, 0
    %v3164 = vsel %vm2625, %v3145, 0
    %v3167 = vsel %vm2625, %v3146, 0
    %v3170 = vsel %vm2625, %v3147, 0
    %3172 = vmatprep.subr.mxu0 0.0
    %3173 = vmatpush1.msra.mxu0 0.0
    %3174 = vmatprep.subr.mxu0 0.0
    %3175 = vmatpush1.msra.mxu0 0.0
    %3176 = vmatprep.subr.mxu0 0.0
    %3177 = vmatpush1.msra.mxu0 0.0
    %3178 = vmatprep.subr.mxu0 0.0
    %3179 = vmatpush1.msra.mxu0 0.0
    %3180 = vmatprep.subr.mxu0 0.0
    %3181 = vmatpush1.msra.mxu0 0.0
    %3182 = vmatprep.subr.mxu0 0.0
    %3183 = vmatpush1.msra.mxu0 0.0
    %3184 = vmatprep.subr.mxu0 0.0
    %3185 = vmatpush1.msra.mxu0 0.0
    %3186 = vmatprep.subr.mxu0 0.0
    %3187 = vmatpush1.msra.mxu0 0.0
    %3188 = vmatprep.subr.mxu0 0.0
    %3189 = vmatpush1.msra.mxu0 0.0
    %3190 = vmatprep.subr.mxu0 0.0
    %3191 = vmatpush1.msra.mxu0 0.0
    %3192 = vmatprep.subr.mxu0 0.0
    %3193 = vmatpush1.msra.mxu0 0.0
    %3194 = vmatprep.subr.mxu0 0.0
    %3195 = vmatpush1.msra.mxu0 0.0
    %3196 = vmatprep.subr.mxu0 0.0
    %3197 = vmatpush1.msra.mxu0 0.0
    %3198 = vmatprep.subr.mxu0 0.0
    %3199 = vmatpush1.msra.mxu0 0.0
    %3200 = vmatprep.subr.mxu0 0.0
    %3201 = vmatpush1.msra.mxu0 %v3150
    %3202 = vmatprep.subr.mxu0 0.0
    %3203 = vmatpush1.msra.mxu0 %v3149
    %3204 = vmatprep.subr.mxu0 0.0
    %3205 = vmatpush2.msra.mxu0 0.0
    %3206 = vmatprep.subr.mxu0 0.0
    %3207 = vmatpush2.msra.mxu0 0.0
    %3208 = vmatprep.subr.mxu0 0.0
    %3209 = vmatpush2.msra.mxu0 0.0
    %3210 = vmatprep.subr.mxu0 0.0
    %3211 = vmatpush2.msra.mxu0 0.0
    %3212 = vmatprep.subr.mxu0 0.0
    %3213 = vmatpush2.msra.mxu0 0.0
    %3214 = vmatprep.subr.mxu0 0.0
    %3215 = vmatpush2.msra.mxu0 0.0
    %3216 = vmatprep.subr.mxu0 0.0
    %3217 = vmatpush2.msra.mxu0 0.0
    %3218 = vmatprep.subr.mxu0 0.0
    %3219 = vmatpush2.msra.mxu0 0.0
    %3220 = vmatprep.subr.mxu0 0.0
    %3221 = vmatpush2.msra.mxu0 0.0
    %3222 = vmatprep.subr.mxu0 0.0
    %3223 = vmatpush2.msra.mxu0 0.0
    %3224 = vmatprep.subr.mxu0 0.0
    %3225 = vmatpush2.msra.mxu0 0.0
    %3226 = vmatprep.subr.mxu0 0.0
    %3227 = vmatpush2.msra.mxu0 0.0
    %3228 = vmatprep.subr.mxu0 0.0
    %3229 = vmatpush2.msra.mxu0 0.0
    %3230 = vmatprep.subr.mxu0 0.0
    %3231 = vmatpush2.msra.mxu0 0.0
    %3232 = vmatprep.subr.mxu0 0.0
    %3233 = vmatpush2.msra.mxu0 0.0
    %3234 = vmatprep.subr.mxu0 0.0
    %3235 = vmatpush2.msra.mxu0 0.0
    %3236 = vmatprep.mubr.f32.mxu0 0.0
    %3237 = vmatmul.mubr.f32.gmra.mxu0 %v3152
    %v3238 = vpop.f32.mrf.mxu0
    %v3239 = vadd.f32 0.0, %v3238
    %v3240 = vpop.f32.mrf.mxu0
    %3241 = vmatprep.mubr.f32.mxu0 0.0
    %3242 = vmatmul.mubr.f32.gmra.mxu0 %v3155
    %v3243 = vpop.f32.mrf.mxu0
    %v3244 = vpop.f32.mrf.mxu0
    %3245 = vmatprep.mubr.f32.mxu0 0.0
    %3246 = vmatmul.mubr.f32.gmra.mxu0 %v3158
    %v3247 = vpop.f32.mrf.mxu0
    %v3248 = vpop.f32.mrf.mxu0
    %3249 = vmatprep.mubr.f32.mxu0 0.0
    %3250 = vmatmul.mubr.f32.gmra.mxu0 %v3161
    %v3251 = vpop.f32.mrf.mxu0
    %v3252 = vadd.f32 0.0, %v3251
    %v3253 = vpop.f32.mrf.mxu0
    %3254 = vmatprep.mubr.f32.mxu0 0.0
    %3255 = vmatmul.mubr.f32.gmra.mxu0 %v3164
    %v3256 = vpop.f32.mrf.mxu0
    %v3257 = vpop.f32.mrf.mxu0
    %3258 = vmatprep.mubr.f32.mxu0 0.0
    %3259 = vmatmul.mubr.f32.gmra.mxu0 %v3167
    %v3260 = vpop.f32.mrf.mxu0
    %v3261 = vpop.f32.mrf.mxu0
    %3262 = vmatprep.mubr.f32.mxu0 0.0
    %3263 = vmatmul.mubr.f32.gmra.mxu0 %v3170
    %v3264 = vpop.f32.mrf.mxu0
    %v3265 = vpop.f32.mrf.mxu0
    %3266 = vdwg.mxu0
    %v3267 = vadd.f32 %v3139, %v3239
    %v3268 = vadd.f32 %v3140, %v3252
    %v3269 = vld [vmem:[#allocation3 + $0x7] sm:$0xff]
    %v3270 = vld [vmem:[#allocation3 + $0xf] sm:$0xff]
    %v3271 = vld [vmem:[#allocation3 + $0x17] sm:$0xff]
    %v3272 = vld [vmem:[#allocation3 + $0x1f] sm:$0xff]
    %v3273 = vld [vmem:[#allocation3 + $0x27] sm:$0xff]
    %v3274 = vld [vmem:[#allocation3 + $0x2f] sm:$0xff]
    %v3275 = vld [vmem:[#allocation3 + $0x37] sm:$0x3]
    %s3276 = scalar_lea.vmem %s5, 80
    %v3277 = vld [vmem:[%s3276] sm:$0xff]
    %v3278 = vld [vmem:[%s3276 + $0x8] sm:$0xff]
    %v3280 = vsel %vm2625, %v3269, 0
    %v3283 = vsel %vm2625, %v3270, 0
    %v3286 = vsel %vm2625, %v3271, 0
    %v3289 = vsel %vm2625, %v3272, 0
    %v3292 = vsel %vm2625, %v3273, 0
    %v3295 = vsel %vm2625, %v3274, 0
    %v3298 = vsel %vm2625, %v3275, 0
    %3300 = vmatprep.subr.mxu0 0.0
    %3301 = vmatpush1.msra.mxu0 0.0
    %3302 = vmatprep.subr.mxu0 0.0
    %3303 = vmatpush1.msra.mxu0 0.0
    %3304 = vmatprep.subr.mxu0 0.0
    %3305 = vmatpush1.msra.mxu0 0.0
    %3306 = vmatprep.subr.mxu0 0.0
    %3307 = vmatpush1.msra.mxu0 0.0
    %3308 = vmatprep.subr.mxu0 0.0
    %3309 = vmatpush1.msra.mxu0 0.0
    %3310 = vmatprep.subr.mxu0 0.0
    %3311 = vmatpush1.msra.mxu0 0.0
    %3312 = vmatprep.subr.mxu0 0.0
    %3313 = vmatpush1.msra.mxu0 0.0
    %3314 = vmatprep.subr.mxu0 0.0
    %3315 = vmatpush1.msra.mxu0 0.0
    %3316 = vmatprep.subr.mxu0 0.0
    %3317 = vmatpush1.msra.mxu0 0.0
    %3318 = vmatprep.subr.mxu0 0.0
    %3319 = vmatpush1.msra.mxu0 0.0
    %3320 = vmatprep.subr.mxu0 0.0
    %3321 = vmatpush1.msra.mxu0 0.0
    %3322 = vmatprep.subr.mxu0 0.0
    %3323 = vmatpush1.msra.mxu0 0.0
    %3324 = vmatprep.subr.mxu0 0.0
    %3325 = vmatpush1.msra.mxu0 0.0
    %3326 = vmatprep.subr.mxu0 0.0
    %3327 = vmatpush1.msra.mxu0 0.0
    %3328 = vmatprep.subr.mxu0 0.0
    %3329 = vmatpush1.msra.mxu0 %v3278
    %3330 = vmatprep.subr.mxu0 0.0
    %3331 = vmatpush1.msra.mxu0 %v3277
    %3332 = vmatprep.subr.mxu0 0.0
    %3333 = vmatpush2.msra.mxu0 0.0
    %3334 = vmatprep.subr.mxu0 0.0
    %3335 = vmatpush2.msra.mxu0 0.0
    %3336 = vmatprep.subr.mxu0 0.0
    %3337 = vmatpush2.msra.mxu0 0.0
    %3338 = vmatprep.subr.mxu0 0.0
    %3339 = vmatpush2.msra.mxu0 0.0
    %3340 = vmatprep.subr.mxu0 0.0
    %3341 = vmatpush2.msra.mxu0 0.0
    %3342 = vmatprep.subr.mxu0 0.0
    %3343 = vmatpush2.msra.mxu0 0.0
    %3344 = vmatprep.subr.mxu0 0.0
    %3345 = vmatpush2.msra.mxu0 0.0
    %3346 = vmatprep.subr.mxu0 0.0
    %3347 = vmatpush2.msra.mxu0 0.0
    %3348 = vmatprep.subr.mxu0 0.0
    %3349 = vmatpush2.msra.mxu0 0.0
    %3350 = vmatprep.subr.mxu0 0.0
    %3351 = vmatpush2.msra.mxu0 0.0
    %3352 = vmatprep.subr.mxu0 0.0
    %3353 = vmatpush2.msra.mxu0 0.0
    %3354 = vmatprep.subr.mxu0 0.0
    %3355 = vmatpush2.msra.mxu0 0.0
    %3356 = vmatprep.subr.mxu0 0.0
    %3357 = vmatpush2.msra.mxu0 0.0
    %3358 = vmatprep.subr.mxu0 0.0
    %3359 = vmatpush2.msra.mxu0 0.0
    %3360 = vmatprep.subr.mxu0 0.0
    %3361 = vmatpush2.msra.mxu0 0.0
    %3362 = vmatprep.subr.mxu0 0.0
    %3363 = vmatpush2.msra.mxu0 0.0
    %3364 = vmatprep.mubr.f32.mxu0 0.0
    %3365 = vmatmul.mubr.f32.gmra.mxu0 %v3280
    %v3366 = vpop.f32.mrf.mxu0
    %v3367 = vadd.f32 0.0, %v3366
    %v3368 = vpop.f32.mrf.mxu0
    %3369 = vmatprep.mubr.f32.mxu0 0.0
    %3370 = vmatmul.mubr.f32.gmra.mxu0 %v3283
    %v3371 = vpop.f32.mrf.mxu0
    %v3372 = vpop.f32.mrf.mxu0
    %3373 = vmatprep.mubr.f32.mxu0 0.0
    %3374 = vmatmul.mubr.f32.gmra.mxu0 %v3286
    %v3375 = vpop.f32.mrf.mxu0
    %v3376 = vpop.f32.mrf.mxu0
    %3377 = vmatprep.mubr.f32.mxu0 0.0
    %3378 = vmatmul.mubr.f32.gmra.mxu0 %v3289
    %v3379 = vpop.f32.mrf.mxu0
    %v3380 = vadd.f32 0.0, %v3379
    %v3381 = vpop.f32.mrf.mxu0
    %3382 = vmatprep.mubr.f32.mxu0 0.0
    %3383 = vmatmul.mubr.f32.gmra.mxu0 %v3292
    %v3384 = vpop.f32.mrf.mxu0
    %v3385 = vpop.f32.mrf.mxu0
    %3386 = vmatprep.mubr.f32.mxu0 0.0
    %3387 = vmatmul.mubr.f32.gmra.mxu0 %v3295
    %v3388 = vpop.f32.mrf.mxu0
    %v3389 = vpop.f32.mrf.mxu0
    %3390 = vmatprep.mubr.f32.mxu0 0.0
    %3391 = vmatmul.mubr.f32.gmra.mxu0 %v3298
    %v3392 = vpop.f32.mrf.mxu0
    %v3393 = vpop.f32.mrf.mxu0
    %3394 = vdwg.mxu0
    %v3395 = vadd.f32 %v3267, %v3367
    %v3396 = vadd.f32 %v3268, %v3380
    %v3397 = vld [vmem:[#allocation3 + $0xa] sm:$0xff]
    %v3398 = vld [vmem:[#allocation3 + $0x12] sm:$0xff]
    %v3399 = vld [vmem:[#allocation3 + $0x1a] sm:$0xff]
    %v3400 = vld [vmem:[#allocation3 + $0x22] sm:$0xff]
    %v3401 = vld [vmem:[#allocation3 + $0x2a] sm:$0xff]
    %v3402 = vld [vmem:[#allocation3 + $0x32] sm:$0xff]
    %v3403 = vld [vmem:[#allocation3 + $0x3a] sm:$0x3]
    %s3404 = scalar_lea.vmem %s5, 96
    %v3405 = vld [vmem:[%s3404] sm:$0xff]
    %v3406 = vld [vmem:[%s3404 + $0x8] sm:$0xff]
    %v3408 = vsel %vm2625, %v3397, 0
    %v3411 = vsel %vm2625, %v3398, 0
    %v3414 = vsel %vm2625, %v3399, 0
    %v3417 = vsel %vm2625, %v3400, 0
    %v3420 = vsel %vm2625, %v3401, 0
    %v3423 = vsel %vm2625, %v3402, 0
    %v3426 = vsel %vm2625, %v3403, 0
    %3428 = vmatprep.subr.mxu0 0.0
    %3429 = vmatpush1.msra.mxu0 0.0
    %3430 = vmatprep.subr.mxu0 0.0
    %3431 = vmatpush1.msra.mxu0 0.0
    %3432 = vmatprep.subr.mxu0 0.0
    %3433 = vmatpush1.msra.mxu0 0.0
    %3434 = vmatprep.subr.mxu0 0.0
    %3435 = vmatpush1.msra.mxu0 0.0
    %3436 = vmatprep.subr.mxu0 0.0
    %3437 = vmatpush1.msra.mxu0 0.0
    %3438 = vmatprep.subr.mxu0 0.0
    %3439 = vmatpush1.msra.mxu0 0.0
    %3440 = vmatprep.subr.mxu0 0.0
    %3441 = vmatpush1.msra.mxu0 0.0
    %3442 = vmatprep.subr.mxu0 0.0
    %3443 = vmatpush1.msra.mxu0 0.0
    %3444 = vmatprep.subr.mxu0 0.0
    %3445 = vmatpush1.msra.mxu0 0.0
    %3446 = vmatprep.subr.mxu0 0.0
    %3447 = vmatpush1.msra.mxu0 0.0
    %3448 = vmatprep.subr.mxu0 0.0
    %3449 = vmatpush1.msra.mxu0 0.0
    %3450 = vmatprep.subr.mxu0 0.0
    %3451 = vmatpush1.msra.mxu0 0.0
    %3452 = vmatprep.subr.mxu0 0.0
    %3453 = vmatpush1.msra.mxu0 0.0
    %3454 = vmatprep.subr.mxu0 0.0
    %3455 = vmatpush1.msra.mxu0 0.0
    %3456 = vmatprep.subr.mxu0 0.0
    %3457 = vmatpush1.msra.mxu0 %v3406
    %3458 = vmatprep.subr.mxu0 0.0
    %3459 = vmatpush1.msra.mxu0 %v3405
    %3460 = vmatprep.subr.mxu0 0.0
    %3461 = vmatpush2.msra.mxu0 0.0
    %3462 = vmatprep.subr.mxu0 0.0
    %3463 = vmatpush2.msra.mxu0 0.0
    %3464 = vmatprep.subr.mxu0 0.0
    %3465 = vmatpush2.msra.mxu0 0.0
    %3466 = vmatprep.subr.mxu0 0.0
    %3467 = vmatpush2.msra.mxu0 0.0
    %3468 = vmatprep.subr.mxu0 0.0
    %3469 = vmatpush2.msra.mxu0 0.0
    %3470 = vmatprep.subr.mxu0 0.0
    %3471 = vmatpush2.msra.mxu0 0.0
    %3472 = vmatprep.subr.mxu0 0.0
    %3473 = vmatpush2.msra.mxu0 0.0
    %3474 = vmatprep.subr.mxu0 0.0
    %3475 = vmatpush2.msra.mxu0 0.0
    %3476 = vmatprep.subr.mxu0 0.0
    %3477 = vmatpush2.msra.mxu0 0.0
    %3478 = vmatprep.subr.mxu0 0.0
    %3479 = vmatpush2.msra.mxu0 0.0
    %3480 = vmatprep.subr.mxu0 0.0
    %3481 = vmatpush2.msra.mxu0 0.0
    %3482 = vmatprep.subr.mxu0 0.0
    %3483 = vmatpush2.msra.mxu0 0.0
    %3484 = vmatprep.subr.mxu0 0.0
    %3485 = vmatpush2.msra.mxu0 0.0
    %3486 = vmatprep.subr.mxu0 0.0
    %3487 = vmatpush2.msra.mxu0 0.0
    %3488 = vmatprep.subr.mxu0 0.0
    %3489 = vmatpush2.msra.mxu0 0.0
    %3490 = vmatprep.subr.mxu0 0.0
    %3491 = vmatpush2.msra.mxu0 0.0
    %3492 = vmatprep.mubr.f32.mxu0 0.0
    %3493 = vmatmul.mubr.f32.gmra.mxu0 %v3408
    %v3494 = vpop.f32.mrf.mxu0
    %v3495 = vadd.f32 0.0, %v3494
    %v3496 = vpop.f32.mrf.mxu0
    %3497 = vmatprep.mubr.f32.mxu0 0.0
    %3498 = vmatmul.mubr.f32.gmra.mxu0 %v3411
    %v3499 = vpop.f32.mrf.mxu0
    %v3500 = vpop.f32.mrf.mxu0
    %3501 = vmatprep.mubr.f32.mxu0 0.0
    %3502 = vmatmul.mubr.f32.gmra.mxu0 %v3414
    %v3503 = vpop.f32.mrf.mxu0
    %v3504 = vpop.f32.mrf.mxu0
    %3505 = vmatprep.mubr.f32.mxu0 0.0
    %3506 = vmatmul.mubr.f32.gmra.mxu0 %v3417
    %v3507 = vpop.f32.mrf.mxu0
    %v3508 = vadd.f32 0.0, %v3507
    %v3509 = vpop.f32.mrf.mxu0
    %3510 = vmatprep.mubr.f32.mxu0 0.0
    %3511 = vmatmul.mubr.f32.gmra.mxu0 %v3420
    %v3512 = vpop.f32.mrf.mxu0
    %v3513 = vpop.f32.mrf.mxu0
    %3514 = vmatprep.mubr.f32.mxu0 0.0
    %3515 = vmatmul.mubr.f32.gmra.mxu0 %v3423
    %v3516 = vpop.f32.mrf.mxu0
    %v3517 = vpop.f32.mrf.mxu0
    %3518 = vmatprep.mubr.f32.mxu0 0.0
    %3519 = vmatmul.mubr.f32.gmra.mxu0 %v3426
    %v3520 = vpop.f32.mrf.mxu0
    %v3521 = vpop.f32.mrf.mxu0
    %3522 = vdwg.mxu0
    %v3523 = vadd.f32 %v3395, %v3495
    %v3524 = vadd.f32 %v3396, %v3508
    %v3525 = vld [vmem:[#allocation3 + $0xb] sm:$0xff]
    %v3526 = vld [vmem:[#allocation3 + $0x13] sm:$0xff]
    %v3527 = vld [vmem:[#allocation3 + $0x1b] sm:$0xff]
    %v3528 = vld [vmem:[#allocation3 + $0x23] sm:$0xff]
    %v3529 = vld [vmem:[#allocation3 + $0x2b] sm:$0xff]
    %v3530 = vld [vmem:[#allocation3 + $0x33] sm:$0xff]
    %v3531 = vld [vmem:[#allocation3 + $0x3b] sm:$0x3]
    %s3532 = scalar_lea.vmem %s5, 112
    %v3533 = vld [vmem:[%s3532] sm:$0xff]
    %v3534 = vld [vmem:[%s3532 + $0x8] sm:$0xff]
    %v3536 = vsel %vm2625, %v3525, 0
    %v3539 = vsel %vm2625, %v3526, 0
    %v3542 = vsel %vm2625, %v3527, 0
    %v3545 = vsel %vm2625, %v3528, 0
    %v3548 = vsel %vm2625, %v3529, 0
    %v3551 = vsel %vm2625, %v3530, 0
    %v3554 = vsel %vm2625, %v3531, 0
    %3556 = vmatprep.subr.mxu0 0.0
    %3557 = vmatpush1.msra.mxu0 0.0
    %3558 = vmatprep.subr.mxu0 0.0
    %3559 = vmatpush1.msra.mxu0 0.0
    %3560 = vmatprep.subr.mxu0 0.0
    %3561 = vmatpush1.msra.mxu0 0.0
    %3562 = vmatprep.subr.mxu0 0.0
    %3563 = vmatpush1.msra.mxu0 0.0
    %3564 = vmatprep.subr.mxu0 0.0
    %3565 = vmatpush1.msra.mxu0 0.0
    %3566 = vmatprep.subr.mxu0 0.0
    %3567 = vmatpush1.msra.mxu0 0.0
    %3568 = vmatprep.subr.mxu0 0.0
    %3569 = vmatpush1.msra.mxu0 0.0
    %3570 = vmatprep.subr.mxu0 0.0
    %3571 = vmatpush1.msra.mxu0 0.0
    %3572 = vmatprep.subr.mxu0 0.0
    %3573 = vmatpush1.msra.mxu0 0.0
    %3574 = vmatprep.subr.mxu0 0.0
    %3575 = vmatpush1.msra.mxu0 0.0
    %3576 = vmatprep.subr.mxu0 0.0
    %3577 = vmatpush1.msra.mxu0 0.0
    %3578 = vmatprep.subr.mxu0 0.0
    %3579 = vmatpush1.msra.mxu0 0.0
    %3580 = vmatprep.subr.mxu0 0.0
    %3581 = vmatpush1.msra.mxu0 0.0
    %3582 = vmatprep.subr.mxu0 0.0
    %3583 = vmatpush1.msra.mxu0 0.0
    %3584 = vmatprep.subr.mxu0 0.0
    %3585 = vmatpush1.msra.mxu0 %v3534
    %3586 = vmatprep.subr.mxu0 0.0
    %3587 = vmatpush1.msra.mxu0 %v3533
    %3588 = vmatprep.subr.mxu0 0.0
    %3589 = vmatpush2.msra.mxu0 0.0
    %3590 = vmatprep.subr.mxu0 0.0
    %3591 = vmatpush2.msra.mxu0 0.0
    %3592 = vmatprep.subr.mxu0 0.0
    %3593 = vmatpush2.msra.mxu0 0.0
    %3594 = vmatprep.subr.mxu0 0.0
    %3595 = vmatpush2.msra.mxu0 0.0
    %3596 = vmatprep.subr.mxu0 0.0
    %3597 = vmatpush2.msra.mxu0 0.0
    %3598 = vmatprep.subr.mxu0 0.0
    %3599 = vmatpush2.msra.mxu0 0.0
    %3600 = vmatprep.subr.mxu0 0.0
    %3601 = vmatpush2.msra.mxu0 0.0
    %3602 = vmatprep.subr.mxu0 0.0
    %3603 = vmatpush2.msra.mxu0 0.0
    %3604 = vmatprep.subr.mxu0 0.0
    %3605 = vmatpush2.msra.mxu0 0.0
    %3606 = vmatprep.subr.mxu0 0.0
    %3607 = vmatpush2.msra.mxu0 0.0
    %3608 = vmatprep.subr.mxu0 0.0
    %3609 = vmatpush2.msra.mxu0 0.0
    %3610 = vmatprep.subr.mxu0 0.0
    %3611 = vmatpush2.msra.mxu0 0.0
    %3612 = vmatprep.subr.mxu0 0.0
    %3613 = vmatpush2.msra.mxu0 0.0
    %3614 = vmatprep.subr.mxu0 0.0
    %3615 = vmatpush2.msra.mxu0 0.0
    %3616 = vmatprep.subr.mxu0 0.0
    %3617 = vmatpush2.msra.mxu0 0.0
    %3618 = vmatprep.subr.mxu0 0.0
    %3619 = vmatpush2.msra.mxu0 0.0
    %3620 = vmatprep.mubr.f32.mxu0 0.0
    %3621 = vmatmul.mubr.f32.gmra.mxu0 %v3536
    %v3622 = vpop.f32.mrf.mxu0
    %v3623 = vadd.f32 0.0, %v3622
    %v3624 = vpop.f32.mrf.mxu0
    %3625 = vmatprep.mubr.f32.mxu0 0.0
    %3626 = vmatmul.mubr.f32.gmra.mxu0 %v3539
    %v3627 = vpop.f32.mrf.mxu0
    %v3628 = vpop.f32.mrf.mxu0
    %3629 = vmatprep.mubr.f32.mxu0 0.0
    %3630 = vmatmul.mubr.f32.gmra.mxu0 %v3542
    %v3631 = vpop.f32.mrf.mxu0
    %v3632 = vpop.f32.mrf.mxu0
    %3633 = vmatprep.mubr.f32.mxu0 0.0
    %3634 = vmatmul.mubr.f32.gmra.mxu0 %v3545
    %v3635 = vpop.f32.mrf.mxu0
    %v3636 = vadd.f32 0.0, %v3635
    %v3637 = vpop.f32.mrf.mxu0
    %3638 = vmatprep.mubr.f32.mxu0 0.0
    %3639 = vmatmul.mubr.f32.gmra.mxu0 %v3548
    %v3640 = vpop.f32.mrf.mxu0
    %v3641 = vpop.f32.mrf.mxu0
    %3642 = vmatprep.mubr.f32.mxu0 0.0
    %3643 = vmatmul.mubr.f32.gmra.mxu0 %v3551
    %v3644 = vpop.f32.mrf.mxu0
    %v3645 = vpop.f32.mrf.mxu0
    %3646 = vmatprep.mubr.f32.mxu0 0.0
    %3647 = vmatmul.mubr.f32.gmra.mxu0 %v3554
    %v3648 = vpop.f32.mrf.mxu0
    %v3649 = vpop.f32.mrf.mxu0
    %3650 = vdwg.mxu0
    %v3651 = vadd.f32 %v3523, %v3623
    %v3652 = vadd.f32 %v3524, %v3636
    %v3653 = vld [vmem:[#allocation3 + $0xc] sm:$0xff]
    %v3654 = vld [vmem:[#allocation3 + $0x14] sm:$0xff]
    %v3655 = vld [vmem:[#allocation3 + $0x1c] sm:$0xff]
    %v3656 = vld [vmem:[#allocation3 + $0x24] sm:$0xff]
    %v3657 = vld [vmem:[#allocation3 + $0x2c] sm:$0xff]
    %v3658 = vld [vmem:[#allocation3 + $0x34] sm:$0xff]
    %v3659 = vld [vmem:[#allocation3 + $0x3c] sm:$0x3]
    %s3660 = scalar_lea.vmem %s5, 128
    %v3661 = vld [vmem:[%s3660] sm:$0xff]
    %v3662 = vld [vmem:[%s3660 + $0x8] sm:$0xff]
    %v3664 = vsel %vm2625, %v3653, 0
    %v3667 = vsel %vm2625, %v3654, 0
    %v3670 = vsel %vm2625, %v3655, 0
    %v3673 = vsel %vm2625, %v3656, 0
    %v3676 = vsel %vm2625, %v3657, 0
    %v3679 = vsel %vm2625, %v3658, 0
    %v3682 = vsel %vm2625, %v3659, 0
    %3684 = vmatprep.subr.mxu0 0.0
    %3685 = vmatpush1.msra.mxu0 0.0
    %3686 = vmatprep.subr.mxu0 0.0
    %3687 = vmatpush1.msra.mxu0 0.0
    %3688 = vmatprep.subr.mxu0 0.0
    %3689 = vmatpush1.msra.mxu0 0.0
    %3690 = vmatprep.subr.mxu0 0.0
    %3691 = vmatpush1.msra.mxu0 0.0
    %3692 = vmatprep.subr.mxu0 0.0
    %3693 = vmatpush1.msra.mxu0 0.0
    %3694 = vmatprep.subr.mxu0 0.0
    %3695 = vmatpush1.msra.mxu0 0.0
    %3696 = vmatprep.subr.mxu0 0.0
    %3697 = vmatpush1.msra.mxu0 0.0
    %3698 = vmatprep.subr.mxu0 0.0
    %3699 = vmatpush1.msra.mxu0 0.0
    %3700 = vmatprep.subr.mxu0 0.0
    %3701 = vmatpush1.msra.mxu0 0.0
    %3702 = vmatprep.subr.mxu0 0.0
    %3703 = vmatpush1.msra.mxu0 0.0
    %3704 = vmatprep.subr.mxu0 0.0
    %3705 = vmatpush1.msra.mxu0 0.0
    %3706 = vmatprep.subr.mxu0 0.0
    %3707 = vmatpush1.msra.mxu0 0.0
    %3708 = vmatprep.subr.mxu0 0.0
    %3709 = vmatpush1.msra.mxu0 0.0
    %3710 = vmatprep.subr.mxu0 0.0
    %3711 = vmatpush1.msra.mxu0 0.0
    %3712 = vmatprep.subr.mxu0 0.0
    %3713 = vmatpush1.msra.mxu0 %v3662
    %3714 = vmatprep.subr.mxu0 0.0
    %3715 = vmatpush1.msra.mxu0 %v3661
    %3716 = vmatprep.subr.mxu0 0.0
    %3717 = vmatpush2.msra.mxu0 0.0
    %3718 = vmatprep.subr.mxu0 0.0
    %3719 = vmatpush2.msra.mxu0 0.0
    %3720 = vmatprep.subr.mxu0 0.0
    %3721 = vmatpush2.msra.mxu0 0.0
    %3722 = vmatprep.subr.mxu0 0.0
    %3723 = vmatpush2.msra.mxu0 0.0
    %3724 = vmatprep.subr.mxu0 0.0
    %3725 = vmatpush2.msra.mxu0 0.0
    %3726 = vmatprep.subr.mxu0 0.0
    %3727 = vmatpush2.msra.mxu0 0.0
    %3728 = vmatprep.subr.mxu0 0.0
    %3729 = vmatpush2.msra.mxu0 0.0
    %3730 = vmatprep.subr.mxu0 0.0
    %3731 = vmatpush2.msra.mxu0 0.0
    %3732 = vmatprep.subr.mxu0 0.0
    %3733 = vmatpush2.msra.mxu0 0.0
    %3734 = vmatprep.subr.mxu0 0.0
    %3735 = vmatpush2.msra.mxu0 0.0
    %3736 = vmatprep.subr.mxu0 0.0
    %3737 = vmatpush2.msra.mxu0 0.0
    %3738 = vmatprep.subr.mxu0 0.0
    %3739 = vmatpush2.msra.mxu0 0.0
    %3740 = vmatprep.subr.mxu0 0.0
    %3741 = vmatpush2.msra.mxu0 0.0
    %3742 = vmatprep.subr.mxu0 0.0
    %3743 = vmatpush2.msra.mxu0 0.0
    %3744 = vmatprep.subr.mxu0 0.0
    %3745 = vmatpush2.msra.mxu0 0.0
    %3746 = vmatprep.subr.mxu0 0.0
    %3747 = vmatpush2.msra.mxu0 0.0
    %3748 = vmatprep.mubr.f32.mxu0 0.0
    %3749 = vmatmul.mubr.f32.gmra.mxu0 %v3664
    %v3750 = vpop.f32.mrf.mxu0
    %v3751 = vadd.f32 0.0, %v3750
    %v3752 = vpop.f32.mrf.mxu0
    %3753 = vmatprep.mubr.f32.mxu0 0.0
    %3754 = vmatmul.mubr.f32.gmra.mxu0 %v3667
    %v3755 = vpop.f32.mrf.mxu0
    %v3756 = vpop.f32.mrf.mxu0
    %3757 = vmatprep.mubr.f32.mxu0 0.0
    %3758 = vmatmul.mubr.f32.gmra.mxu0 %v3670
    %v3759 = vpop.f32.mrf.mxu0
    %v3760 = vpop.f32.mrf.mxu0
    %3761 = vmatprep.mubr.f32.mxu0 0.0
    %3762 = vmatmul.mubr.f32.gmra.mxu0 %v3673
    %v3763 = vpop.f32.mrf.mxu0
    %v3764 = vadd.f32 0.0, %v3763
    %v3765 = vpop.f32.mrf.mxu0
    %3766 = vmatprep.mubr.f32.mxu0 0.0
    %3767 = vmatmul.mubr.f32.gmra.mxu0 %v3676
    %v3768 = vpop.f32.mrf.mxu0
    %v3769 = vpop.f32.mrf.mxu0
    %3770 = vmatprep.mubr.f32.mxu0 0.0
    %3771 = vmatmul.mubr.f32.gmra.mxu0 %v3679
    %v3772 = vpop.f32.mrf.mxu0
    %v3773 = vpop.f32.mrf.mxu0
    %3774 = vmatprep.mubr.f32.mxu0 0.0
    %3775 = vmatmul.mubr.f32.gmra.mxu0 %v3682
    %v3776 = vpop.f32.mrf.mxu0
    %v3777 = vpop.f32.mrf.mxu0
    %3778 = vdwg.mxu0
    %v3779 = vadd.f32 %v3651, %v3751
    %v3780 = vadd.f32 %v3652, %v3764
    %v3781 = vld [vmem:[%s6] sm:$0x1]
    %v3783 = vlaneseq
    %v3784 = vshrl.u32 %v3783, 7
    %v3785 = vsub.s32 0, %v3784
    %v3786 = vrot.slane %v3781, %v3785
    %v3788 = vadd.f32 %v3779, %v3786
    %v3789 = vadd.f32 %v3780, %v3786
    %vm3790 = vcmp.ge.f32.partialorder %v3788, 0.0
    %vm3791 = vcmp.ge.f32.partialorder %v3789, 0.0
    %v3792 = vmul.f32 %v3788, 0.01
    %v3793 = vmul.f32 %v3789, 0.01
    %v3794 = vsel %vm3790, %v3788, %v3792
    %v3795 = vsel %vm3791, %v3789, %v3793
    %vm3796 = vcmask 1040384
    %v3797 = vsel %vm3796, %v3794, %v3795
    %v3798 = vld [vmem:[%s7] sm:$0xff]
    %v3799 = vld [vmem:[%s7 + $0x8] sm:$0xff]
    %v3801 = vrot.slane %v3794, 1
    %v3804 = vrot.slane %v3795, 1
    %v3806 = vsel %vm3796, %v3801, %v3804
    %s3807 = scalar_lea.vmem %s7, 16
    %v3808 = vld [vmem:[%s3807] sm:$0xff]
    %v3809 = vld [vmem:[%s3807 + $0x8] sm:$0xff]
    %v3811 = vsel %vm2625, %v3806, 0
    %3813 = vmatprep.subr.mxu0 0.0
    %3814 = vmatpush1.msra.mxu0 0.0
    %3815 = vmatprep.subr.mxu0 0.0
    %3816 = vmatpush1.msra.mxu0 0.0
    %3817 = vmatprep.subr.mxu0 0.0
    %3818 = vmatpush1.msra.mxu0 0.0
    %3819 = vmatprep.subr.mxu0 0.0
    %3820 = vmatpush1.msra.mxu0 0.0
    %3821 = vmatprep.subr.mxu0 0.0
    %3822 = vmatpush1.msra.mxu0 0.0
    %3823 = vmatprep.subr.mxu0 0.0
    %3824 = vmatpush1.msra.mxu0 0.0
    %3825 = vmatprep.subr.mxu0 0.0
    %3826 = vmatpush1.msra.mxu0 0.0
    %3827 = vmatprep.subr.mxu0 0.0
    %3828 = vmatpush1.msra.mxu0 0.0
    %3829 = vmatprep.subr.mxu0 0.0
    %3830 = vmatpush1.msra.mxu0 0.0
    %3831 = vmatprep.subr.mxu0 0.0
    %3832 = vmatpush1.msra.mxu0 0.0
    %3833 = vmatprep.subr.mxu0 0.0
    %3834 = vmatpush1.msra.mxu0 0.0
    %3835 = vmatprep.subr.mxu0 0.0
    %3836 = vmatpush1.msra.mxu0 0.0
    %3837 = vmatprep.subr.mxu0 0.0
    %3838 = vmatpush1.msra.mxu0 0.0
    %3839 = vmatprep.subr.mxu0 0.0
    %3840 = vmatpush1.msra.mxu0 0.0
    %3841 = vmatprep.subr.mxu0 0.0
    %3842 = vmatpush1.msra.mxu0 %v3809
    %3843 = vmatprep.subr.mxu0 0.0
    %3844 = vmatpush1.msra.mxu0 %v3808
    %3845 = vmatprep.subr.mxu0 0.0
    %3846 = vmatpush2.msra.mxu0 0.0
    %3847 = vmatprep.subr.mxu0 0.0
    %3848 = vmatpush2.msra.mxu0 0.0
    %3849 = vmatprep.subr.mxu0 0.0
    %3850 = vmatpush2.msra.mxu0 0.0
    %3851 = vmatprep.subr.mxu0 0.0
    %3852 = vmatpush2.msra.mxu0 0.0
    %3853 = vmatprep.subr.mxu0 0.0
    %3854 = vmatpush2.msra.mxu0 0.0
    %3855 = vmatprep.subr.mxu0 0.0
    %3856 = vmatpush2.msra.mxu0 0.0
    %3857 = vmatprep.subr.mxu0 0.0
    %3858 = vmatpush2.msra.mxu0 0.0
    %3859 = vmatprep.subr.mxu0 0.0
    %3860 = vmatpush2.msra.mxu0 0.0
    %3861 = vmatprep.subr.mxu0 0.0
    %3862 = vmatpush2.msra.mxu0 0.0
    %3863 = vmatprep.subr.mxu0 0.0
    %3864 = vmatpush2.msra.mxu0 0.0
    %3865 = vmatprep.subr.mxu0 0.0
    %3866 = vmatpush2.msra.mxu0 0.0
    %3867 = vmatprep.subr.mxu0 0.0
    %3868 = vmatpush2.msra.mxu0 0.0
    %3869 = vmatprep.subr.mxu0 0.0
    %3870 = vmatpush2.msra.mxu0 0.0
    %3871 = vmatprep.subr.mxu0 0.0
    %3872 = vmatpush2.msra.mxu0 0.0
    %3873 = vmatprep.subr.mxu0 0.0
    %3874 = vmatpush2.msra.mxu0 0.0
    %3875 = vmatprep.subr.mxu0 0.0
    %3876 = vmatpush2.msra.mxu0 0.0
    %3877 = vmatprep.mubr.f32.mxu0 0.0
    %3878 = vmatmul.mubr.f32.gmra.mxu0 %v3811
    %v3879 = vpop.f32.mrf.mxu0
    %v3880 = vadd.f32 0.0, %v3879
    %v3881 = vpop.f32.mrf.mxu0
    %3882 = vdwg.mxu0
    %v3884 = vsel %vm2625, %v3797, 0
    %3886 = vmatprep.subr.mxu0 0.0
    %3887 = vmatpush1.msra.mxu0 0.0
    %3888 = vmatprep.subr.mxu0 0.0
    %3889 = vmatpush1.msra.mxu0 0.0
    %3890 = vmatprep.subr.mxu0 0.0
    %3891 = vmatpush1.msra.mxu0 0.0
    %3892 = vmatprep.subr.mxu0 0.0
    %3893 = vmatpush1.msra.mxu0 0.0
    %3894 = vmatprep.subr.mxu0 0.0
    %3895 = vmatpush1.msra.mxu0 0.0
    %3896 = vmatprep.subr.mxu0 0.0
    %3897 = vmatpush1.msra.mxu0 0.0
    %3898 = vmatprep.subr.mxu0 0.0
    %3899 = vmatpush1.msra.mxu0 0.0
    %3900 = vmatprep.subr.mxu0 0.0
    %3901 = vmatpush1.msra.mxu0 0.0
    %3902 = vmatprep.subr.mxu0 0.0
    %3903 = vmatpush1.msra.mxu0 0.0
    %3904 = vmatprep.subr.mxu0 0.0
    %3905 = vmatpush1.msra.mxu0 0.0
    %3906 = vmatprep.subr.mxu0 0.0
    %3907 = vmatpush1.msra.mxu0 0.0
    %3908 = vmatprep.subr.mxu0 0.0
    %3909 = vmatpush1.msra.mxu0 0.0
    %3910 = vmatprep.subr.mxu0 0.0
    %3911 = vmatpush1.msra.mxu0 0.0
    %3912 = vmatprep.subr.mxu0 0.0
    %3913 = vmatpush1.msra.mxu0 0.0
    %3914 = vmatprep.subr.mxu0 0.0
    %3915 = vmatpush1.msra.mxu0 %v3799
    %3916 = vmatprep.subr.mxu0 0.0
    %3917 = vmatpush1.msra.mxu0 %v3798
    %3918 = vmatprep.subr.mxu0 0.0
    %3919 = vmatpush2.msra.mxu0 0.0
    %3920 = vmatprep.subr.mxu0 0.0
    %3921 = vmatpush2.msra.mxu0 0.0
    %3922 = vmatprep.subr.mxu0 0.0
    %3923 = vmatpush2.msra.mxu0 0.0
    %3924 = vmatprep.subr.mxu0 0.0
    %3925 = vmatpush2.msra.mxu0 0.0
    %3926 = vmatprep.subr.mxu0 0.0
    %3927 = vmatpush2.msra.mxu0 0.0
    %3928 = vmatprep.subr.mxu0 0.0
    %3929 = vmatpush2.msra.mxu0 0.0
    %3930 = vmatprep.subr.mxu0 0.0
    %3931 = vmatpush2.msra.mxu0 0.0
    %3932 = vmatprep.subr.mxu0 0.0
    %3933 = vmatpush2.msra.mxu0 0.0
    %3934 = vmatprep.subr.mxu0 0.0
    %3935 = vmatpush2.msra.mxu0 0.0
    %3936 = vmatprep.subr.mxu0 0.0
    %3937 = vmatpush2.msra.mxu0 0.0
    %3938 = vmatprep.subr.mxu0 0.0
    %3939 = vmatpush2.msra.mxu0 0.0
    %3940 = vmatprep.subr.mxu0 0.0
    %3941 = vmatpush2.msra.mxu0 0.0
    %3942 = vmatprep.subr.mxu0 0.0
    %3943 = vmatpush2.msra.mxu0 0.0
    %3944 = vmatprep.subr.mxu0 0.0
    %3945 = vmatpush2.msra.mxu0 0.0
    %3946 = vmatprep.subr.mxu0 0.0
    %3947 = vmatpush2.msra.mxu0 0.0
    %3948 = vmatprep.subr.mxu0 0.0
    %3949 = vmatpush2.msra.mxu0 0.0
    %3950 = vmatprep.mubr.f32.mxu0 0.0
    %3951 = vmatmul.mubr.f32.gmra.mxu0 %v3884
    %v3952 = vpop.f32.mrf.mxu0
    %v3953 = vadd.f32 %v3880, %v3952
    %v3954 = vpop.f32.mrf.mxu0
    %3955 = vdwg.mxu0
    %v3956 = vrot.slane %v3794, 5
    %v3958 = vrot.slane %v3795, 5
    %v3960 = vsel %vm3796, %v3956, %v3958
    %s3961 = scalar_lea.vmem %s7, 32
    %v3962 = vld [vmem:[%s3961] sm:$0xff]
    %v3963 = vld [vmem:[%s3961 + $0x8] sm:$0xff]
    %v3965 = vsel %vm2625, %v3960, 0
    %3967 = vmatprep.subr.mxu0 0.0
    %3968 = vmatpush1.msra.mxu0 0.0
    %3969 = vmatprep.subr.mxu0 0.0
    %3970 = vmatpush1.msra.mxu0 0.0
    %3971 = vmatprep.subr.mxu0 0.0
    %3972 = vmatpush1.msra.mxu0 0.0
    %3973 = vmatprep.subr.mxu0 0.0
    %3974 = vmatpush1.msra.mxu0 0.0
    %3975 = vmatprep.subr.mxu0 0.0
    %3976 = vmatpush1.msra.mxu0 0.0
    %3977 = vmatprep.subr.mxu0 0.0
    %3978 = vmatpush1.msra.mxu0 0.0
    %3979 = vmatprep.subr.mxu0 0.0
    %3980 = vmatpush1.msra.mxu0 0.0
    %3981 = vmatprep.subr.mxu0 0.0
    %3982 = vmatpush1.msra.mxu0 0.0
    %3983 = vmatprep.subr.mxu0 0.0
    %3984 = vmatpush1.msra.mxu0 0.0
    %3985 = vmatprep.subr.mxu0 0.0
    %3986 = vmatpush1.msra.mxu0 0.0
    %3987 = vmatprep.subr.mxu0 0.0
    %3988 = vmatpush1.msra.mxu0 0.0
    %3989 = vmatprep.subr.mxu0 0.0
    %3990 = vmatpush1.msra.mxu0 0.0
    %3991 = vmatprep.subr.mxu0 0.0
    %3992 = vmatpush1.msra.mxu0 0.0
    %3993 = vmatprep.subr.mxu0 0.0
    %3994 = vmatpush1.msra.mxu0 0.0
    %3995 = vmatprep.subr.mxu0 0.0
    %3996 = vmatpush1.msra.mxu0 %v3963
    %3997 = vmatprep.subr.mxu0 0.0
    %3998 = vmatpush1.msra.mxu0 %v3962
    %3999 = vmatprep.subr.mxu0 0.0
    %4000 = vmatpush2.msra.mxu0 0.0
    %4001 = vmatprep.subr.mxu0 0.0
    %4002 = vmatpush2.msra.mxu0 0.0
    %4003 = vmatprep.subr.mxu0 0.0
    %4004 = vmatpush2.msra.mxu0 0.0
    %4005 = vmatprep.subr.mxu0 0.0
    %4006 = vmatpush2.msra.mxu0 0.0
    %4007 = vmatprep.subr.mxu0 0.0
    %4008 = vmatpush2.msra.mxu0 0.0
    %4009 = vmatprep.subr.mxu0 0.0
    %4010 = vmatpush2.msra.mxu0 0.0
    %4011 = vmatprep.subr.mxu0 0.0
    %4012 = vmatpush2.msra.mxu0 0.0
    %4013 = vmatprep.subr.mxu0 0.0
    %4014 = vmatpush2.msra.mxu0 0.0
    %4015 = vmatprep.subr.mxu0 0.0
    %4016 = vmatpush2.msra.mxu0 0.0
    %4017 = vmatprep.subr.mxu0 0.0
    %4018 = vmatpush2.msra.mxu0 0.0
    %4019 = vmatprep.subr.mxu0 0.0
    %4020 = vmatpush2.msra.mxu0 0.0
    %4021 = vmatprep.subr.mxu0 0.0
    %4022 = vmatpush2.msra.mxu0 0.0
    %4023 = vmatprep.subr.mxu0 0.0
    %4024 = vmatpush2.msra.mxu0 0.0
    %4025 = vmatprep.subr.mxu0 0.0
    %4026 = vmatpush2.msra.mxu0 0.0
    %4027 = vmatprep.subr.mxu0 0.0
    %4028 = vmatpush2.msra.mxu0 0.0
    %4029 = vmatprep.subr.mxu0 0.0
    %4030 = vmatpush2.msra.mxu0 0.0
    %4031 = vmatprep.mubr.f32.mxu0 0.0
    %4032 = vmatmul.mubr.f32.gmra.mxu0 %v3965
    %v4033 = vpop.f32.mrf.mxu0
    %v4034 = vadd.f32 0.0, %v4033
    %v4035 = vpop.f32.mrf.mxu0
    %4036 = vdwg.mxu0
    %v4037 = vadd.f32 %v3953, %v4034
    %v4038 = vrot.slane %v3794, 6
    %v4040 = vrot.slane %v3795, 6
    %v4042 = vsel %vm3796, %v4038, %v4040
    %s4043 = scalar_lea.vmem %s7, 48
    %v4044 = vld [vmem:[%s4043] sm:$0xff]
    %v4045 = vld [vmem:[%s4043 + $0x8] sm:$0xff]
    %v4047 = vsel %vm2625, %v4042, 0
    %4049 = vmatprep.subr.mxu0 0.0
    %4050 = vmatpush1.msra.mxu0 0.0
    %4051 = vmatprep.subr.mxu0 0.0
    %4052 = vmatpush1.msra.mxu0 0.0
    %4053 = vmatprep.subr.mxu0 0.0
    %4054 = vmatpush1.msra.mxu0 0.0
    %4055 = vmatprep.subr.mxu0 0.0
    %4056 = vmatpush1.msra.mxu0 0.0
    %4057 = vmatprep.subr.mxu0 0.0
    %4058 = vmatpush1.msra.mxu0 0.0
    %4059 = vmatprep.subr.mxu0 0.0
    %4060 = vmatpush1.msra.mxu0 0.0
    %4061 = vmatprep.subr.mxu0 0.0
    %4062 = vmatpush1.msra.mxu0 0.0
    %4063 = vmatprep.subr.mxu0 0.0
    %4064 = vmatpush1.msra.mxu0 0.0
    %4065 = vmatprep.subr.mxu0 0.0
    %4066 = vmatpush1.msra.mxu0 0.0
    %4067 = vmatprep.subr.mxu0 0.0
    %4068 = vmatpush1.msra.mxu0 0.0
    %4069 = vmatprep.subr.mxu0 0.0
    %4070 = vmatpush1.msra.mxu0 0.0
    %4071 = vmatprep.subr.mxu0 0.0
    %4072 = vmatpush1.msra.mxu0 0.0
    %4073 = vmatprep.subr.mxu0 0.0
    %4074 = vmatpush1.msra.mxu0 0.0
    %4075 = vmatprep.subr.mxu0 0.0
    %4076 = vmatpush1.msra.mxu0 0.0
    %4077 = vmatprep.subr.mxu0 0.0
    %4078 = vmatpush1.msra.mxu0 %v4045
    %4079 = vmatprep.subr.mxu0 0.0
    %4080 = vmatpush1.msra.mxu0 %v4044
    %4081 = vmatprep.subr.mxu0 0.0
    %4082 = vmatpush2.msra.mxu0 0.0
    %4083 = vmatprep.subr.mxu0 0.0
    %4084 = vmatpush2.msra.mxu0 0.0
    %4085 = vmatprep.subr.mxu0 0.0
    %4086 = vmatpush2.msra.mxu0 0.0
    %4087 = vmatprep.subr.mxu0 0.0
    %4088 = vmatpush2.msra.mxu0 0.0
    %4089 = vmatprep.subr.mxu0 0.0
    %4090 = vmatpush2.msra.mxu0 0.0
    %4091 = vmatprep.subr.mxu0 0.0
    %4092 = vmatpush2.msra.mxu0 0.0
    %4093 = vmatprep.subr.mxu0 0.0
    %4094 = vmatpush2.msra.mxu0 0.0
    %4095 = vmatprep.subr.mxu0 0.0
    %4096 = vmatpush2.msra.mxu0 0.0
    %4097 = vmatprep.subr.mxu0 0.0
    %4098 = vmatpush2.msra.mxu0 0.0
    %4099 = vmatprep.subr.mxu0 0.0
    %4100 = vmatpush2.msra.mxu0 0.0
    %4101 = vmatprep.subr.mxu0 0.0
    %4102 = vmatpush2.msra.mxu0 0.0
    %4103 = vmatprep.subr.mxu0 0.0
    %4104 = vmatpush2.msra.mxu0 0.0
    %4105 = vmatprep.subr.mxu0 0.0
    %4106 = vmatpush2.msra.mxu0 0.0
    %4107 = vmatprep.subr.mxu0 0.0
    %4108 = vmatpush2.msra.mxu0 0.0
    %4109 = vmatprep.subr.mxu0 0.0
    %4110 = vmatpush2.msra.mxu0 0.0
    %4111 = vmatprep.subr.mxu0 0.0
    %4112 = vmatpush2.msra.mxu0 0.0
    %4113 = vmatprep.mubr.f32.mxu0 0.0
    %4114 = vmatmul.mubr.f32.gmra.mxu0 %v4047
    %v4115 = vpop.f32.mrf.mxu0
    %v4116 = vadd.f32 0.0, %v4115
    %v4117 = vpop.f32.mrf.mxu0
    %4118 = vdwg.mxu0
    %v4119 = vadd.f32 %v4037, %v4116
    %v4120 = vld [vmem:[%s8] sm:$0x1]
    %v4122 = vlaneseq
    %v4123 = vshrl.u32 %v4122, 7
    %v4124 = vsub.s32 0, %v4123
    %v4125 = vrot.slane %v4120, %v4124
    %v4127 = vadd.f32 %v4119, %v4125
    %vm4128 = vcmask 254976
    %4129 = vst.msk [vmem:[#allocation4] sm:$0x3] %vm4128, %v4127
    // Predicated region
    $region38: #{feature_cnn_forward.1} parent=1 // pred_check
      _
    $region39: #{feature_cnn_forward.1} parent=1 // pred_check_branch
      %4131 = sbr.rel (0) target = $region41
    $region40: #{feature_cnn_forward.1} parent=1 // pred_region
      %s4133 = ssub.s32 32, 32
      %4134 = vsyncadd [#allocation5], %s4133
      %s4136 = sshll.u32 [#allocation4], 4
      %s4137 = int_to_ptr.vmem [resolvable:$true] %s4136
      %4139 = dma.vmem_to_hbm [thread:$0]  %s4137, 32, %s9, [#allocation5]
    $region41: #{feature_cnn_forward.1} parent=1 // pred_fallthru
      _
    // Predicated region
    $region42: #{feature_cnn_forward.1} parent=1 // pred_check
      _
    $region43: #{feature_cnn_forward.1} parent=1 // pred_check_branch
      %4141 = sbr.rel (0) target = $region45
    $region44: #{feature_cnn_forward.1} parent=1 // pred_region
      %4142 = dma.done [#allocation5], 32
    $region45: #{feature_cnn_forward.1} parent=1 // pred_fallthru
      _
    %4143 = vsyncpa [#allocation5], 1

</llo_original>
